<compile_context>
chip_gen: v7x
topology: tpu7x:2x2x1
jax: 0.10.0
libtpu: 0.0.40
codegen_flags: <defaults>
</compile_context>

<pallas_src>
import functools

import jax
import jax.numpy as jnp
from jax.experimental import pallas as pl
from jax.experimental.pallas import tpu as pltpu


# -----------------------------------------------------------------------------
# Fused kernel: n_layers GRU (PyTorch gate order r, z, n) + l1 -> relu -> l2
# -----------------------------------------------------------------------------
def make_fused_kernel(seq_len, batch, nfeats, n_layers):
    S, B, H = seq_len, batch, nfeats

    def kernel(*args):
        x_ref = args[0]
        layer_refs = args[1:1 + 4 * n_layers]
        l1_w_ref, l1_b_ref, l2_w_ref, l2_b_ref, out_ref, xbuf = args[1 + 4 * n_layers:]

        x = x_ref[...]                                    # (S*B, In) time-major

        for layer in range(n_layers):
            wih_ref, whh_ref, bih_ref, bhh_ref = layer_refs[4 * layer: 4 * layer + 4]

            # ---- hoisted input projection: one matmul per gate over ALL steps
            # (b_hr / b_hz folded in here; b_hn must stay inside r * (...)).
            gi_r = (jnp.dot(x, wih_ref[0], preferred_element_type=jnp.float32)
                    + (bih_ref[0] + bhh_ref[0]))
            gi_z = (jnp.dot(x, wih_ref[1], preferred_element_type=jnp.float32)
                    + (bih_ref[1] + bhh_ref[1]))
            gi_n = (jnp.dot(x, wih_ref[2], preferred_element_type=jnp.float32)
                    + bih_ref[2])

            # hoist weight loads / bias broadcast out of the time loop
            whh_r = whh_ref[0]
            whh_z = whh_ref[1]
            whh_n = whh_ref[2]
            bhh_n = jnp.broadcast_to(bhh_ref[2], (B, H))

            h = jnp.zeros((B, H), jnp.float32)
            # fully-unrolled sequential recurrence (S is small & static)
            for t in range(S):
                lo = t * B
                gh_r = jnp.dot(h, whh_r, preferred_element_type=jnp.float32)
                gh_z = jnp.dot(h, whh_z, preferred_element_type=jnp.float32)
                gh_n = jnp.dot(h, whh_n, preferred_element_type=jnp.float32) + bhh_n
                r = jax.nn.sigmoid(gi_r[lo:lo + B] + gh_r)
                z = jax.nn.sigmoid(gi_z[lo:lo + B] + gh_z)
                n = jnp.tanh(gi_n[lo:lo + B] + r * gh_n)
                h = (1.0 - z) * n + z * h
                xbuf[lo:lo + B, :] = h                    # layer output slab (VMEM)
            x = xbuf[...]                                 # (S*B, H) -> next layer

        # ---- MLP head: relu(x @ W1 + b1) @ W2 + b2  (W2/b2 lane-padded)
        hid = jnp.maximum(
            jnp.dot(x, l1_w_ref[...], preferred_element_type=jnp.float32)
            + l1_b_ref[...], 0.0)
        score = (jnp.dot(hid, l2_w_ref[...], preferred_element_type=jnp.float32)
                 + l2_b_ref[...])
        out_ref[...] = score.astype(out_ref.dtype)        # (S*B, Vpad) lane-dense

    return kernel


def fused_forward(feats_flat, gru_params, l1_w, l1_b, l2_w_pad, l2_b_pad,
                  *, seq_len, batch, nfeats, vpad):
    S, B, H = seq_len, batch, nfeats
    n_layers = len(gru_params)
    in0 = feats_flat.shape[-1]

    inputs = [feats_flat]
    in_specs = [pl.BlockSpec((S * B, in0), lambda i: (0, 0))]
    for lp in gru_params:
        for name in ("wih", "whh", "bih", "bhh"):
            arr = lp[name]
            inputs.append(arr)
            in_specs.append(pl.BlockSpec(arr.shape, lambda i: (0, 0, 0)))
    for arr in (l1_w, l1_b, l2_w_pad, l2_b_pad):
        inputs.append(arr)
        in_specs.append(pl.BlockSpec(arr.shape, lambda i: (0, 0)))

    # advisory cost estimate for the XLA scheduler
    flops = 0
    in_dim = in0
    for _ in range(n_layers):
        flops += 3 * 2 * S * B * in_dim * H      # hoisted input projections
        flops += 3 * 2 * S * B * H * H           # recurrent h @ W_hh
        in_dim = H
    flops += 2 * S * B * H * H + 2 * S * B * H * vpad
    transc = 3 * S * B * H * n_layers
    bytes_acc = sum(int(a.size) * a.dtype.itemsize for a in inputs) + S * B * vpad * 4

    return pl.pallas_call(
        make_fused_kernel(S, B, H, n_layers),
        out_shape=jax.ShapeDtypeStruct((S * B, vpad), jnp.float32),
        grid_spec=pltpu.PrefetchScalarGridSpec(
            num_scalar_prefetch=0,
            grid=(1,),
            in_specs=in_specs,
            out_specs=pl.BlockSpec((S * B, vpad), lambda i: (0, 0)),
            scratch_shapes=[pltpu.VMEM((S * B, H), jnp.float32)],
        ),
        compiler_params=pltpu.CompilerParams(
            dimension_semantics=("arbitrary",)),   # GRU recurrence is sequential
        cost_estimate=pl.CostEstimate(
            flops=flops, transcendentals=transc, bytes_accessed=bytes_acc),
    )(*inputs)


# -----------------------------------------------------------------------------
# Parameters (per-gate stacked layout: gate axis first, gate order r, z, n)
# -----------------------------------------------------------------------------
def init_params(key, *, vocab_size, nfeats, gru_depth, no_use_tree=False):
    gru_in0 = nfeats if no_use_tree else nfeats + 4
    params = {}
    k = key

    def nxt():
        nonlocal k
        k, sub = jax.random.split(k)
        return sub

    # Emb: token embedding table (vocab, nFeats); tree features (4) concat raw.
    params["emb"] = 0.1 * jax.random.normal(nxt(), (vocab_size, nfeats), jnp.float32)

    params["gru"] = []
    scale = 1.0 / jnp.sqrt(jnp.float32(nfeats))
    for layer in range(gru_depth):
        in_dim = gru_in0 if layer == 0 else nfeats
        params["gru"].append(dict(
            wih=scale * jax.random.normal(nxt(), (3, in_dim, nfeats), jnp.float32),
            whh=scale * jax.random.normal(nxt(), (3, nfeats, nfeats), jnp.float32),
            bih=scale * jax.random.normal(nxt(), (3, 1, nfeats), jnp.float32),
            bhh=scale * jax.random.normal(nxt(), (3, 1, nfeats), jnp.float32),
        ))

    params["l1_w"] = 0.1 * jax.random.normal(nxt(), (nfeats, nfeats), jnp.float32)
    params["l1_b"] = 0.1 * jax.random.normal(nxt(), (1, nfeats), jnp.float32)
    params["l2_w"] = 0.1 * jax.random.normal(nxt(), (nfeats, vocab_size), jnp.float32)
    params["l2_b"] = 0.1 * jax.random.normal(nxt(), (1, vocab_size), jnp.float32)
    return params


# -----------------------------------------------------------------------------
# LM_HyoAssGen forward (JAX wrapper + fused Pallas kernel)
# -----------------------------------------------------------------------------
@functools.partial(jax.jit, static_argnames=("nfeats", "vocab_size"))
def lm_hyoassgen_forward(params, tokens, trees, *, nfeats, vocab_size):
    """tokens: (B, S) int32, trees: (B, S, 4) f32 -> score (B, S, vocab)."""
    B, S = tokens.shape

    # pad_list / sort-by-length: equal-length synthetic batch => perm is identity.
    # TODO(synk): variable-length packing (pack_padded_sequence) not modeled.
    tokens_sm = jnp.transpose(tokens, (1, 0))              # (S, B)
    trees_sm = jnp.transpose(trees, (1, 0, 2))             # (S, B, 4)

    # Emb: embedding lookup + tree-feature concat (cheap glue, kept in XLA).
    # TODO(synk): could be pulled into the kernel via scalar-prefetched ids.
    tok_emb = jnp.take(params["emb"], tokens_sm, axis=0)   # (S, B, nFeats)
    feats = jnp.concatenate([tok_emb, trees_sm], axis=-1)  # (S, B, nFeats+4)
    feats_flat = feats.reshape(S * B, feats.shape[-1])     # time-major rows

    # Pad vocab to a 128-lane multiple for a lane-dense (unmasked) output store.
    vpad = ((vocab_size + 127) // 128) * 128
    l2_w = jnp.pad(params["l2_w"], ((0, 0), (0, vpad - vocab_size)))
    l2_b = jnp.pad(params["l2_b"], ((0, 0), (0, vpad - vocab_size)))

    score_flat = fused_forward(
        feats_flat, params["gru"],
        params["l1_w"], params["l1_b"], l2_w, l2_b,
        seq_len=S, batch=B, nfeats=nfeats, vpad=vpad)      # (S*B, vpad)

    # strip pad, .view(-1, B, vocab).transpose(0, 1); unperm is identity.
    score = score_flat[:, :vocab_size].reshape(S, B, vocab_size)
    return jnp.transpose(score, (1, 0, 2))                 # (B, S, vocab)


if __name__ == "__main__":
    # args: nFeats=32, gru_depth=2, vocab_size=64, no_use_tree=False
    NFEATS = 32
    GRU_DEPTH = 2
    VOCAB = 64
    B, S = 2, 8

    key = jax.random.PRNGKey(0)
    kp, kt, kr = jax.random.split(key, 3)

    params = init_params(kp, vocab_size=VOCAB, nfeats=NFEATS,
                         gru_depth=GRU_DEPTH, no_use_tree=False)

    tokens = jax.random.randint(kt, (B, S), 0, VOCAB, dtype=jnp.int32)
    trees = jax.random.normal(kr, (B, S, 4), jnp.float32)

    score = lm_hyoassgen_forward(params, tokens, trees,
                                 nfeats=NFEATS, vocab_size=VOCAB)
    score = jax.block_until_ready(score)
    assert score.shape == (B, S, VOCAB), score.shape
    assert bool(jnp.all(jnp.isfinite(score)))
    print("KERNEL_OK")
</pallas_src>

<mosaic_0001>
module attributes {stable_mosaic.version = 11 : i64} {
  func.func @kernel(%arg0: i32, %arg1: memref<16x36xf32, #tpu.memory_space<vmem>>, %arg2: memref<3x36x32xf32, #tpu.memory_space<vmem>>, %arg3: memref<3x32x32xf32, #tpu.memory_space<vmem>>, %arg4: memref<3x1x32xf32, #tpu.memory_space<vmem>>, %arg5: memref<3x1x32xf32, #tpu.memory_space<vmem>>, %arg6: memref<3x32x32xf32, #tpu.memory_space<vmem>>, %arg7: memref<3x32x32xf32, #tpu.memory_space<vmem>>, %arg8: memref<3x1x32xf32, #tpu.memory_space<vmem>>, %arg9: memref<3x1x32xf32, #tpu.memory_space<vmem>>, %arg10: memref<32x32xf32, #tpu.memory_space<vmem>>, %arg11: memref<1x32xf32, #tpu.memory_space<vmem>>, %arg12: memref<32x128xf32, #tpu.memory_space<vmem>>, %arg13: memref<1x128xf32, #tpu.memory_space<vmem>>, %arg14: memref<16x128xf32, #tpu.memory_space<vmem>>, %arg15: memref<16x32xf32, #tpu.memory_space<vmem>>) attributes {dimension_semantics = [#tpu.dimension_semantics<arbitrary>], iteration_bounds = array<i64: 1>, scalar_prefetch = 0 : i64, scratch_operands = 1 : i64, tpu.core_type = #tpu.core_type<tc>, window_params = [{pipeline_mode = #tpu.pipeline_mode<synchronous>, transform_indices = @transform_0, window_bounds = array<i64: 16, 36>}, {pipeline_mode = #tpu.pipeline_mode<synchronous>, transform_indices = @transform_1, window_bounds = array<i64: 3, 36, 32>}, {pipeline_mode = #tpu.pipeline_mode<synchronous>, transform_indices = @transform_2, window_bounds = array<i64: 3, 32, 32>}, {pipeline_mode = #tpu.pipeline_mode<synchronous>, transform_indices = @transform_3, window_bounds = array<i64: 3, 1, 32>}, {pipeline_mode = #tpu.pipeline_mode<synchronous>, transform_indices = @transform_4, window_bounds = array<i64: 3, 1, 32>}, {pipeline_mode = #tpu.pipeline_mode<synchronous>, transform_indices = @transform_5, window_bounds = array<i64: 3, 32, 32>}, {pipeline_mode = #tpu.pipeline_mode<synchronous>, transform_indices = @transform_6, window_bounds = array<i64: 3, 32, 32>}, {pipeline_mode = #tpu.pipeline_mode<synchronous>, transform_indices = @transform_7, window_bounds = array<i64: 3, 1, 32>}, {pipeline_mode = #tpu.pipeline_mode<synchronous>, transform_indices = @transform_8, window_bounds = array<i64: 3, 1, 32>}, {pipeline_mode = #tpu.pipeline_mode<synchronous>, transform_indices = @transform_9, window_bounds = array<i64: 32, 32>}, {pipeline_mode = #tpu.pipeline_mode<synchronous>, transform_indices = @transform_10, window_bounds = array<i64: 1, 32>}, {pipeline_mode = #tpu.pipeline_mode<synchronous>, transform_indices = @transform_11, window_bounds = array<i64: 32, 128>}, {pipeline_mode = #tpu.pipeline_mode<synchronous>, transform_indices = @transform_12, window_bounds = array<i64: 1, 128>}, {pipeline_mode = #tpu.pipeline_mode<synchronous>, transform_indices = @transform_13, window_bounds = array<i64: 16, 128>}]} {
    %c0 = arith.constant 0 : index
    %c0_0 = arith.constant 0 : index
    %0 = vector.load %arg1[%c0, %c0_0] : memref<16x36xf32, #tpu.memory_space<vmem>>, vector<16x36xf32>
    %c0_1 = arith.constant 0 : index
    %c0_2 = arith.constant 0 : index
    %c0_3 = arith.constant 0 : index
    %1 = vector.load %arg2[%c0_1, %c0_2, %c0_3] : memref<3x36x32xf32, #tpu.memory_space<vmem>>, vector<1x36x32xf32>
    %2 = vector.shape_cast %1 : vector<1x36x32xf32> to vector<36x32xf32>
    %cst = arith.constant dense<0.000000e+00> : vector<16x32xf32>
    %3 = tpu.matmul %0, %2, %cst {dimension_numbers = #tpu.dot_dimension_numbers<[1], [0], [0], [1], [0, 0, 1, 1], [], []>} : vector<16x36xf32>, vector<36x32xf32>, vector<16x32xf32> -> vector<16x32xf32>
    %c0_4 = arith.constant 0 : index
    %c0_5 = arith.constant 0 : index
    %c0_6 = arith.constant 0 : index
    %4 = vector.load %arg4[%c0_4, %c0_5, %c0_6] : memref<3x1x32xf32, #tpu.memory_space<vmem>>, vector<1x1x32xf32>
    %5 = vector.shape_cast %4 : vector<1x1x32xf32> to vector<1x32xf32>
    %c0_7 = arith.constant 0 : index
    %c0_8 = arith.constant 0 : index
    %c0_9 = arith.constant 0 : index
    %6 = vector.load %arg5[%c0_7, %c0_8, %c0_9] : memref<3x1x32xf32, #tpu.memory_space<vmem>>, vector<1x1x32xf32>
    %7 = vector.shape_cast %6 : vector<1x1x32xf32> to vector<1x32xf32>
    %8 = arith.addf %5, %7 : vector<1x32xf32>
    %9 = vector.broadcast %8 : vector<1x32xf32> to vector<16x32xf32>
    %10 = arith.addf %3, %9 : vector<16x32xf32>
    %c1 = arith.constant 1 : index
    %c0_10 = arith.constant 0 : index
    %c0_11 = arith.constant 0 : index
    %11 = vector.load %arg2[%c1, %c0_10, %c0_11] : memref<3x36x32xf32, #tpu.memory_space<vmem>>, vector<1x36x32xf32>
    %12 = vector.shape_cast %11 : vector<1x36x32xf32> to vector<36x32xf32>
    %cst_12 = arith.constant dense<0.000000e+00> : vector<16x32xf32>
    %13 = tpu.matmul %0, %12, %cst_12 {dimension_numbers = #tpu.dot_dimension_numbers<[1], [0], [0], [1], [0, 0, 1, 1], [], []>} : vector<16x36xf32>, vector<36x32xf32>, vector<16x32xf32> -> vector<16x32xf32>
    %c1_13 = arith.constant 1 : index
    %c0_14 = arith.constant 0 : index
    %c0_15 = arith.constant 0 : index
    %14 = vector.load %arg4[%c1_13, %c0_14, %c0_15] : memref<3x1x32xf32, #tpu.memory_space<vmem>>, vector<1x1x32xf32>
    %15 = vector.shape_cast %14 : vector<1x1x32xf32> to vector<1x32xf32>
    %c1_16 = arith.constant 1 : index
    %c0_17 = arith.constant 0 : index
    %c0_18 = arith.constant 0 : index
    %16 = vector.load %arg5[%c1_16, %c0_17, %c0_18] : memref<3x1x32xf32, #tpu.memory_space<vmem>>, vector<1x1x32xf32>
    %17 = vector.shape_cast %16 : vector<1x1x32xf32> to vector<1x32xf32>
    %18 = arith.addf %15, %17 : vector<1x32xf32>
    %19 = vector.broadcast %18 : vector<1x32xf32> to vector<16x32xf32>
    %20 = arith.addf %13, %19 : vector<16x32xf32>
    %c2 = arith.constant 2 : index
    %c0_19 = arith.constant 0 : index
    %c0_20 = arith.constant 0 : index
    %21 = vector.load %arg2[%c2, %c0_19, %c0_20] : memref<3x36x32xf32, #tpu.memory_space<vmem>>, vector<1x36x32xf32>
    %22 = vector.shape_cast %21 : vector<1x36x32xf32> to vector<36x32xf32>
    %cst_21 = arith.constant dense<0.000000e+00> : vector<16x32xf32>
    %23 = tpu.matmul %0, %22, %cst_21 {dimension_numbers = #tpu.dot_dimension_numbers<[1], [0], [0], [1], [0, 0, 1, 1], [], []>} : vector<16x36xf32>, vector<36x32xf32>, vector<16x32xf32> -> vector<16x32xf32>
    %c2_22 = arith.constant 2 : index
    %c0_23 = arith.constant 0 : index
    %c0_24 = arith.constant 0 : index
    %24 = vector.load %arg4[%c2_22, %c0_23, %c0_24] : memref<3x1x32xf32, #tpu.memory_space<vmem>>, vector<1x1x32xf32>
    %25 = vector.shape_cast %24 : vector<1x1x32xf32> to vector<1x32xf32>
    %26 = vector.broadcast %25 : vector<1x32xf32> to vector<16x32xf32>
    %27 = arith.addf %23, %26 : vector<16x32xf32>
    %c0_25 = arith.constant 0 : index
    %c0_26 = arith.constant 0 : index
    %c0_27 = arith.constant 0 : index
    %28 = vector.load %arg3[%c0_25, %c0_26, %c0_27] : memref<3x32x32xf32, #tpu.memory_space<vmem>>, vector<1x32x32xf32>
    %29 = vector.shape_cast %28 : vector<1x32x32xf32> to vector<32x32xf32>
    %c1_28 = arith.constant 1 : index
    %c0_29 = arith.constant 0 : index
    %c0_30 = arith.constant 0 : index
    %30 = vector.load %arg3[%c1_28, %c0_29, %c0_30] : memref<3x32x32xf32, #tpu.memory_space<vmem>>, vector<1x32x32xf32>
    %31 = vector.shape_cast %30 : vector<1x32x32xf32> to vector<32x32xf32>
    %c2_31 = arith.constant 2 : index
    %c0_32 = arith.constant 0 : index
    %c0_33 = arith.constant 0 : index
    %32 = vector.load %arg3[%c2_31, %c0_32, %c0_33] : memref<3x32x32xf32, #tpu.memory_space<vmem>>, vector<1x32x32xf32>
    %33 = vector.shape_cast %32 : vector<1x32x32xf32> to vector<32x32xf32>
    %c2_34 = arith.constant 2 : index
    %c0_35 = arith.constant 0 : index
    %c0_36 = arith.constant 0 : index
    %34 = vector.load %arg5[%c2_34, %c0_35, %c0_36] : memref<3x1x32xf32, #tpu.memory_space<vmem>>, vector<1x1x32xf32>
    %35 = vector.shape_cast %34 : vector<1x1x32xf32> to vector<1x32xf32>
    %36 = vector.shape_cast %35 : vector<1x32xf32> to vector<1x32xf32>
    %37 = vector.broadcast %36 : vector<1x32xf32> to vector<2x32xf32>
    %cst_37 = arith.constant 0.000000e+00 : f32
    %38 = vector.broadcast %cst_37 : f32 to vector<2x32xf32>
    %cst_38 = arith.constant dense<0.000000e+00> : vector<2x32xf32>
    %39 = tpu.matmul %38, %29, %cst_38 {dimension_numbers = #tpu.dot_dimension_numbers<[1], [0], [0], [1], [0, 0, 1, 1], [], []>} : vector<2x32xf32>, vector<32x32xf32>, vector<2x32xf32> -> vector<2x32xf32>
    %cst_39 = arith.constant dense<0.000000e+00> : vector<2x32xf32>
    %40 = tpu.matmul %38, %31, %cst_39 {dimension_numbers = #tpu.dot_dimension_numbers<[1], [0], [0], [1], [0, 0, 1, 1], [], []>} : vector<2x32xf32>, vector<32x32xf32>, vector<2x32xf32> -> vector<2x32xf32>
    %cst_40 = arith.constant dense<0.000000e+00> : vector<2x32xf32>
    %41 = tpu.matmul %38, %33, %cst_40 {dimension_numbers = #tpu.dot_dimension_numbers<[1], [0], [0], [1], [0, 0, 1, 1], [], []>} : vector<2x32xf32>, vector<32x32xf32>, vector<2x32xf32> -> vector<2x32xf32>
    %42 = arith.addf %41, %37 : vector<2x32xf32>
    %43 = vector.extract_strided_slice %10 {offsets = [0, 0], sizes = [2, 32], strides = [1, 1]} : vector<16x32xf32> to vector<2x32xf32>
    %44 = arith.addf %43, %39 : vector<2x32xf32>
    %45 = arith.negf %44 : vector<2x32xf32>
    %46 = math.exp %45 : vector<2x32xf32>
    %cst_41 = arith.constant 1.000000e+00 : f32
    %47 = vector.broadcast %cst_41 : f32 to vector<2x32xf32>
    %48 = arith.addf %47, %46 : vector<2x32xf32>
    %49 = arith.divf %47, %48 : vector<2x32xf32>
    %50 = vector.extract_strided_slice %20 {offsets = [0, 0], sizes = [2, 32], strides = [1, 1]} : vector<16x32xf32> to vector<2x32xf32>
    %51 = arith.addf %50, %40 : vector<2x32xf32>
    %52 = arith.negf %51 : vector<2x32xf32>
    %53 = math.exp %52 : vector<2x32xf32>
    %cst_42 = arith.constant 1.000000e+00 : f32
    %54 = vector.broadcast %cst_42 : f32 to vector<2x32xf32>
    %55 = arith.addf %54, %53 : vector<2x32xf32>
    %56 = arith.divf %54, %55 : vector<2x32xf32>
    %57 = vector.extract_strided_slice %27 {offsets = [0, 0], sizes = [2, 32], strides = [1, 1]} : vector<16x32xf32> to vector<2x32xf32>
    %58 = arith.mulf %49, %42 : vector<2x32xf32>
    %59 = arith.addf %57, %58 : vector<2x32xf32>
    %60 = math.tanh %59 : vector<2x32xf32>
    %cst_43 = arith.constant 1.000000e+00 : f32
    %61 = vector.broadcast %cst_43 : f32 to vector<2x32xf32>
    %62 = arith.subf %61, %56 : vector<2x32xf32>
    %63 = arith.mulf %62, %60 : vector<2x32xf32>
    %64 = arith.mulf %56, %38 : vector<2x32xf32>
    %65 = arith.addf %63, %64 : vector<2x32xf32>
    %c0_44 = arith.constant 0 : index
    %c0_45 = arith.constant 0 : index
    %66 = vector.load %arg15[%c0_44, %c0_45] : memref<16x32xf32, #tpu.memory_space<vmem>>, vector<2x32xf32>
    tpu.vector_store %arg15[%c0_44, %c0_45], %65 {strides = array<i32>} : memref<16x32xf32, #tpu.memory_space<vmem>>, vector<2x32xf32>,
    %cst_46 = arith.constant dense<0.000000e+00> : vector<2x32xf32>
    %67 = tpu.matmul %65, %29, %cst_46 {dimension_numbers = #tpu.dot_dimension_numbers<[1], [0], [0], [1], [0, 0, 1, 1], [], []>} : vector<2x32xf32>, vector<32x32xf32>, vector<2x32xf32> -> vector<2x32xf32>
    %cst_47 = arith.constant dense<0.000000e+00> : vector<2x32xf32>
    %68 = tpu.matmul %65, %31, %cst_47 {dimension_numbers = #tpu.dot_dimension_numbers<[1], [0], [0], [1], [0, 0, 1, 1], [], []>} : vector<2x32xf32>, vector<32x32xf32>, vector<2x32xf32> -> vector<2x32xf32>
    %cst_48 = arith.constant dense<0.000000e+00> : vector<2x32xf32>
    %69 = tpu.matmul %65, %33, %cst_48 {dimension_numbers = #tpu.dot_dimension_numbers<[1], [0], [0], [1], [0, 0, 1, 1], [], []>} : vector<2x32xf32>, vector<32x32xf32>, vector<2x32xf32> -> vector<2x32xf32>
    %70 = arith.addf %69, %37 : vector<2x32xf32>
    %71 = vector.extract_strided_slice %10 {offsets = [2, 0], sizes = [2, 32], strides = [1, 1]} : vector<16x32xf32> to vector<2x32xf32>
    %72 = arith.addf %71, %67 : vector<2x32xf32>
    %73 = arith.negf %72 : vector<2x32xf32>
    %74 = math.exp %73 : vector<2x32xf32>
    %cst_49 = arith.constant 1.000000e+00 : f32
    %75 = vector.broadcast %cst_49 : f32 to vector<2x32xf32>
    %76 = arith.addf %75, %74 : vector<2x32xf32>
    %77 = arith.divf %75, %76 : vector<2x32xf32>
    %78 = vector.extract_strided_slice %20 {offsets = [2, 0], sizes = [2, 32], strides = [1, 1]} : vector<16x32xf32> to vector<2x32xf32>
    %79 = arith.addf %78, %68 : vector<2x32xf32>
    %80 = arith.negf %79 : vector<2x32xf32>
    %81 = math.exp %80 : vector<2x32xf32>
    %cst_50 = arith.constant 1.000000e+00 : f32
    %82 = vector.broadcast %cst_50 : f32 to vector<2x32xf32>
    %83 = arith.addf %82, %81 : vector<2x32xf32>
    %84 = arith.divf %82, %83 : vector<2x32xf32>
    %85 = vector.extract_strided_slice %27 {offsets = [2, 0], sizes = [2, 32], strides = [1, 1]} : vector<16x32xf32> to vector<2x32xf32>
    %86 = arith.mulf %77, %70 : vector<2x32xf32>
    %87 = arith.addf %85, %86 : vector<2x32xf32>
    %88 = math.tanh %87 : vector<2x32xf32>
    %cst_51 = arith.constant 1.000000e+00 : f32
    %89 = vector.broadcast %cst_51 : f32 to vector<2x32xf32>
    %90 = arith.subf %89, %84 : vector<2x32xf32>
    %91 = arith.mulf %90, %88 : vector<2x32xf32>
    %92 = arith.mulf %84, %65 : vector<2x32xf32>
    %93 = arith.addf %91, %92 : vector<2x32xf32>
    %c2_52 = arith.constant 2 : index
    %c0_53 = arith.constant 0 : index
    %94 = vector.load %arg15[%c2_52, %c0_53] : memref<16x32xf32, #tpu.memory_space<vmem>>, vector<2x32xf32>
    tpu.vector_store %arg15[%c2_52, %c0_53], %93 {strides = array<i32>} : memref<16x32xf32, #tpu.memory_space<vmem>>, vector<2x32xf32>,
    %cst_54 = arith.constant dense<0.000000e+00> : vector<2x32xf32>
    %95 = tpu.matmul %93, %29, %cst_54 {dimension_numbers = #tpu.dot_dimension_numbers<[1], [0], [0], [1], [0, 0, 1, 1], [], []>} : vector<2x32xf32>, vector<32x32xf32>, vector<2x32xf32> -> vector<2x32xf32>
    %cst_55 = arith.constant dense<0.000000e+00> : vector<2x32xf32>
    %96 = tpu.matmul %93, %31, %cst_55 {dimension_numbers = #tpu.dot_dimension_numbers<[1], [0], [0], [1], [0, 0, 1, 1], [], []>} : vector<2x32xf32>, vector<32x32xf32>, vector<2x32xf32> -> vector<2x32xf32>
    %cst_56 = arith.constant dense<0.000000e+00> : vector<2x32xf32>
    %97 = tpu.matmul %93, %33, %cst_56 {dimension_numbers = #tpu.dot_dimension_numbers<[1], [0], [0], [1], [0, 0, 1, 1], [], []>} : vector<2x32xf32>, vector<32x32xf32>, vector<2x32xf32> -> vector<2x32xf32>
    %98 = arith.addf %97, %37 : vector<2x32xf32>
    %99 = vector.extract_strided_slice %10 {offsets = [4, 0], sizes = [2, 32], strides = [1, 1]} : vector<16x32xf32> to vector<2x32xf32>
    %100 = arith.addf %99, %95 : vector<2x32xf32>
    %101 = arith.negf %100 : vector<2x32xf32>
    %102 = math.exp %101 : vector<2x32xf32>
    %cst_57 = arith.constant 1.000000e+00 : f32
    %103 = vector.broadcast %cst_57 : f32 to vector<2x32xf32>
    %104 = arith.addf %103, %102 : vector<2x32xf32>
    %105 = arith.divf %103, %104 : vector<2x32xf32>
    %106 = vector.extract_strided_slice %20 {offsets = [4, 0], sizes = [2, 32], strides = [1, 1]} : vector<16x32xf32> to vector<2x32xf32>
    %107 = arith.addf %106, %96 : vector<2x32xf32>
    %108 = arith.negf %107 : vector<2x32xf32>
    %109 = math.exp %108 : vector<2x32xf32>
    %cst_58 = arith.constant 1.000000e+00 : f32
    %110 = vector.broadcast %cst_58 : f32 to vector<2x32xf32>
    %111 = arith.addf %110, %109 : vector<2x32xf32>
    %112 = arith.divf %110, %111 : vector<2x32xf32>
    %113 = vector.extract_strided_slice %27 {offsets = [4, 0], sizes = [2, 32], strides = [1, 1]} : vector<16x32xf32> to vector<2x32xf32>
    %114 = arith.mulf %105, %98 : vector<2x32xf32>
    %115 = arith.addf %113, %114 : vector<2x32xf32>
    %116 = math.tanh %115 : vector<2x32xf32>
    %cst_59 = arith.constant 1.000000e+00 : f32
    %117 = vector.broadcast %cst_59 : f32 to vector<2x32xf32>
    %118 = arith.subf %117, %112 : vector<2x32xf32>
    %119 = arith.mulf %118, %116 : vector<2x32xf32>
    %120 = arith.mulf %112, %93 : vector<2x32xf32>
    %121 = arith.addf %119, %120 : vector<2x32xf32>
    %c4 = arith.constant 4 : index
    %c0_60 = arith.constant 0 : index
    %122 = vector.load %arg15[%c4, %c0_60] : memref<16x32xf32, #tpu.memory_space<vmem>>, vector<2x32xf32>
    tpu.vector_store %arg15[%c4, %c0_60], %121 {strides = array<i32>} : memref<16x32xf32, #tpu.memory_space<vmem>>, vector<2x32xf32>,
    %cst_61 = arith.constant dense<0.000000e+00> : vector<2x32xf32>
    %123 = tpu.matmul %121, %29, %cst_61 {dimension_numbers = #tpu.dot_dimension_numbers<[1], [0], [0], [1], [0, 0, 1, 1], [], []>} : vector<2x32xf32>, vector<32x32xf32>, vector<2x32xf32> -> vector<2x32xf32>
    %cst_62 = arith.constant dense<0.000000e+00> : vector<2x32xf32>
    %124 = tpu.matmul %121, %31, %cst_62 {dimension_numbers = #tpu.dot_dimension_numbers<[1], [0], [0], [1], [0, 0, 1, 1], [], []>} : vector<2x32xf32>, vector<32x32xf32>, vector<2x32xf32> -> vector<2x32xf32>
    %cst_63 = arith.constant dense<0.000000e+00> : vector<2x32xf32>
    %125 = tpu.matmul %121, %33, %cst_63 {dimension_numbers = #tpu.dot_dimension_numbers<[1], [0], [0], [1], [0, 0, 1, 1], [], []>} : vector<2x32xf32>, vector<32x32xf32>, vector<2x32xf32> -> vector<2x32xf32>
    %126 = arith.addf %125, %37 : vector<2x32xf32>
    %127 = vector.extract_strided_slice %10 {offsets = [6, 0], sizes = [2, 32], strides = [1, 1]} : vector<16x32xf32> to vector<2x32xf32>
    %128 = arith.addf %127, %123 : vector<2x32xf32>
    %129 = arith.negf %128 : vector<2x32xf32>
    %130 = math.exp %129 : vector<2x32xf32>
    %cst_64 = arith.constant 1.000000e+00 : f32
    %131 = vector.broadcast %cst_64 : f32 to vector<2x32xf32>
    %132 = arith.addf %131, %130 : vector<2x32xf32>
    %133 = arith.divf %131, %132 : vector<2x32xf32>
    %134 = vector.extract_strided_slice %20 {offsets = [6, 0], sizes = [2, 32], strides = [1, 1]} : vector<16x32xf32> to vector<2x32xf32>
    %135 = arith.addf %134, %124 : vector<2x32xf32>
    %136 = arith.negf %135 : vector<2x32xf32>
    %137 = math.exp %136 : vector<2x32xf32>
    %cst_65 = arith.constant 1.000000e+00 : f32
    %138 = vector.broadcast %cst_65 : f32 to vector<2x32xf32>
    %139 = arith.addf %138, %137 : vector<2x32xf32>
    %140 = arith.divf %138, %139 : vector<2x32xf32>
    %141 = vector.extract_strided_slice %27 {offsets = [6, 0], sizes = [2, 32], strides = [1, 1]} : vector<16x32xf32> to vector<2x32xf32>
    %142 = arith.mulf %133, %126 : vector<2x32xf32>
    %143 = arith.addf %141, %142 : vector<2x32xf32>
    %144 = math.tanh %143 : vector<2x32xf32>
    %cst_66 = arith.constant 1.000000e+00 : f32
    %145 = vector.broadcast %cst_66 : f32 to vector<2x32xf32>
    %146 = arith.subf %145, %140 : vector<2x32xf32>
    %147 = arith.mulf %146, %144 : vector<2x32xf32>
    %148 = arith.mulf %140, %121 : vector<2x32xf32>
    %149 = arith.addf %147, %148 : vector<2x32xf32>
    %c6 = arith.constant 6 : index
    %c0_67 = arith.constant 0 : index
    %150 = vector.load %arg15[%c6, %c0_67] : memref<16x32xf32, #tpu.memory_space<vmem>>, vector<2x32xf32>
    tpu.vector_store %arg15[%c6, %c0_67], %149 {strides = array<i32>} : memref<16x32xf32, #tpu.memory_space<vmem>>, vector<2x32xf32>,
    %cst_68 = arith.constant dense<0.000000e+00> : vector<2x32xf32>
    %151 = tpu.matmul %149, %29, %cst_68 {dimension_numbers = #tpu.dot_dimension_numbers<[1], [0], [0], [1], [0, 0, 1, 1], [], []>} : vector<2x32xf32>, vector<32x32xf32>, vector<2x32xf32> -> vector<2x32xf32>
    %cst_69 = arith.constant dense<0.000000e+00> : vector<2x32xf32>
    %152 = tpu.matmul %149, %31, %cst_69 {dimension_numbers = #tpu.dot_dimension_numbers<[1], [0], [0], [1], [0, 0, 1, 1], [], []>} : vector<2x32xf32>, vector<32x32xf32>, vector<2x32xf32> -> vector<2x32xf32>
    %cst_70 = arith.constant dense<0.000000e+00> : vector<2x32xf32>
    %153 = tpu.matmul %149, %33, %cst_70 {dimension_numbers = #tpu.dot_dimension_numbers<[1], [0], [0], [1], [0, 0, 1, 1], [], []>} : vector<2x32xf32>, vector<32x32xf32>, vector<2x32xf32> -> vector<2x32xf32>
    %154 = arith.addf %153, %37 : vector<2x32xf32>
    %155 = vector.extract_strided_slice %10 {offsets = [8, 0], sizes = [2, 32], strides = [1, 1]} : vector<16x32xf32> to vector<2x32xf32>
    %156 = arith.addf %155, %151 : vector<2x32xf32>
    %157 = arith.negf %156 : vector<2x32xf32>
    %158 = math.exp %157 : vector<2x32xf32>
    %cst_71 = arith.constant 1.000000e+00 : f32
    %159 = vector.broadcast %cst_71 : f32 to vector<2x32xf32>
    %160 = arith.addf %159, %158 : vector<2x32xf32>
    %161 = arith.divf %159, %160 : vector<2x32xf32>
    %162 = vector.extract_strided_slice %20 {offsets = [8, 0], sizes = [2, 32], strides = [1, 1]} : vector<16x32xf32> to vector<2x32xf32>
    %163 = arith.addf %162, %152 : vector<2x32xf32>
    %164 = arith.negf %163 : vector<2x32xf32>
    %165 = math.exp %164 : vector<2x32xf32>
    %cst_72 = arith.constant 1.000000e+00 : f32
    %166 = vector.broadcast %cst_72 : f32 to vector<2x32xf32>
    %167 = arith.addf %166, %165 : vector<2x32xf32>
    %168 = arith.divf %166, %167 : vector<2x32xf32>
    %169 = vector.extract_strided_slice %27 {offsets = [8, 0], sizes = [2, 32], strides = [1, 1]} : vector<16x32xf32> to vector<2x32xf32>
    %170 = arith.mulf %161, %154 : vector<2x32xf32>
    %171 = arith.addf %169, %170 : vector<2x32xf32>
    %172 = math.tanh %171 : vector<2x32xf32>
    %cst_73 = arith.constant 1.000000e+00 : f32
    %173 = vector.broadcast %cst_73 : f32 to vector<2x32xf32>
    %174 = arith.subf %173, %168 : vector<2x32xf32>
    %175 = arith.mulf %174, %172 : vector<2x32xf32>
    %176 = arith.mulf %168, %149 : vector<2x32xf32>
    %177 = arith.addf %175, %176 : vector<2x32xf32>
    %c8 = arith.constant 8 : index
    %c0_74 = arith.constant 0 : index
    %178 = vector.load %arg15[%c8, %c0_74] : memref<16x32xf32, #tpu.memory_space<vmem>>, vector<2x32xf32>
    tpu.vector_store %arg15[%c8, %c0_74], %177 {strides = array<i32>} : memref<16x32xf32, #tpu.memory_space<vmem>>, vector<2x32xf32>,
    %cst_75 = arith.constant dense<0.000000e+00> : vector<2x32xf32>
    %179 = tpu.matmul %177, %29, %cst_75 {dimension_numbers = #tpu.dot_dimension_numbers<[1], [0], [0], [1], [0, 0, 1, 1], [], []>} : vector<2x32xf32>, vector<32x32xf32>, vector<2x32xf32> -> vector<2x32xf32>
    %cst_76 = arith.constant dense<0.000000e+00> : vector<2x32xf32>
    %180 = tpu.matmul %177, %31, %cst_76 {dimension_numbers = #tpu.dot_dimension_numbers<[1], [0], [0], [1], [0, 0, 1, 1], [], []>} : vector<2x32xf32>, vector<32x32xf32>, vector<2x32xf32> -> vector<2x32xf32>
    %cst_77 = arith.constant dense<0.000000e+00> : vector<2x32xf32>
    %181 = tpu.matmul %177, %33, %cst_77 {dimension_numbers = #tpu.dot_dimension_numbers<[1], [0], [0], [1], [0, 0, 1, 1], [], []>} : vector<2x32xf32>, vector<32x32xf32>, vector<2x32xf32> -> vector<2x32xf32>
    %182 = arith.addf %181, %37 : vector<2x32xf32>
    %183 = vector.extract_strided_slice %10 {offsets = [10, 0], sizes = [2, 32], strides = [1, 1]} : vector<16x32xf32> to vector<2x32xf32>
    %184 = arith.addf %183, %179 : vector<2x32xf32>
    %185 = arith.negf %184 : vector<2x32xf32>
    %186 = math.exp %185 : vector<2x32xf32>
    %cst_78 = arith.constant 1.000000e+00 : f32
    %187 = vector.broadcast %cst_78 : f32 to vector<2x32xf32>
    %188 = arith.addf %187, %186 : vector<2x32xf32>
    %189 = arith.divf %187, %188 : vector<2x32xf32>
    %190 = vector.extract_strided_slice %20 {offsets = [10, 0], sizes = [2, 32], strides = [1, 1]} : vector<16x32xf32> to vector<2x32xf32>
    %191 = arith.addf %190, %180 : vector<2x32xf32>
    %192 = arith.negf %191 : vector<2x32xf32>
    %193 = math.exp %192 : vector<2x32xf32>
    %cst_79 = arith.constant 1.000000e+00 : f32
    %194 = vector.broadcast %cst_79 : f32 to vector<2x32xf32>
    %195 = arith.addf %194, %193 : vector<2x32xf32>
    %196 = arith.divf %194, %195 : vector<2x32xf32>
    %197 = vector.extract_strided_slice %27 {offsets = [10, 0], sizes = [2, 32], strides = [1, 1]} : vector<16x32xf32> to vector<2x32xf32>
    %198 = arith.mulf %189, %182 : vector<2x32xf32>
    %199 = arith.addf %197, %198 : vector<2x32xf32>
    %200 = math.tanh %199 : vector<2x32xf32>
    %cst_80 = arith.constant 1.000000e+00 : f32
    %201 = vector.broadcast %cst_80 : f32 to vector<2x32xf32>
    %202 = arith.subf %201, %196 : vector<2x32xf32>
    %203 = arith.mulf %202, %200 : vector<2x32xf32>
    %204 = arith.mulf %196, %177 : vector<2x32xf32>
    %205 = arith.addf %203, %204 : vector<2x32xf32>
    %c10 = arith.constant 10 : index
    %c0_81 = arith.constant 0 : index
    %206 = vector.load %arg15[%c10, %c0_81] : memref<16x32xf32, #tpu.memory_space<vmem>>, vector<2x32xf32>
    tpu.vector_store %arg15[%c10, %c0_81], %205 {strides = array<i32>} : memref<16x32xf32, #tpu.memory_space<vmem>>, vector<2x32xf32>,
    %cst_82 = arith.constant dense<0.000000e+00> : vector<2x32xf32>
    %207 = tpu.matmul %205, %29, %cst_82 {dimension_numbers = #tpu.dot_dimension_numbers<[1], [0], [0], [1], [0, 0, 1, 1], [], []>} : vector<2x32xf32>, vector<32x32xf32>, vector<2x32xf32> -> vector<2x32xf32>
    %cst_83 = arith.constant dense<0.000000e+00> : vector<2x32xf32>
    %208 = tpu.matmul %205, %31, %cst_83 {dimension_numbers = #tpu.dot_dimension_numbers<[1], [0], [0], [1], [0, 0, 1, 1], [], []>} : vector<2x32xf32>, vector<32x32xf32>, vector<2x32xf32> -> vector<2x32xf32>
    %cst_84 = arith.constant dense<0.000000e+00> : vector<2x32xf32>
    %209 = tpu.matmul %205, %33, %cst_84 {dimension_numbers = #tpu.dot_dimension_numbers<[1], [0], [0], [1], [0, 0, 1, 1], [], []>} : vector<2x32xf32>, vector<32x32xf32>, vector<2x32xf32> -> vector<2x32xf32>
    %210 = arith.addf %209, %37 : vector<2x32xf32>
    %211 = vector.extract_strided_slice %10 {offsets = [12, 0], sizes = [2, 32], strides = [1, 1]} : vector<16x32xf32> to vector<2x32xf32>
    %212 = arith.addf %211, %207 : vector<2x32xf32>
    %213 = arith.negf %212 : vector<2x32xf32>
    %214 = math.exp %213 : vector<2x32xf32>
    %cst_85 = arith.constant 1.000000e+00 : f32
    %215 = vector.broadcast %cst_85 : f32 to vector<2x32xf32>
    %216 = arith.addf %215, %214 : vector<2x32xf32>
    %217 = arith.divf %215, %216 : vector<2x32xf32>
    %218 = vector.extract_strided_slice %20 {offsets = [12, 0], sizes = [2, 32], strides = [1, 1]} : vector<16x32xf32> to vector<2x32xf32>
    %219 = arith.addf %218, %208 : vector<2x32xf32>
    %220 = arith.negf %219 : vector<2x32xf32>
    %221 = math.exp %220 : vector<2x32xf32>
    %cst_86 = arith.constant 1.000000e+00 : f32
    %222 = vector.broadcast %cst_86 : f32 to vector<2x32xf32>
    %223 = arith.addf %222, %221 : vector<2x32xf32>
    %224 = arith.divf %222, %223 : vector<2x32xf32>
    %225 = vector.extract_strided_slice %27 {offsets = [12, 0], sizes = [2, 32], strides = [1, 1]} : vector<16x32xf32> to vector<2x32xf32>
    %226 = arith.mulf %217, %210 : vector<2x32xf32>
    %227 = arith.addf %225, %226 : vector<2x32xf32>
    %228 = math.tanh %227 : vector<2x32xf32>
    %cst_87 = arith.constant 1.000000e+00 : f32
    %229 = vector.broadcast %cst_87 : f32 to vector<2x32xf32>
    %230 = arith.subf %229, %224 : vector<2x32xf32>
    %231 = arith.mulf %230, %228 : vector<2x32xf32>
    %232 = arith.mulf %224, %205 : vector<2x32xf32>
    %233 = arith.addf %231, %232 : vector<2x32xf32>
    %c12 = arith.constant 12 : index
    %c0_88 = arith.constant 0 : index
    %234 = vector.load %arg15[%c12, %c0_88] : memref<16x32xf32, #tpu.memory_space<vmem>>, vector<2x32xf32>
    tpu.vector_store %arg15[%c12, %c0_88], %233 {strides = array<i32>} : memref<16x32xf32, #tpu.memory_space<vmem>>, vector<2x32xf32>,
    %cst_89 = arith.constant dense<0.000000e+00> : vector<2x32xf32>
    %235 = tpu.matmul %233, %29, %cst_89 {dimension_numbers = #tpu.dot_dimension_numbers<[1], [0], [0], [1], [0, 0, 1, 1], [], []>} : vector<2x32xf32>, vector<32x32xf32>, vector<2x32xf32> -> vector<2x32xf32>
    %cst_90 = arith.constant dense<0.000000e+00> : vector<2x32xf32>
    %236 = tpu.matmul %233, %31, %cst_90 {dimension_numbers = #tpu.dot_dimension_numbers<[1], [0], [0], [1], [0, 0, 1, 1], [], []>} : vector<2x32xf32>, vector<32x32xf32>, vector<2x32xf32> -> vector<2x32xf32>
    %cst_91 = arith.constant dense<0.000000e+00> : vector<2x32xf32>
    %237 = tpu.matmul %233, %33, %cst_91 {dimension_numbers = #tpu.dot_dimension_numbers<[1], [0], [0], [1], [0, 0, 1, 1], [], []>} : vector<2x32xf32>, vector<32x32xf32>, vector<2x32xf32> -> vector<2x32xf32>
    %238 = arith.addf %237, %37 : vector<2x32xf32>
    %239 = vector.extract_strided_slice %10 {offsets = [14, 0], sizes = [2, 32], strides = [1, 1]} : vector<16x32xf32> to vector<2x32xf32>
    %240 = arith.addf %239, %235 : vector<2x32xf32>
    %241 = arith.negf %240 : vector<2x32xf32>
    %242 = math.exp %241 : vector<2x32xf32>
    %cst_92 = arith.constant 1.000000e+00 : f32
    %243 = vector.broadcast %cst_92 : f32 to vector<2x32xf32>
    %244 = arith.addf %243, %242 : vector<2x32xf32>
    %245 = arith.divf %243, %244 : vector<2x32xf32>
    %246 = vector.extract_strided_slice %20 {offsets = [14, 0], sizes = [2, 32], strides = [1, 1]} : vector<16x32xf32> to vector<2x32xf32>
    %247 = arith.addf %246, %236 : vector<2x32xf32>
    %248 = arith.negf %247 : vector<2x32xf32>
    %249 = math.exp %248 : vector<2x32xf32>
    %cst_93 = arith.constant 1.000000e+00 : f32
    %250 = vector.broadcast %cst_93 : f32 to vector<2x32xf32>
    %251 = arith.addf %250, %249 : vector<2x32xf32>
    %252 = arith.divf %250, %251 : vector<2x32xf32>
    %253 = vector.extract_strided_slice %27 {offsets = [14, 0], sizes = [2, 32], strides = [1, 1]} : vector<16x32xf32> to vector<2x32xf32>
    %254 = arith.mulf %245, %238 : vector<2x32xf32>
    %255 = arith.addf %253, %254 : vector<2x32xf32>
    %256 = math.tanh %255 : vector<2x32xf32>
    %cst_94 = arith.constant 1.000000e+00 : f32
    %257 = vector.broadcast %cst_94 : f32 to vector<2x32xf32>
    %258 = arith.subf %257, %252 : vector<2x32xf32>
    %259 = arith.mulf %258, %256 : vector<2x32xf32>
    %260 = arith.mulf %252, %233 : vector<2x32xf32>
    %261 = arith.addf %259, %260 : vector<2x32xf32>
    %c14 = arith.constant 14 : index
    %c0_95 = arith.constant 0 : index
    %262 = vector.load %arg15[%c14, %c0_95] : memref<16x32xf32, #tpu.memory_space<vmem>>, vector<2x32xf32>
    tpu.vector_store %arg15[%c14, %c0_95], %261 {strides = array<i32>} : memref<16x32xf32, #tpu.memory_space<vmem>>, vector<2x32xf32>,
    %c0_96 = arith.constant 0 : index
    %c0_97 = arith.constant 0 : index
    %263 = vector.load %arg15[%c0_96, %c0_97] : memref<16x32xf32, #tpu.memory_space<vmem>>, vector<16x32xf32>
    %c0_98 = arith.constant 0 : index
    %c0_99 = arith.constant 0 : index
    %c0_100 = arith.constant 0 : index
    %264 = vector.load %arg6[%c0_98, %c0_99, %c0_100] : memref<3x32x32xf32, #tpu.memory_space<vmem>>, vector<1x32x32xf32>
    %265 = vector.shape_cast %264 : vector<1x32x32xf32> to vector<32x32xf32>
    %cst_101 = arith.constant dense<0.000000e+00> : vector<16x32xf32>
    %266 = tpu.matmul %263, %265, %cst_101 {dimension_numbers = #tpu.dot_dimension_numbers<[1], [0], [0], [1], [0, 0, 1, 1], [], []>} : vector<16x32xf32>, vector<32x32xf32>, vector<16x32xf32> -> vector<16x32xf32>
    %c0_102 = arith.constant 0 : index
    %c0_103 = arith.constant 0 : index
    %c0_104 = arith.constant 0 : index
    %267 = vector.load %arg8[%c0_102, %c0_103, %c0_104] : memref<3x1x32xf32, #tpu.memory_space<vmem>>, vector<1x1x32xf32>
    %268 = vector.shape_cast %267 : vector<1x1x32xf32> to vector<1x32xf32>
    %c0_105 = arith.constant 0 : index
    %c0_106 = arith.constant 0 : index
    %c0_107 = arith.constant 0 : index
    %269 = vector.load %arg9[%c0_105, %c0_106, %c0_107] : memref<3x1x32xf32, #tpu.memory_space<vmem>>, vector<1x1x32xf32>
    %270 = vector.shape_cast %269 : vector<1x1x32xf32> to vector<1x32xf32>
    %271 = arith.addf %268, %270 : vector<1x32xf32>
    %272 = vector.broadcast %271 : vector<1x32xf32> to vector<16x32xf32>
    %273 = arith.addf %266, %272 : vector<16x32xf32>
    %c1_108 = arith.constant 1 : index
    %c0_109 = arith.constant 0 : index
    %c0_110 = arith.constant 0 : index
    %274 = vector.load %arg6[%c1_108, %c0_109, %c0_110] : memref<3x32x32xf32, #tpu.memory_space<vmem>>, vector<1x32x32xf32>
    %275 = vector.shape_cast %274 : vector<1x32x32xf32> to vector<32x32xf32>
    %cst_111 = arith.constant dense<0.000000e+00> : vector<16x32xf32>
    %276 = tpu.matmul %263, %275, %cst_111 {dimension_numbers = #tpu.dot_dimension_numbers<[1], [0], [0], [1], [0, 0, 1, 1], [], []>} : vector<16x32xf32>, vector<32x32xf32>, vector<16x32xf32> -> vector<16x32xf32>
    %c1_112 = arith.constant 1 : index
    %c0_113 = arith.constant 0 : index
    %c0_114 = arith.constant 0 : index
    %277 = vector.load %arg8[%c1_112, %c0_113, %c0_114] : memref<3x1x32xf32, #tpu.memory_space<vmem>>, vector<1x1x32xf32>
    %278 = vector.shape_cast %277 : vector<1x1x32xf32> to vector<1x32xf32>
    %c1_115 = arith.constant 1 : index
    %c0_116 = arith.constant 0 : index
    %c0_117 = arith.constant 0 : index
    %279 = vector.load %arg9[%c1_115, %c0_116, %c0_117] : memref<3x1x32xf32, #tpu.memory_space<vmem>>, vector<1x1x32xf32>
    %280 = vector.shape_cast %279 : vector<1x1x32xf32> to vector<1x32xf32>
    %281 = arith.addf %278, %280 : vector<1x32xf32>
    %282 = vector.broadcast %281 : vector<1x32xf32> to vector<16x32xf32>
    %283 = arith.addf %276, %282 : vector<16x32xf32>
    %c2_118 = arith.constant 2 : index
    %c0_119 = arith.constant 0 : index
    %c0_120 = arith.constant 0 : index
    %284 = vector.load %arg6[%c2_118, %c0_119, %c0_120] : memref<3x32x32xf32, #tpu.memory_space<vmem>>, vector<1x32x32xf32>
    %285 = vector.shape_cast %284 : vector<1x32x32xf32> to vector<32x32xf32>
    %cst_121 = arith.constant dense<0.000000e+00> : vector<16x32xf32>
    %286 = tpu.matmul %263, %285, %cst_121 {dimension_numbers = #tpu.dot_dimension_numbers<[1], [0], [0], [1], [0, 0, 1, 1], [], []>} : vector<16x32xf32>, vector<32x32xf32>, vector<16x32xf32> -> vector<16x32xf32>
    %c2_122 = arith.constant 2 : index
    %c0_123 = arith.constant 0 : index
    %c0_124 = arith.constant 0 : index
    %287 = vector.load %arg8[%c2_122, %c0_123, %c0_124] : memref<3x1x32xf32, #tpu.memory_space<vmem>>, vector<1x1x32xf32>
    %288 = vector.shape_cast %287 : vector<1x1x32xf32> to vector<1x32xf32>
    %289 = vector.broadcast %288 : vector<1x32xf32> to vector<16x32xf32>
    %290 = arith.addf %286, %289 : vector<16x32xf32>
    %c0_125 = arith.constant 0 : index
    %c0_126 = arith.constant 0 : index
    %c0_127 = arith.constant 0 : index
    %291 = vector.load %arg7[%c0_125, %c0_126, %c0_127] : memref<3x32x32xf32, #tpu.memory_space<vmem>>, vector<1x32x32xf32>
    %292 = vector.shape_cast %291 : vector<1x32x32xf32> to vector<32x32xf32>
    %c1_128 = arith.constant 1 : index
    %c0_129 = arith.constant 0 : index
    %c0_130 = arith.constant 0 : index
    %293 = vector.load %arg7[%c1_128, %c0_129, %c0_130] : memref<3x32x32xf32, #tpu.memory_space<vmem>>, vector<1x32x32xf32>
    %294 = vector.shape_cast %293 : vector<1x32x32xf32> to vector<32x32xf32>
    %c2_131 = arith.constant 2 : index
    %c0_132 = arith.constant 0 : index
    %c0_133 = arith.constant 0 : index
    %295 = vector.load %arg7[%c2_131, %c0_132, %c0_133] : memref<3x32x32xf32, #tpu.memory_space<vmem>>, vector<1x32x32xf32>
    %296 = vector.shape_cast %295 : vector<1x32x32xf32> to vector<32x32xf32>
    %c2_134 = arith.constant 2 : index
    %c0_135 = arith.constant 0 : index
    %c0_136 = arith.constant 0 : index
    %297 = vector.load %arg9[%c2_134, %c0_135, %c0_136] : memref<3x1x32xf32, #tpu.memory_space<vmem>>, vector<1x1x32xf32>
    %298 = vector.shape_cast %297 : vector<1x1x32xf32> to vector<1x32xf32>
    %299 = vector.shape_cast %298 : vector<1x32xf32> to vector<1x32xf32>
    %300 = vector.broadcast %299 : vector<1x32xf32> to vector<2x32xf32>
    %cst_137 = arith.constant 0.000000e+00 : f32
    %301 = vector.broadcast %cst_137 : f32 to vector<2x32xf32>
    %cst_138 = arith.constant dense<0.000000e+00> : vector<2x32xf32>
    %302 = tpu.matmul %301, %292, %cst_138 {dimension_numbers = #tpu.dot_dimension_numbers<[1], [0], [0], [1], [0, 0, 1, 1], [], []>} : vector<2x32xf32>, vector<32x32xf32>, vector<2x32xf32> -> vector<2x32xf32>
    %cst_139 = arith.constant dense<0.000000e+00> : vector<2x32xf32>
    %303 = tpu.matmul %301, %294, %cst_139 {dimension_numbers = #tpu.dot_dimension_numbers<[1], [0], [0], [1], [0, 0, 1, 1], [], []>} : vector<2x32xf32>, vector<32x32xf32>, vector<2x32xf32> -> vector<2x32xf32>
    %cst_140 = arith.constant dense<0.000000e+00> : vector<2x32xf32>
    %304 = tpu.matmul %301, %296, %cst_140 {dimension_numbers = #tpu.dot_dimension_numbers<[1], [0], [0], [1], [0, 0, 1, 1], [], []>} : vector<2x32xf32>, vector<32x32xf32>, vector<2x32xf32> -> vector<2x32xf32>
    %305 = arith.addf %304, %300 : vector<2x32xf32>
    %306 = vector.extract_strided_slice %273 {offsets = [0, 0], sizes = [2, 32], strides = [1, 1]} : vector<16x32xf32> to vector<2x32xf32>
    %307 = arith.addf %306, %302 : vector<2x32xf32>
    %308 = arith.negf %307 : vector<2x32xf32>
    %309 = math.exp %308 : vector<2x32xf32>
    %cst_141 = arith.constant 1.000000e+00 : f32
    %310 = vector.broadcast %cst_141 : f32 to vector<2x32xf32>
    %311 = arith.addf %310, %309 : vector<2x32xf32>
    %312 = arith.divf %310, %311 : vector<2x32xf32>
    %313 = vector.extract_strided_slice %283 {offsets = [0, 0], sizes = [2, 32], strides = [1, 1]} : vector<16x32xf32> to vector<2x32xf32>
    %314 = arith.addf %313, %303 : vector<2x32xf32>
    %315 = arith.negf %314 : vector<2x32xf32>
    %316 = math.exp %315 : vector<2x32xf32>
    %cst_142 = arith.constant 1.000000e+00 : f32
    %317 = vector.broadcast %cst_142 : f32 to vector<2x32xf32>
    %318 = arith.addf %317, %316 : vector<2x32xf32>
    %319 = arith.divf %317, %318 : vector<2x32xf32>
    %320 = vector.extract_strided_slice %290 {offsets = [0, 0], sizes = [2, 32], strides = [1, 1]} : vector<16x32xf32> to vector<2x32xf32>
    %321 = arith.mulf %312, %305 : vector<2x32xf32>
    %322 = arith.addf %320, %321 : vector<2x32xf32>
    %323 = math.tanh %322 : vector<2x32xf32>
    %cst_143 = arith.constant 1.000000e+00 : f32
    %324 = vector.broadcast %cst_143 : f32 to vector<2x32xf32>
    %325 = arith.subf %324, %319 : vector<2x32xf32>
    %326 = arith.mulf %325, %323 : vector<2x32xf32>
    %327 = arith.mulf %319, %301 : vector<2x32xf32>
    %328 = arith.addf %326, %327 : vector<2x32xf32>
    %c0_144 = arith.constant 0 : index
    %c0_145 = arith.constant 0 : index
    %329 = vector.load %arg15[%c0_144, %c0_145] : memref<16x32xf32, #tpu.memory_space<vmem>>, vector<2x32xf32>
    tpu.vector_store %arg15[%c0_144, %c0_145], %328 {strides = array<i32>} : memref<16x32xf32, #tpu.memory_space<vmem>>, vector<2x32xf32>,
    %cst_146 = arith.constant dense<0.000000e+00> : vector<2x32xf32>
    %330 = tpu.matmul %328, %292, %cst_146 {dimension_numbers = #tpu.dot_dimension_numbers<[1], [0], [0], [1], [0, 0, 1, 1], [], []>} : vector<2x32xf32>, vector<32x32xf32>, vector<2x32xf32> -> vector<2x32xf32>
    %cst_147 = arith.constant dense<0.000000e+00> : vector<2x32xf32>
    %331 = tpu.matmul %328, %294, %cst_147 {dimension_numbers = #tpu.dot_dimension_numbers<[1], [0], [0], [1], [0, 0, 1, 1], [], []>} : vector<2x32xf32>, vector<32x32xf32>, vector<2x32xf32> -> vector<2x32xf32>
    %cst_148 = arith.constant dense<0.000000e+00> : vector<2x32xf32>
    %332 = tpu.matmul %328, %296, %cst_148 {dimension_numbers = #tpu.dot_dimension_numbers<[1], [0], [0], [1], [0, 0, 1, 1], [], []>} : vector<2x32xf32>, vector<32x32xf32>, vector<2x32xf32> -> vector<2x32xf32>
    %333 = arith.addf %332, %300 : vector<2x32xf32>
    %334 = vector.extract_strided_slice %273 {offsets = [2, 0], sizes = [2, 32], strides = [1, 1]} : vector<16x32xf32> to vector<2x32xf32>
    %335 = arith.addf %334, %330 : vector<2x32xf32>
    %336 = arith.negf %335 : vector<2x32xf32>
    %337 = math.exp %336 : vector<2x32xf32>
    %cst_149 = arith.constant 1.000000e+00 : f32
    %338 = vector.broadcast %cst_149 : f32 to vector<2x32xf32>
    %339 = arith.addf %338, %337 : vector<2x32xf32>
    %340 = arith.divf %338, %339 : vector<2x32xf32>
    %341 = vector.extract_strided_slice %283 {offsets = [2, 0], sizes = [2, 32], strides = [1, 1]} : vector<16x32xf32> to vector<2x32xf32>
    %342 = arith.addf %341, %331 : vector<2x32xf32>
    %343 = arith.negf %342 : vector<2x32xf32>
    %344 = math.exp %343 : vector<2x32xf32>
    %cst_150 = arith.constant 1.000000e+00 : f32
    %345 = vector.broadcast %cst_150 : f32 to vector<2x32xf32>
    %346 = arith.addf %345, %344 : vector<2x32xf32>
    %347 = arith.divf %345, %346 : vector<2x32xf32>
    %348 = vector.extract_strided_slice %290 {offsets = [2, 0], sizes = [2, 32], strides = [1, 1]} : vector<16x32xf32> to vector<2x32xf32>
    %349 = arith.mulf %340, %333 : vector<2x32xf32>
    %350 = arith.addf %348, %349 : vector<2x32xf32>
    %351 = math.tanh %350 : vector<2x32xf32>
    %cst_151 = arith.constant 1.000000e+00 : f32
    %352 = vector.broadcast %cst_151 : f32 to vector<2x32xf32>
    %353 = arith.subf %352, %347 : vector<2x32xf32>
    %354 = arith.mulf %353, %351 : vector<2x32xf32>
    %355 = arith.mulf %347, %328 : vector<2x32xf32>
    %356 = arith.addf %354, %355 : vector<2x32xf32>
    %c2_152 = arith.constant 2 : index
    %c0_153 = arith.constant 0 : index
    %357 = vector.load %arg15[%c2_152, %c0_153] : memref<16x32xf32, #tpu.memory_space<vmem>>, vector<2x32xf32>
    tpu.vector_store %arg15[%c2_152, %c0_153], %356 {strides = array<i32>} : memref<16x32xf32, #tpu.memory_space<vmem>>, vector<2x32xf32>,
    %cst_154 = arith.constant dense<0.000000e+00> : vector<2x32xf32>
    %358 = tpu.matmul %356, %292, %cst_154 {dimension_numbers = #tpu.dot_dimension_numbers<[1], [0], [0], [1], [0, 0, 1, 1], [], []>} : vector<2x32xf32>, vector<32x32xf32>, vector<2x32xf32> -> vector<2x32xf32>
    %cst_155 = arith.constant dense<0.000000e+00> : vector<2x32xf32>
    %359 = tpu.matmul %356, %294, %cst_155 {dimension_numbers = #tpu.dot_dimension_numbers<[1], [0], [0], [1], [0, 0, 1, 1], [], []>} : vector<2x32xf32>, vector<32x32xf32>, vector<2x32xf32> -> vector<2x32xf32>
    %cst_156 = arith.constant dense<0.000000e+00> : vector<2x32xf32>
    %360 = tpu.matmul %356, %296, %cst_156 {dimension_numbers = #tpu.dot_dimension_numbers<[1], [0], [0], [1], [0, 0, 1, 1], [], []>} : vector<2x32xf32>, vector<32x32xf32>, vector<2x32xf32> -> vector<2x32xf32>
    %361 = arith.addf %360, %300 : vector<2x32xf32>
    %362 = vector.extract_strided_slice %273 {offsets = [4, 0], sizes = [2, 32], strides = [1, 1]} : vector<16x32xf32> to vector<2x32xf32>
    %363 = arith.addf %362, %358 : vector<2x32xf32>
    %364 = arith.negf %363 : vector<2x32xf32>
    %365 = math.exp %364 : vector<2x32xf32>
    %cst_157 = arith.constant 1.000000e+00 : f32
    %366 = vector.broadcast %cst_157 : f32 to vector<2x32xf32>
    %367 = arith.addf %366, %365 : vector<2x32xf32>
    %368 = arith.divf %366, %367 : vector<2x32xf32>
    %369 = vector.extract_strided_slice %283 {offsets = [4, 0], sizes = [2, 32], strides = [1, 1]} : vector<16x32xf32> to vector<2x32xf32>
    %370 = arith.addf %369, %359 : vector<2x32xf32>
    %371 = arith.negf %370 : vector<2x32xf32>
    %372 = math.exp %371 : vector<2x32xf32>
    %cst_158 = arith.constant 1.000000e+00 : f32
    %373 = vector.broadcast %cst_158 : f32 to vector<2x32xf32>
    %374 = arith.addf %373, %372 : vector<2x32xf32>
    %375 = arith.divf %373, %374 : vector<2x32xf32>
    %376 = vector.extract_strided_slice %290 {offsets = [4, 0], sizes = [2, 32], strides = [1, 1]} : vector<16x32xf32> to vector<2x32xf32>
    %377 = arith.mulf %368, %361 : vector<2x32xf32>
    %378 = arith.addf %376, %377 : vector<2x32xf32>
    %379 = math.tanh %378 : vector<2x32xf32>
    %cst_159 = arith.constant 1.000000e+00 : f32
    %380 = vector.broadcast %cst_159 : f32 to vector<2x32xf32>
    %381 = arith.subf %380, %375 : vector<2x32xf32>
    %382 = arith.mulf %381, %379 : vector<2x32xf32>
    %383 = arith.mulf %375, %356 : vector<2x32xf32>
    %384 = arith.addf %382, %383 : vector<2x32xf32>
    %c4_160 = arith.constant 4 : index
    %c0_161 = arith.constant 0 : index
    %385 = vector.load %arg15[%c4_160, %c0_161] : memref<16x32xf32, #tpu.memory_space<vmem>>, vector<2x32xf32>
    tpu.vector_store %arg15[%c4_160, %c0_161], %384 {strides = array<i32>} : memref<16x32xf32, #tpu.memory_space<vmem>>, vector<2x32xf32>,
    %cst_162 = arith.constant dense<0.000000e+00> : vector<2x32xf32>
    %386 = tpu.matmul %384, %292, %cst_162 {dimension_numbers = #tpu.dot_dimension_numbers<[1], [0], [0], [1], [0, 0, 1, 1], [], []>} : vector<2x32xf32>, vector<32x32xf32>, vector<2x32xf32> -> vector<2x32xf32>
    %cst_163 = arith.constant dense<0.000000e+00> : vector<2x32xf32>
    %387 = tpu.matmul %384, %294, %cst_163 {dimension_numbers = #tpu.dot_dimension_numbers<[1], [0], [0], [1], [0, 0, 1, 1], [], []>} : vector<2x32xf32>, vector<32x32xf32>, vector<2x32xf32> -> vector<2x32xf32>
    %cst_164 = arith.constant dense<0.000000e+00> : vector<2x32xf32>
    %388 = tpu.matmul %384, %296, %cst_164 {dimension_numbers = #tpu.dot_dimension_numbers<[1], [0], [0], [1], [0, 0, 1, 1], [], []>} : vector<2x32xf32>, vector<32x32xf32>, vector<2x32xf32> -> vector<2x32xf32>
    %389 = arith.addf %388, %300 : vector<2x32xf32>
    %390 = vector.extract_strided_slice %273 {offsets = [6, 0], sizes = [2, 32], strides = [1, 1]} : vector<16x32xf32> to vector<2x32xf32>
    %391 = arith.addf %390, %386 : vector<2x32xf32>
    %392 = arith.negf %391 : vector<2x32xf32>
    %393 = math.exp %392 : vector<2x32xf32>
    %cst_165 = arith.constant 1.000000e+00 : f32
    %394 = vector.broadcast %cst_165 : f32 to vector<2x32xf32>
    %395 = arith.addf %394, %393 : vector<2x32xf32>
    %396 = arith.divf %394, %395 : vector<2x32xf32>
    %397 = vector.extract_strided_slice %283 {offsets = [6, 0], sizes = [2, 32], strides = [1, 1]} : vector<16x32xf32> to vector<2x32xf32>
    %398 = arith.addf %397, %387 : vector<2x32xf32>
    %399 = arith.negf %398 : vector<2x32xf32>
    %400 = math.exp %399 : vector<2x32xf32>
    %cst_166 = arith.constant 1.000000e+00 : f32
    %401 = vector.broadcast %cst_166 : f32 to vector<2x32xf32>
    %402 = arith.addf %401, %400 : vector<2x32xf32>
    %403 = arith.divf %401, %402 : vector<2x32xf32>
    %404 = vector.extract_strided_slice %290 {offsets = [6, 0], sizes = [2, 32], strides = [1, 1]} : vector<16x32xf32> to vector<2x32xf32>
    %405 = arith.mulf %396, %389 : vector<2x32xf32>
    %406 = arith.addf %404, %405 : vector<2x32xf32>
    %407 = math.tanh %406 : vector<2x32xf32>
    %cst_167 = arith.constant 1.000000e+00 : f32
    %408 = vector.broadcast %cst_167 : f32 to vector<2x32xf32>
    %409 = arith.subf %408, %403 : vector<2x32xf32>
    %410 = arith.mulf %409, %407 : vector<2x32xf32>
    %411 = arith.mulf %403, %384 : vector<2x32xf32>
    %412 = arith.addf %410, %411 : vector<2x32xf32>
    %c6_168 = arith.constant 6 : index
    %c0_169 = arith.constant 0 : index
    %413 = vector.load %arg15[%c6_168, %c0_169] : memref<16x32xf32, #tpu.memory_space<vmem>>, vector<2x32xf32>
    tpu.vector_store %arg15[%c6_168, %c0_169], %412 {strides = array<i32>} : memref<16x32xf32, #tpu.memory_space<vmem>>, vector<2x32xf32>,
    %cst_170 = arith.constant dense<0.000000e+00> : vector<2x32xf32>
    %414 = tpu.matmul %412, %292, %cst_170 {dimension_numbers = #tpu.dot_dimension_numbers<[1], [0], [0], [1], [0, 0, 1, 1], [], []>} : vector<2x32xf32>, vector<32x32xf32>, vector<2x32xf32> -> vector<2x32xf32>
    %cst_171 = arith.constant dense<0.000000e+00> : vector<2x32xf32>
    %415 = tpu.matmul %412, %294, %cst_171 {dimension_numbers = #tpu.dot_dimension_numbers<[1], [0], [0], [1], [0, 0, 1, 1], [], []>} : vector<2x32xf32>, vector<32x32xf32>, vector<2x32xf32> -> vector<2x32xf32>
    %cst_172 = arith.constant dense<0.000000e+00> : vector<2x32xf32>
    %416 = tpu.matmul %412, %296, %cst_172 {dimension_numbers = #tpu.dot_dimension_numbers<[1], [0], [0], [1], [0, 0, 1, 1], [], []>} : vector<2x32xf32>, vector<32x32xf32>, vector<2x32xf32> -> vector<2x32xf32>
    %417 = arith.addf %416, %300 : vector<2x32xf32>
    %418 = vector.extract_strided_slice %273 {offsets = [8, 0], sizes = [2, 32], strides = [1, 1]} : vector<16x32xf32> to vector<2x32xf32>
    %419 = arith.addf %418, %414 : vector<2x32xf32>
    %420 = arith.negf %419 : vector<2x32xf32>
    %421 = math.exp %420 : vector<2x32xf32>
    %cst_173 = arith.constant 1.000000e+00 : f32
    %422 = vector.broadcast %cst_173 : f32 to vector<2x32xf32>
    %423 = arith.addf %422, %421 : vector<2x32xf32>
    %424 = arith.divf %422, %423 : vector<2x32xf32>
    %425 = vector.extract_strided_slice %283 {offsets = [8, 0], sizes = [2, 32], strides = [1, 1]} : vector<16x32xf32> to vector<2x32xf32>
    %426 = arith.addf %425, %415 : vector<2x32xf32>
    %427 = arith.negf %426 : vector<2x32xf32>
    %428 = math.exp %427 : vector<2x32xf32>
    %cst_174 = arith.constant 1.000000e+00 : f32
    %429 = vector.broadcast %cst_174 : f32 to vector<2x32xf32>
    %430 = arith.addf %429, %428 : vector<2x32xf32>
    %431 = arith.divf %429, %430 : vector<2x32xf32>
    %432 = vector.extract_strided_slice %290 {offsets = [8, 0], sizes = [2, 32], strides = [1, 1]} : vector<16x32xf32> to vector<2x32xf32>
    %433 = arith.mulf %424, %417 : vector<2x32xf32>
    %434 = arith.addf %432, %433 : vector<2x32xf32>
    %435 = math.tanh %434 : vector<2x32xf32>
    %cst_175 = arith.constant 1.000000e+00 : f32
    %436 = vector.broadcast %cst_175 : f32 to vector<2x32xf32>
    %437 = arith.subf %436, %431 : vector<2x32xf32>
    %438 = arith.mulf %437, %435 : vector<2x32xf32>
    %439 = arith.mulf %431, %412 : vector<2x32xf32>
    %440 = arith.addf %438, %439 : vector<2x32xf32>
    %c8_176 = arith.constant 8 : index
    %c0_177 = arith.constant 0 : index
    %441 = vector.load %arg15[%c8_176, %c0_177] : memref<16x32xf32, #tpu.memory_space<vmem>>, vector<2x32xf32>
    tpu.vector_store %arg15[%c8_176, %c0_177], %440 {strides = array<i32>} : memref<16x32xf32, #tpu.memory_space<vmem>>, vector<2x32xf32>,
    %cst_178 = arith.constant dense<0.000000e+00> : vector<2x32xf32>
    %442 = tpu.matmul %440, %292, %cst_178 {dimension_numbers = #tpu.dot_dimension_numbers<[1], [0], [0], [1], [0, 0, 1, 1], [], []>} : vector<2x32xf32>, vector<32x32xf32>, vector<2x32xf32> -> vector<2x32xf32>
    %cst_179 = arith.constant dense<0.000000e+00> : vector<2x32xf32>
    %443 = tpu.matmul %440, %294, %cst_179 {dimension_numbers = #tpu.dot_dimension_numbers<[1], [0], [0], [1], [0, 0, 1, 1], [], []>} : vector<2x32xf32>, vector<32x32xf32>, vector<2x32xf32> -> vector<2x32xf32>
    %cst_180 = arith.constant dense<0.000000e+00> : vector<2x32xf32>
    %444 = tpu.matmul %440, %296, %cst_180 {dimension_numbers = #tpu.dot_dimension_numbers<[1], [0], [0], [1], [0, 0, 1, 1], [], []>} : vector<2x32xf32>, vector<32x32xf32>, vector<2x32xf32> -> vector<2x32xf32>
    %445 = arith.addf %444, %300 : vector<2x32xf32>
    %446 = vector.extract_strided_slice %273 {offsets = [10, 0], sizes = [2, 32], strides = [1, 1]} : vector<16x32xf32> to vector<2x32xf32>
    %447 = arith.addf %446, %442 : vector<2x32xf32>
    %448 = arith.negf %447 : vector<2x32xf32>
    %449 = math.exp %448 : vector<2x32xf32>
    %cst_181 = arith.constant 1.000000e+00 : f32
    %450 = vector.broadcast %cst_181 : f32 to vector<2x32xf32>
    %451 = arith.addf %450, %449 : vector<2x32xf32>
    %452 = arith.divf %450, %451 : vector<2x32xf32>
    %453 = vector.extract_strided_slice %283 {offsets = [10, 0], sizes = [2, 32], strides = [1, 1]} : vector<16x32xf32> to vector<2x32xf32>
    %454 = arith.addf %453, %443 : vector<2x32xf32>
    %455 = arith.negf %454 : vector<2x32xf32>
    %456 = math.exp %455 : vector<2x32xf32>
    %cst_182 = arith.constant 1.000000e+00 : f32
    %457 = vector.broadcast %cst_182 : f32 to vector<2x32xf32>
    %458 = arith.addf %457, %456 : vector<2x32xf32>
    %459 = arith.divf %457, %458 : vector<2x32xf32>
    %460 = vector.extract_strided_slice %290 {offsets = [10, 0], sizes = [2, 32], strides = [1, 1]} : vector<16x32xf32> to vector<2x32xf32>
    %461 = arith.mulf %452, %445 : vector<2x32xf32>
    %462 = arith.addf %460, %461 : vector<2x32xf32>
    %463 = math.tanh %462 : vector<2x32xf32>
    %cst_183 = arith.constant 1.000000e+00 : f32
    %464 = vector.broadcast %cst_183 : f32 to vector<2x32xf32>
    %465 = arith.subf %464, %459 : vector<2x32xf32>
    %466 = arith.mulf %465, %463 : vector<2x32xf32>
    %467 = arith.mulf %459, %440 : vector<2x32xf32>
    %468 = arith.addf %466, %467 : vector<2x32xf32>
    %c10_184 = arith.constant 10 : index
    %c0_185 = arith.constant 0 : index
    %469 = vector.load %arg15[%c10_184, %c0_185] : memref<16x32xf32, #tpu.memory_space<vmem>>, vector<2x32xf32>
    tpu.vector_store %arg15[%c10_184, %c0_185], %468 {strides = array<i32>} : memref<16x32xf32, #tpu.memory_space<vmem>>, vector<2x32xf32>,
    %cst_186 = arith.constant dense<0.000000e+00> : vector<2x32xf32>
    %470 = tpu.matmul %468, %292, %cst_186 {dimension_numbers = #tpu.dot_dimension_numbers<[1], [0], [0], [1], [0, 0, 1, 1], [], []>} : vector<2x32xf32>, vector<32x32xf32>, vector<2x32xf32> -> vector<2x32xf32>
    %cst_187 = arith.constant dense<0.000000e+00> : vector<2x32xf32>
    %471 = tpu.matmul %468, %294, %cst_187 {dimension_numbers = #tpu.dot_dimension_numbers<[1], [0], [0], [1], [0, 0, 1, 1], [], []>} : vector<2x32xf32>, vector<32x32xf32>, vector<2x32xf32> -> vector<2x32xf32>
    %cst_188 = arith.constant dense<0.000000e+00> : vector<2x32xf32>
    %472 = tpu.matmul %468, %296, %cst_188 {dimension_numbers = #tpu.dot_dimension_numbers<[1], [0], [0], [1], [0, 0, 1, 1], [], []>} : vector<2x32xf32>, vector<32x32xf32>, vector<2x32xf32> -> vector<2x32xf32>
    %473 = arith.addf %472, %300 : vector<2x32xf32>
    %474 = vector.extract_strided_slice %273 {offsets = [12, 0], sizes = [2, 32], strides = [1, 1]} : vector<16x32xf32> to vector<2x32xf32>
    %475 = arith.addf %474, %470 : vector<2x32xf32>
    %476 = arith.negf %475 : vector<2x32xf32>
    %477 = math.exp %476 : vector<2x32xf32>
    %cst_189 = arith.constant 1.000000e+00 : f32
    %478 = vector.broadcast %cst_189 : f32 to vector<2x32xf32>
    %479 = arith.addf %478, %477 : vector<2x32xf32>
    %480 = arith.divf %478, %479 : vector<2x32xf32>
    %481 = vector.extract_strided_slice %283 {offsets = [12, 0], sizes = [2, 32], strides = [1, 1]} : vector<16x32xf32> to vector<2x32xf32>
    %482 = arith.addf %481, %471 : vector<2x32xf32>
    %483 = arith.negf %482 : vector<2x32xf32>
    %484 = math.exp %483 : vector<2x32xf32>
    %cst_190 = arith.constant 1.000000e+00 : f32
    %485 = vector.broadcast %cst_190 : f32 to vector<2x32xf32>
    %486 = arith.addf %485, %484 : vector<2x32xf32>
    %487 = arith.divf %485, %486 : vector<2x32xf32>
    %488 = vector.extract_strided_slice %290 {offsets = [12, 0], sizes = [2, 32], strides = [1, 1]} : vector<16x32xf32> to vector<2x32xf32>
    %489 = arith.mulf %480, %473 : vector<2x32xf32>
    %490 = arith.addf %488, %489 : vector<2x32xf32>
    %491 = math.tanh %490 : vector<2x32xf32>
    %cst_191 = arith.constant 1.000000e+00 : f32
    %492 = vector.broadcast %cst_191 : f32 to vector<2x32xf32>
    %493 = arith.subf %492, %487 : vector<2x32xf32>
    %494 = arith.mulf %493, %491 : vector<2x32xf32>
    %495 = arith.mulf %487, %468 : vector<2x32xf32>
    %496 = arith.addf %494, %495 : vector<2x32xf32>
    %c12_192 = arith.constant 12 : index
    %c0_193 = arith.constant 0 : index
    %497 = vector.load %arg15[%c12_192, %c0_193] : memref<16x32xf32, #tpu.memory_space<vmem>>, vector<2x32xf32>
    tpu.vector_store %arg15[%c12_192, %c0_193], %496 {strides = array<i32>} : memref<16x32xf32, #tpu.memory_space<vmem>>, vector<2x32xf32>,
    %cst_194 = arith.constant dense<0.000000e+00> : vector<2x32xf32>
    %498 = tpu.matmul %496, %292, %cst_194 {dimension_numbers = #tpu.dot_dimension_numbers<[1], [0], [0], [1], [0, 0, 1, 1], [], []>} : vector<2x32xf32>, vector<32x32xf32>, vector<2x32xf32> -> vector<2x32xf32>
    %cst_195 = arith.constant dense<0.000000e+00> : vector<2x32xf32>
    %499 = tpu.matmul %496, %294, %cst_195 {dimension_numbers = #tpu.dot_dimension_numbers<[1], [0], [0], [1], [0, 0, 1, 1], [], []>} : vector<2x32xf32>, vector<32x32xf32>, vector<2x32xf32> -> vector<2x32xf32>
    %cst_196 = arith.constant dense<0.000000e+00> : vector<2x32xf32>
    %500 = tpu.matmul %496, %296, %cst_196 {dimension_numbers = #tpu.dot_dimension_numbers<[1], [0], [0], [1], [0, 0, 1, 1], [], []>} : vector<2x32xf32>, vector<32x32xf32>, vector<2x32xf32> -> vector<2x32xf32>
    %501 = arith.addf %500, %300 : vector<2x32xf32>
    %502 = vector.extract_strided_slice %273 {offsets = [14, 0], sizes = [2, 32], strides = [1, 1]} : vector<16x32xf32> to vector<2x32xf32>
    %503 = arith.addf %502, %498 : vector<2x32xf32>
    %504 = arith.negf %503 : vector<2x32xf32>
    %505 = math.exp %504 : vector<2x32xf32>
    %cst_197 = arith.constant 1.000000e+00 : f32
    %506 = vector.broadcast %cst_197 : f32 to vector<2x32xf32>
    %507 = arith.addf %506, %505 : vector<2x32xf32>
    %508 = arith.divf %506, %507 : vector<2x32xf32>
    %509 = vector.extract_strided_slice %283 {offsets = [14, 0], sizes = [2, 32], strides = [1, 1]} : vector<16x32xf32> to vector<2x32xf32>
    %510 = arith.addf %509, %499 : vector<2x32xf32>
    %511 = arith.negf %510 : vector<2x32xf32>
    %512 = math.exp %511 : vector<2x32xf32>
    %cst_198 = arith.constant 1.000000e+00 : f32
    %513 = vector.broadcast %cst_198 : f32 to vector<2x32xf32>
    %514 = arith.addf %513, %512 : vector<2x32xf32>
    %515 = arith.divf %513, %514 : vector<2x32xf32>
    %516 = vector.extract_strided_slice %290 {offsets = [14, 0], sizes = [2, 32], strides = [1, 1]} : vector<16x32xf32> to vector<2x32xf32>
    %517 = arith.mulf %508, %501 : vector<2x32xf32>
    %518 = arith.addf %516, %517 : vector<2x32xf32>
    %519 = math.tanh %518 : vector<2x32xf32>
    %cst_199 = arith.constant 1.000000e+00 : f32
    %520 = vector.broadcast %cst_199 : f32 to vector<2x32xf32>
    %521 = arith.subf %520, %515 : vector<2x32xf32>
    %522 = arith.mulf %521, %519 : vector<2x32xf32>
    %523 = arith.mulf %515, %496 : vector<2x32xf32>
    %524 = arith.addf %522, %523 : vector<2x32xf32>
    %c14_200 = arith.constant 14 : index
    %c0_201 = arith.constant 0 : index
    %525 = vector.load %arg15[%c14_200, %c0_201] : memref<16x32xf32, #tpu.memory_space<vmem>>, vector<2x32xf32>
    tpu.vector_store %arg15[%c14_200, %c0_201], %524 {strides = array<i32>} : memref<16x32xf32, #tpu.memory_space<vmem>>, vector<2x32xf32>,
    %c0_202 = arith.constant 0 : index
    %c0_203 = arith.constant 0 : index
    %526 = vector.load %arg15[%c0_202, %c0_203] : memref<16x32xf32, #tpu.memory_space<vmem>>, vector<16x32xf32>
    %c0_204 = arith.constant 0 : index
    %c0_205 = arith.constant 0 : index
    %527 = vector.load %arg10[%c0_204, %c0_205] : memref<32x32xf32, #tpu.memory_space<vmem>>, vector<32x32xf32>
    %cst_206 = arith.constant dense<0.000000e+00> : vector<16x32xf32>
    %528 = tpu.matmul %526, %527, %cst_206 {dimension_numbers = #tpu.dot_dimension_numbers<[1], [0], [0], [1], [0, 0, 1, 1], [], []>} : vector<16x32xf32>, vector<32x32xf32>, vector<16x32xf32> -> vector<16x32xf32>
    %c0_207 = arith.constant 0 : index
    %c0_208 = arith.constant 0 : index
    %529 = vector.load %arg11[%c0_207, %c0_208] : memref<1x32xf32, #tpu.memory_space<vmem>>, vector<1x32xf32>
    %530 = vector.broadcast %529 : vector<1x32xf32> to vector<16x32xf32>
    %531 = arith.addf %528, %530 : vector<16x32xf32>
    %cst_209 = arith.constant 0.000000e+00 : f32
    %532 = vector.broadcast %cst_209 : f32 to vector<16x32xf32>
    %533 = arith.maximumf %531, %532 : vector<16x32xf32>
    %c0_210 = arith.constant 0 : index
    %c0_211 = arith.constant 0 : index
    %534 = vector.load %arg12[%c0_210, %c0_211] : memref<32x128xf32, #tpu.memory_space<vmem>>, vector<32x128xf32>
    %cst_212 = arith.constant dense<0.000000e+00> : vector<16x128xf32>
    %535 = tpu.matmul %533, %534, %cst_212 {dimension_numbers = #tpu.dot_dimension_numbers<[1], [0], [0], [1], [0, 0, 1, 1], [], []>} : vector<16x32xf32>, vector<32x128xf32>, vector<16x128xf32> -> vector<16x128xf32>
    %c0_213 = arith.constant 0 : index
    %c0_214 = arith.constant 0 : index
    %536 = vector.load %arg13[%c0_213, %c0_214] : memref<1x128xf32, #tpu.memory_space<vmem>>, vector<1x128xf32>
    %537 = vector.broadcast %536 : vector<1x128xf32> to vector<16x128xf32>
    %538 = arith.addf %535, %537 : vector<16x128xf32>
    %c0_215 = arith.constant 0 : index
    %c0_216 = arith.constant 0 : index
    %539 = vector.load %arg14[%c0_215, %c0_216] : memref<16x128xf32, #tpu.memory_space<vmem>>, vector<16x128xf32>
    tpu.vector_store %arg14[%c0_215, %c0_216], %538 {strides = array<i32>} : memref<16x128xf32, #tpu.memory_space<vmem>>, vector<16x128xf32>,
    return
  }
  func.func @transform_0(%arg0: i32) -> (i32, i32) {
    %c0_i32 = arith.constant 0 : i32
    %c0_i32_0 = arith.constant 0 : i32
    %c0_i32_1 = arith.constant 0 : i32
    return %c0_i32, %c0_i32_0 : i32, i32
  }
  func.func @transform_1(%arg0: i32) -> (i32, i32, i32) {
    %c0_i32 = arith.constant 0 : i32
    %c0_i32_0 = arith.constant 0 : i32
    %c0_i32_1 = arith.constant 0 : i32
    %c0_i32_2 = arith.constant 0 : i32
    return %c0_i32, %c0_i32_0, %c0_i32_1 : i32, i32, i32
  }
  func.func @transform_2(%arg0: i32) -> (i32, i32, i32) {
    %c0_i32 = arith.constant 0 : i32
    %c0_i32_0 = arith.constant 0 : i32
    %c0_i32_1 = arith.constant 0 : i32
    %c0_i32_2 = arith.constant 0 : i32
    return %c0_i32, %c0_i32_0, %c0_i32_1 : i32, i32, i32
  }
  func.func @transform_3(%arg0: i32) -> (i32, i32, i32) {
    %c0_i32 = arith.constant 0 : i32
    %c0_i32_0 = arith.constant 0 : i32
    %c0_i32_1 = arith.constant 0 : i32
    %c0_i32_2 = arith.constant 0 : i32
    return %c0_i32, %c0_i32_0, %c0_i32_1 : i32, i32, i32
  }
  func.func @transform_4(%arg0: i32) -> (i32, i32, i32) {
    %c0_i32 = arith.constant 0 : i32
    %c0_i32_0 = arith.constant 0 : i32
    %c0_i32_1 = arith.constant 0 : i32
    %c0_i32_2 = arith.constant 0 : i32
    return %c0_i32, %c0_i32_0, %c0_i32_1 : i32, i32, i32
  }
  func.func @transform_5(%arg0: i32) -> (i32, i32, i32) {
    %c0_i32 = arith.constant 0 : i32
    %c0_i32_0 = arith.constant 0 : i32
    %c0_i32_1 = arith.constant 0 : i32
    %c0_i32_2 = arith.constant 0 : i32
    return %c0_i32, %c0_i32_0, %c0_i32_1 : i32, i32, i32
  }
  func.func @transform_6(%arg0: i32) -> (i32, i32, i32) {
    %c0_i32 = arith.constant 0 : i32
    %c0_i32_0 = arith.constant 0 : i32
    %c0_i32_1 = arith.constant 0 : i32
    %c0_i32_2 = arith.constant 0 : i32
    return %c0_i32, %c0_i32_0, %c0_i32_1 : i32, i32, i32
  }
  func.func @transform_7(%arg0: i32) -> (i32, i32, i32) {
    %c0_i32 = arith.constant 0 : i32
    %c0_i32_0 = arith.constant 0 : i32
    %c0_i32_1 = arith.constant 0 : i32
    %c0_i32_2 = arith.constant 0 : i32
    return %c0_i32, %c0_i32_0, %c0_i32_1 : i32, i32, i32
  }
  func.func @transform_8(%arg0: i32) -> (i32, i32, i32) {
    %c0_i32 = arith.constant 0 : i32
    %c0_i32_0 = arith.constant 0 : i32
    %c0_i32_1 = arith.constant 0 : i32
    %c0_i32_2 = arith.constant 0 : i32
    return %c0_i32, %c0_i32_0, %c0_i32_1 : i32, i32, i32
  }
  func.func @transform_9(%arg0: i32) -> (i32, i32) {
    %c0_i32 = arith.constant 0 : i32
    %c0_i32_0 = arith.constant 0 : i32
    %c0_i32_1 = arith.constant 0 : i32
    return %c0_i32, %c0_i32_0 : i32, i32
  }
  func.func @transform_10(%arg0: i32) -> (i32, i32) {
    %c0_i32 = arith.constant 0 : i32
    %c0_i32_0 = arith.constant 0 : i32
    %c0_i32_1 = arith.constant 0 : i32
    return %c0_i32, %c0_i32_0 : i32, i32
  }
  func.func @transform_11(%arg0: i32) -> (i32, i32) {
    %c0_i32 = arith.constant 0 : i32
    %c0_i32_0 = arith.constant 0 : i32
    %c0_i32_1 = arith.constant 0 : i32
    return %c0_i32, %c0_i32_0 : i32, i32
  }
  func.func @transform_12(%arg0: i32) -> (i32, i32) {
    %c0_i32 = arith.constant 0 : i32
    %c0_i32_0 = arith.constant 0 : i32
    %c0_i32_1 = arith.constant 0 : i32
    return %c0_i32, %c0_i32_0 : i32, i32
  }
  func.func @transform_13(%arg0: i32) -> (i32, i32) {
    %c0_i32 = arith.constant 0 : i32
    %c0_i32_0 = arith.constant 0 : i32
    %c0_i32_1 = arith.constant 0 : i32
    return %c0_i32, %c0_i32_0 : i32, i32
  }
}

</mosaic_0001>

<llo_original>
// kernel: lm_hyoassgen_forward.1
$region0: #{lm_hyoassgen_forward.1}
  #allocation0 [shape = 'u32[]', space=smem, size = 0x4, offset = 0x4, fixed_abs, tag = 'smem constant byte address 0x4 - core index']
  #allocation1 [shape = 'u32[144,128]{1,0:T(1,128)}', space=vmem, size = 0x12000, scoped, tag = 'internal scratch']
  #allocation2 [shape = 'f32[16,32]{1,0:T(8,128)}', space=vmem, size = 0x2000, scoped, tag = 'scratch operand']
  %s0 = inlined_call_operand.vmem [shape: f32[16,36], index: 0, kind: input, shape index: {}]
  %s1 = inlined_call_operand.vmem [shape: f32[3,36,32], index: 1, kind: input, shape index: {}]
  %s2 = inlined_call_operand.vmem [shape: f32[3,32,32], index: 2, kind: input, shape index: {}]
  %s3 = inlined_call_operand.vmem [shape: f32[3,1,32], index: 3, kind: input, shape index: {}]
  %s4 = inlined_call_operand.vmem [shape: f32[3,1,32], index: 4, kind: input, shape index: {}]
  %s5 = inlined_call_operand.vmem [shape: f32[3,32,32], index: 5, kind: input, shape index: {}]
  %s6 = inlined_call_operand.vmem [shape: f32[3,32,32], index: 6, kind: input, shape index: {}]
  %s7 = inlined_call_operand.vmem [shape: f32[3,1,32], index: 7, kind: input, shape index: {}]
  %s8 = inlined_call_operand.vmem [shape: f32[3,1,32], index: 8, kind: input, shape index: {}]
  %s9 = inlined_call_operand.vmem [shape: f32[32,32], index: 9, kind: input, shape index: {}]
  %s10 = inlined_call_operand.vmem [shape: f32[1,32], index: 10, kind: input, shape index: {}]
  %s11 = inlined_call_operand.vmem [shape: f32[32,128], index: 11, kind: input, shape index: {}]
  %s12 = inlined_call_operand.vmem [shape: f32[1,128], index: 12, kind: input, shape index: {}]
  %s13 = inlined_call_operand.vmem [shape: f32[16,128], index: 13, kind: output, shape index: {}]
  %s14 = sld [smem:[#allocation0]]
  $region62: #{lm_hyoassgen_forward.1} parent=0
    _
  %s16 = ssub.s32 1, %s14
  %s17 = scalar_select 0, %s16, %s14
  // Predicated region
  $region2: #{lm_hyoassgen_forward.1} parent=0 // pred_check
    _
  $region3: #{lm_hyoassgen_forward.1} parent=0 // pred_check_branch
    %19 = sbr.rel (0) target = $region5
  $region4: #{lm_hyoassgen_forward.1} parent=0 // pred_region
    _
  $region5: #{lm_hyoassgen_forward.1} parent=0 // pred_fallthru
    _
  // Predicated region
  $region6: #{lm_hyoassgen_forward.1} parent=0 // pred_check
    _
  $region7: #{lm_hyoassgen_forward.1} parent=0 // pred_check_branch
    %21 = sbr.rel (0) target = $region9
  $region8: #{lm_hyoassgen_forward.1} parent=0 // pred_region
    _
  $region9: #{lm_hyoassgen_forward.1} parent=0 // pred_fallthru
    _
  // Predicated region
  $region10: #{lm_hyoassgen_forward.1} parent=0 // pred_check
    _
  $region11: #{lm_hyoassgen_forward.1} parent=0 // pred_check_branch
    %23 = sbr.rel (0) target = $region13
  $region12: #{lm_hyoassgen_forward.1} parent=0 // pred_region
    _
  $region13: #{lm_hyoassgen_forward.1} parent=0 // pred_fallthru
    _
  // Predicated region
  $region14: #{lm_hyoassgen_forward.1} parent=0 // pred_check
    _
  $region15: #{lm_hyoassgen_forward.1} parent=0 // pred_check_branch
    %25 = sbr.rel (0) target = $region17
  $region16: #{lm_hyoassgen_forward.1} parent=0 // pred_region
    _
  $region17: #{lm_hyoassgen_forward.1} parent=0 // pred_fallthru
    _
  // Predicated region
  $region18: #{lm_hyoassgen_forward.1} parent=0 // pred_check
    _
  $region19: #{lm_hyoassgen_forward.1} parent=0 // pred_check_branch
    %27 = sbr.rel (0) target = $region21
  $region20: #{lm_hyoassgen_forward.1} parent=0 // pred_region
    _
  $region21: #{lm_hyoassgen_forward.1} parent=0 // pred_fallthru
    _
  // Predicated region
  $region22: #{lm_hyoassgen_forward.1} parent=0 // pred_check
    _
  $region23: #{lm_hyoassgen_forward.1} parent=0 // pred_check_branch
    %29 = sbr.rel (0) target = $region25
  $region24: #{lm_hyoassgen_forward.1} parent=0 // pred_region
    _
  $region25: #{lm_hyoassgen_forward.1} parent=0 // pred_fallthru
    _
  // Predicated region
  $region26: #{lm_hyoassgen_forward.1} parent=0 // pred_check
    _
  $region27: #{lm_hyoassgen_forward.1} parent=0 // pred_check_branch
    %31 = sbr.rel (0) target = $region29
  $region28: #{lm_hyoassgen_forward.1} parent=0 // pred_region
    _
  $region29: #{lm_hyoassgen_forward.1} parent=0 // pred_fallthru
    _
  // Predicated region
  $region30: #{lm_hyoassgen_forward.1} parent=0 // pred_check
    _
  $region31: #{lm_hyoassgen_forward.1} parent=0 // pred_check_branch
    %33 = sbr.rel (0) target = $region33
  $region32: #{lm_hyoassgen_forward.1} parent=0 // pred_region
    _
  $region33: #{lm_hyoassgen_forward.1} parent=0 // pred_fallthru
    _
  // Predicated region
  $region34: #{lm_hyoassgen_forward.1} parent=0 // pred_check
    _
  $region35: #{lm_hyoassgen_forward.1} parent=0 // pred_check_branch
    %35 = sbr.rel (0) target = $region37
  $region36: #{lm_hyoassgen_forward.1} parent=0 // pred_region
    _
  $region37: #{lm_hyoassgen_forward.1} parent=0 // pred_fallthru
    _
  // Predicated region
  $region38: #{lm_hyoassgen_forward.1} parent=0 // pred_check
    _
  $region39: #{lm_hyoassgen_forward.1} parent=0 // pred_check_branch
    %37 = sbr.rel (0) target = $region41
  $region40: #{lm_hyoassgen_forward.1} parent=0 // pred_region
    _
  $region41: #{lm_hyoassgen_forward.1} parent=0 // pred_fallthru
    _
  // Predicated region
  $region42: #{lm_hyoassgen_forward.1} parent=0 // pred_check
    _
  $region43: #{lm_hyoassgen_forward.1} parent=0 // pred_check_branch
    %39 = sbr.rel (0) target = $region45
  $region44: #{lm_hyoassgen_forward.1} parent=0 // pred_region
    _
  $region45: #{lm_hyoassgen_forward.1} parent=0 // pred_fallthru
    _
  // Predicated region
  $region46: #{lm_hyoassgen_forward.1} parent=0 // pred_check
    _
  $region47: #{lm_hyoassgen_forward.1} parent=0 // pred_check_branch
    %41 = sbr.rel (0) target = $region49
  $region48: #{lm_hyoassgen_forward.1} parent=0 // pred_region
    _
  $region49: #{lm_hyoassgen_forward.1} parent=0 // pred_fallthru
    _
  // Predicated region
  $region50: #{lm_hyoassgen_forward.1} parent=0 // pred_check
    _
  $region51: #{lm_hyoassgen_forward.1} parent=0 // pred_check_branch
    %43 = sbr.rel (0) target = $region53
  $region52: #{lm_hyoassgen_forward.1} parent=0 // pred_region
    _
  $region53: #{lm_hyoassgen_forward.1} parent=0 // pred_fallthru
    _
  %v44 = vld [vmem:[%s0] sm:$0xff]
  %v45 = vld [vmem:[%s0 + $0x8] sm:$0xff]
  %v46 = vld [vmem:[%s1] sm:$0xff]
  %v47 = vld [vmem:[%s1 + $0x8] sm:$0xff]
  %v48 = vld [vmem:[%s1 + $0x10] sm:$0xff]
  %v49 = vld [vmem:[%s1 + $0x18] sm:$0xff]
  %v50 = vld [vmem:[%s1 + $0x20] sm:$0xf]
  %v51 = vld [vmem:[%s3] sm:$0x1]
  %v52 = vld [vmem:[%s4] sm:$0x1]
  %v53 = vadd.f32 %v51, %v52
  %v55 = vlaneseq
  %v56 = vshrl.u32 %v55, 7
  %v57 = vsub.s32 0, %v56
  %v58 = vrot.slane %v53, %v57
  %vm60 = vcmask 293888
  %v62 = vsel %vm60, %v44, 0
  %v65 = vsel %vm60, %v45, 0
  %vm67 = vcmask 1043456
  %v69 = vsel %vm67, %v50, 0
  %71 = vmatprep.subr.mxu0 0.0
  %72 = vmatpush1.msra.mxu0 %v46
  %73 = vmatprep.subr.mxu0 0.0
  %74 = vmatpush1.msra.mxu0 %v47
  %75 = vmatprep.subr.mxu0 0.0
  %76 = vmatpush1.msra.mxu0 %v48
  %77 = vmatprep.subr.mxu0 0.0
  %78 = vmatpush1.msra.mxu0 %v49
  %79 = vmatprep.subr.mxu0 0.0
  %80 = vmatpush1.msra.mxu0 %v69
  %81 = vmatprep.subr.mxu0 0.0
  %82 = vmatpush1.msra.mxu0 0.0
  %83 = vmatprep.subr.mxu0 0.0
  %84 = vmatpush1.msra.mxu0 0.0
  %85 = vmatprep.subr.mxu0 0.0
  %86 = vmatpush1.msra.mxu0 0.0
  %87 = vmatprep.subr.mxu0 0.0
  %88 = vmatpush1.msra.mxu0 0.0
  %89 = vmatprep.subr.mxu0 0.0
  %90 = vmatpush1.msra.mxu0 0.0
  %91 = vmatprep.subr.mxu0 0.0
  %92 = vmatpush1.msra.mxu0 0.0
  %93 = vmatprep.subr.mxu0 0.0
  %94 = vmatpush1.msra.mxu0 0.0
  %95 = vmatprep.subr.mxu0 0.0
  %96 = vmatpush1.msra.mxu0 0.0
  %97 = vmatprep.subr.mxu0 0.0
  %98 = vmatpush1.msra.mxu0 0.0
  %99 = vmatprep.subr.mxu0 0.0
  %100 = vmatpush1.msra.mxu0 0.0
  %101 = vmatprep.subr.mxu0 0.0
  %102 = vmatpush1.msra.mxu0 0.0
  %103 = vmatprep.subr.mxu0 0.0
  %104 = vmatpush1.msra.mxu0 0.0
  %105 = vmatprep.subr.mxu0 0.0
  %106 = vmatpush1.msra.mxu0 0.0
  %107 = vmatprep.subr.mxu0 0.0
  %108 = vmatpush1.msra.mxu0 0.0
  %109 = vmatprep.subr.mxu0 0.0
  %110 = vmatpush1.msra.mxu0 0.0
  %111 = vmatprep.subr.mxu0 0.0
  %112 = vmatpush1.msra.mxu0 0.0
  %113 = vmatprep.subr.mxu0 0.0
  %114 = vmatpush1.msra.mxu0 0.0
  %115 = vmatprep.subr.mxu0 0.0
  %116 = vmatpush1.msra.mxu0 0.0
  %117 = vmatprep.subr.mxu0 0.0
  %118 = vmatpush1.msra.mxu0 0.0
  %119 = vmatprep.subr.mxu0 0.0
  %120 = vmatpush1.msra.mxu0 0.0
  %121 = vmatprep.subr.mxu0 0.0
  %122 = vmatpush1.msra.mxu0 0.0
  %123 = vmatprep.subr.mxu0 0.0
  %124 = vmatpush1.msra.mxu0 0.0
  %125 = vmatprep.subr.mxu0 0.0
  %126 = vmatpush1.msra.mxu0 0.0
  %127 = vmatprep.subr.mxu0 0.0
  %128 = vmatpush1.msra.mxu0 0.0
  %129 = vmatprep.subr.mxu0 0.0
  %130 = vmatpush1.msra.mxu0 0.0
  %131 = vmatprep.subr.mxu0 0.0
  %132 = vmatpush1.msra.mxu0 0.0
  %133 = vmatprep.subr.mxu0 0.0
  %134 = vmatpush1.msra.mxu0 0.0
  %135 = vmatprep.mubr.f32.mxu0 0.0
  %136 = vmatmul.mubr.f32.gmra.mrb[0].mxu0 %v62
  %v137 = vpop.f32.mrb[0].mxu0
  %v138 = vadd.f32 %v58, %v137
  %v139 = vpop.f32.mrb[0].mxu0
  %140 = vmatprep.mubr.f32.mxu0 0.0
  %141 = vmatmul.mubr.f32.gmra.mrb[0].mxu0 %v65
  %v142 = vpop.f32.mrb[0].mxu0
  %v143 = vadd.f32 %v58, %v142
  %v144 = vpop.f32.mrb[0].mxu0
  %145 = vdwg.mxu0
  %s146 = scalar_lea.vmem %s1, 40
  %v147 = vld [vmem:[%s146] sm:$0xff]
  %v148 = vld [vmem:[%s146 + $0x8] sm:$0xff]
  %v149 = vld [vmem:[%s146 + $0x10] sm:$0xff]
  %v150 = vld [vmem:[%s146 + $0x18] sm:$0xff]
  %v151 = vld [vmem:[%s146 + $0x20] sm:$0xf]
  %s152 = scalar_lea.vmem %s3, 1
  %v153 = vld [vmem:[%s152] sm:$0x1]
  %s154 = scalar_lea.vmem %s4, 1
  %v155 = vld [vmem:[%s154] sm:$0x1]
  %v156 = vadd.f32 %v153, %v155
  %v158 = vlaneseq
  %v159 = vshrl.u32 %v158, 7
  %v160 = vsub.s32 0, %v159
  %v161 = vrot.slane %v156, %v160
  %v164 = vsel %vm67, %v151, 0
  %166 = vmatprep.subr.mxu0 0.0
  %167 = vmatpush1.msra.mxu0 %v147
  %168 = vmatprep.subr.mxu0 0.0
  %169 = vmatpush1.msra.mxu0 %v148
  %170 = vmatprep.subr.mxu0 0.0
  %171 = vmatpush1.msra.mxu0 %v149
  %172 = vmatprep.subr.mxu0 0.0
  %173 = vmatpush1.msra.mxu0 %v150
  %174 = vmatprep.subr.mxu0 0.0
  %175 = vmatpush1.msra.mxu0 %v164
  %176 = vmatprep.subr.mxu0 0.0
  %177 = vmatpush1.msra.mxu0 0.0
  %178 = vmatprep.subr.mxu0 0.0
  %179 = vmatpush1.msra.mxu0 0.0
  %180 = vmatprep.subr.mxu0 0.0
  %181 = vmatpush1.msra.mxu0 0.0
  %182 = vmatprep.subr.mxu0 0.0
  %183 = vmatpush1.msra.mxu0 0.0
  %184 = vmatprep.subr.mxu0 0.0
  %185 = vmatpush1.msra.mxu0 0.0
  %186 = vmatprep.subr.mxu0 0.0
  %187 = vmatpush1.msra.mxu0 0.0
  %188 = vmatprep.subr.mxu0 0.0
  %189 = vmatpush1.msra.mxu0 0.0
  %190 = vmatprep.subr.mxu0 0.0
  %191 = vmatpush1.msra.mxu0 0.0
  %192 = vmatprep.subr.mxu0 0.0
  %193 = vmatpush1.msra.mxu0 0.0
  %194 = vmatprep.subr.mxu0 0.0
  %195 = vmatpush1.msra.mxu0 0.0
  %196 = vmatprep.subr.mxu0 0.0
  %197 = vmatpush1.msra.mxu0 0.0
  %198 = vmatprep.subr.mxu0 0.0
  %199 = vmatpush1.msra.mxu0 0.0
  %200 = vmatprep.subr.mxu0 0.0
  %201 = vmatpush1.msra.mxu0 0.0
  %202 = vmatprep.subr.mxu0 0.0
  %203 = vmatpush1.msra.mxu0 0.0
  %204 = vmatprep.subr.mxu0 0.0
  %205 = vmatpush1.msra.mxu0 0.0
  %206 = vmatprep.subr.mxu0 0.0
  %207 = vmatpush1.msra.mxu0 0.0
  %208 = vmatprep.subr.mxu0 0.0
  %209 = vmatpush1.msra.mxu0 0.0
  %210 = vmatprep.subr.mxu0 0.0
  %211 = vmatpush1.msra.mxu0 0.0
  %212 = vmatprep.subr.mxu0 0.0
  %213 = vmatpush1.msra.mxu0 0.0
  %214 = vmatprep.subr.mxu0 0.0
  %215 = vmatpush1.msra.mxu0 0.0
  %216 = vmatprep.subr.mxu0 0.0
  %217 = vmatpush1.msra.mxu0 0.0
  %218 = vmatprep.subr.mxu0 0.0
  %219 = vmatpush1.msra.mxu0 0.0
  %220 = vmatprep.subr.mxu0 0.0
  %221 = vmatpush1.msra.mxu0 0.0
  %222 = vmatprep.subr.mxu0 0.0
  %223 = vmatpush1.msra.mxu0 0.0
  %224 = vmatprep.subr.mxu0 0.0
  %225 = vmatpush1.msra.mxu0 0.0
  %226 = vmatprep.subr.mxu0 0.0
  %227 = vmatpush1.msra.mxu0 0.0
  %228 = vmatprep.subr.mxu0 0.0
  %229 = vmatpush1.msra.mxu0 0.0
  %230 = vmatprep.mubr.f32.mxu0 0.0
  %231 = vmatmul.mubr.f32.gmra.mrb[0].mxu0 %v62
  %v232 = vpop.f32.mrb[0].mxu0
  %v233 = vadd.f32 %v161, %v232
  %v234 = vpop.f32.mrb[0].mxu0
  %235 = vmatprep.mubr.f32.mxu0 0.0
  %236 = vmatmul.mubr.f32.gmra.mrb[0].mxu0 %v65
  %v237 = vpop.f32.mrb[0].mxu0
  %v238 = vadd.f32 %v161, %v237
  %v239 = vpop.f32.mrb[0].mxu0
  %240 = vdwg.mxu0
  %s241 = scalar_lea.vmem %s1, 80
  %v242 = vld [vmem:[%s241] sm:$0xff]
  %v243 = vld [vmem:[%s241 + $0x8] sm:$0xff]
  %v244 = vld [vmem:[%s241 + $0x10] sm:$0xff]
  %v245 = vld [vmem:[%s241 + $0x18] sm:$0xff]
  %v246 = vld [vmem:[%s241 + $0x20] sm:$0xf]
  %s247 = scalar_lea.vmem %s3, 2
  %v248 = vld [vmem:[%s247] sm:$0x1]
  %v250 = vlaneseq
  %v251 = vshrl.u32 %v250, 7
  %v252 = vsub.s32 0, %v251
  %v253 = vrot.slane %v248, %v252
  %v256 = vsel %vm67, %v246, 0
  %258 = vmatprep.subr.mxu0 0.0
  %259 = vmatpush1.msra.mxu0 %v242
  %260 = vmatprep.subr.mxu0 0.0
  %261 = vmatpush1.msra.mxu0 %v243
  %262 = vmatprep.subr.mxu0 0.0
  %263 = vmatpush1.msra.mxu0 %v244
  %264 = vmatprep.subr.mxu0 0.0
  %265 = vmatpush1.msra.mxu0 %v245
  %266 = vmatprep.subr.mxu0 0.0
  %267 = vmatpush1.msra.mxu0 %v256
  %268 = vmatprep.subr.mxu0 0.0
  %269 = vmatpush1.msra.mxu0 0.0
  %270 = vmatprep.subr.mxu0 0.0
  %271 = vmatpush1.msra.mxu0 0.0
  %272 = vmatprep.subr.mxu0 0.0
  %273 = vmatpush1.msra.mxu0 0.0
  %274 = vmatprep.subr.mxu0 0.0
  %275 = vmatpush1.msra.mxu0 0.0
  %276 = vmatprep.subr.mxu0 0.0
  %277 = vmatpush1.msra.mxu0 0.0
  %278 = vmatprep.subr.mxu0 0.0
  %279 = vmatpush1.msra.mxu0 0.0
  %280 = vmatprep.subr.mxu0 0.0
  %281 = vmatpush1.msra.mxu0 0.0
  %282 = vmatprep.subr.mxu0 0.0
  %283 = vmatpush1.msra.mxu0 0.0
  %284 = vmatprep.subr.mxu0 0.0
  %285 = vmatpush1.msra.mxu0 0.0
  %286 = vmatprep.subr.mxu0 0.0
  %287 = vmatpush1.msra.mxu0 0.0
  %288 = vmatprep.subr.mxu0 0.0
  %289 = vmatpush1.msra.mxu0 0.0
  %290 = vmatprep.subr.mxu0 0.0
  %291 = vmatpush1.msra.mxu0 0.0
  %292 = vmatprep.subr.mxu0 0.0
  %293 = vmatpush1.msra.mxu0 0.0
  %294 = vmatprep.subr.mxu0 0.0
  %295 = vmatpush1.msra.mxu0 0.0
  %296 = vmatprep.subr.mxu0 0.0
  %297 = vmatpush1.msra.mxu0 0.0
  %298 = vmatprep.subr.mxu0 0.0
  %299 = vmatpush1.msra.mxu0 0.0
  %300 = vmatprep.subr.mxu0 0.0
  %301 = vmatpush1.msra.mxu0 0.0
  %302 = vmatprep.subr.mxu0 0.0
  %303 = vmatpush1.msra.mxu0 0.0
  %304 = vmatprep.subr.mxu0 0.0
  %305 = vmatpush1.msra.mxu0 0.0
  %306 = vmatprep.subr.mxu0 0.0
  %307 = vmatpush1.msra.mxu0 0.0
  %308 = vmatprep.subr.mxu0 0.0
  %309 = vmatpush1.msra.mxu0 0.0
  %310 = vmatprep.subr.mxu0 0.0
  %311 = vmatpush1.msra.mxu0 0.0
  %312 = vmatprep.subr.mxu0 0.0
  %313 = vmatpush1.msra.mxu0 0.0
  %314 = vmatprep.subr.mxu0 0.0
  %315 = vmatpush1.msra.mxu0 0.0
  %316 = vmatprep.subr.mxu0 0.0
  %317 = vmatpush1.msra.mxu0 0.0
  %318 = vmatprep.subr.mxu0 0.0
  %319 = vmatpush1.msra.mxu0 0.0
  %320 = vmatprep.subr.mxu0 0.0
  %321 = vmatpush1.msra.mxu0 0.0
  %322 = vmatprep.mubr.f32.mxu0 0.0
  %323 = vmatmul.mubr.f32.gmra.mrb[0].mxu0 %v62
  %v324 = vpop.f32.mrb[0].mxu0
  %v325 = vadd.f32 %v253, %v324
  %v326 = vpop.f32.mrb[0].mxu0
  %327 = vmatprep.mubr.f32.mxu0 0.0
  %328 = vmatmul.mubr.f32.gmra.mrb[0].mxu0 %v65
  %v329 = vpop.f32.mrb[0].mxu0
  %v330 = vadd.f32 %v253, %v329
  %v331 = vpop.f32.mrb[0].mxu0
  %332 = vdwg.mxu0
  %v333 = vld [vmem:[%s2] sm:$0xff]
  %v334 = vld [vmem:[%s2 + $0x8] sm:$0xff]
  %v335 = vld [vmem:[%s2 + $0x10] sm:$0xff]
  %v336 = vld [vmem:[%s2 + $0x18] sm:$0xff]
  %s337 = scalar_lea.vmem %s2, 32
  %v338 = vld [vmem:[%s337] sm:$0xff]
  %v339 = vld [vmem:[%s337 + $0x8] sm:$0xff]
  %v340 = vld [vmem:[%s337 + $0x10] sm:$0xff]
  %v341 = vld [vmem:[%s337 + $0x18] sm:$0xff]
  %s342 = scalar_lea.vmem %s2, 64
  %v343 = vld [vmem:[%s342] sm:$0xff]
  %v344 = vld [vmem:[%s342 + $0x8] sm:$0xff]
  %v345 = vld [vmem:[%s342 + $0x10] sm:$0xff]
  %v346 = vld [vmem:[%s342 + $0x18] sm:$0xff]
  %s347 = scalar_lea.vmem %s4, 2
  %v348 = vld [vmem:[%s347] sm:$0x1]
  %v350 = vlaneseq
  %v351 = vshrl.u32 %v350, 7
  %v352 = vsub.s32 0, %v351
  %v353 = vrot.slane %v348, %v352
  %vm355 = vcmask 261120
  %v357 = vsel %vm355, 0.0, 0
  %359 = vmatprep.subr.mxu0 0.0
  %360 = vmatpush1.msra.mxu0 %v333
  %361 = vmatprep.subr.mxu0 0.0
  %362 = vmatpush1.msra.mxu0 %v334
  %363 = vmatprep.subr.mxu0 0.0
  %364 = vmatpush1.msra.mxu0 %v335
  %365 = vmatprep.subr.mxu0 0.0
  %366 = vmatpush1.msra.mxu0 %v336
  %367 = vmatprep.subr.mxu0 0.0
  %368 = vmatpush1.msra.mxu0 0.0
  %369 = vmatprep.subr.mxu0 0.0
  %370 = vmatpush1.msra.mxu0 0.0
  %371 = vmatprep.subr.mxu0 0.0
  %372 = vmatpush1.msra.mxu0 0.0
  %373 = vmatprep.subr.mxu0 0.0
  %374 = vmatpush1.msra.mxu0 0.0
  %375 = vmatprep.subr.mxu0 0.0
  %376 = vmatpush1.msra.mxu0 0.0
  %377 = vmatprep.subr.mxu0 0.0
  %378 = vmatpush1.msra.mxu0 0.0
  %379 = vmatprep.subr.mxu0 0.0
  %380 = vmatpush1.msra.mxu0 0.0
  %381 = vmatprep.subr.mxu0 0.0
  %382 = vmatpush1.msra.mxu0 0.0
  %383 = vmatprep.subr.mxu0 0.0
  %384 = vmatpush1.msra.mxu0 0.0
  %385 = vmatprep.subr.mxu0 0.0
  %386 = vmatpush1.msra.mxu0 0.0
  %387 = vmatprep.subr.mxu0 0.0
  %388 = vmatpush1.msra.mxu0 0.0
  %389 = vmatprep.subr.mxu0 0.0
  %390 = vmatpush1.msra.mxu0 0.0
  %391 = vmatprep.subr.mxu0 0.0
  %392 = vmatpush1.msra.mxu0 0.0
  %393 = vmatprep.subr.mxu0 0.0
  %394 = vmatpush1.msra.mxu0 0.0
  %395 = vmatprep.subr.mxu0 0.0
  %396 = vmatpush1.msra.mxu0 0.0
  %397 = vmatprep.subr.mxu0 0.0
  %398 = vmatpush1.msra.mxu0 0.0
  %399 = vmatprep.subr.mxu0 0.0
  %400 = vmatpush1.msra.mxu0 0.0
  %401 = vmatprep.subr.mxu0 0.0
  %402 = vmatpush1.msra.mxu0 0.0
  %403 = vmatprep.subr.mxu0 0.0
  %404 = vmatpush1.msra.mxu0 0.0
  %405 = vmatprep.subr.mxu0 0.0
  %406 = vmatpush1.msra.mxu0 0.0
  %407 = vmatprep.subr.mxu0 0.0
  %408 = vmatpush1.msra.mxu0 0.0
  %409 = vmatprep.subr.mxu0 0.0
  %410 = vmatpush1.msra.mxu0 0.0
  %411 = vmatprep.subr.mxu0 0.0
  %412 = vmatpush1.msra.mxu0 0.0
  %413 = vmatprep.subr.mxu0 0.0
  %414 = vmatpush1.msra.mxu0 0.0
  %415 = vmatprep.subr.mxu0 0.0
  %416 = vmatpush1.msra.mxu0 0.0
  %417 = vmatprep.subr.mxu0 0.0
  %418 = vmatpush1.msra.mxu0 0.0
  %419 = vmatprep.subr.mxu0 0.0
  %420 = vmatpush1.msra.mxu0 0.0
  %421 = vmatprep.subr.mxu0 0.0
  %422 = vmatpush1.msra.mxu0 0.0
  %423 = vmatprep.mubr.f32.mxu0 0.0
  %424 = vmatmul.mubr.f32.gmra.mrb[0].mxu0 %v357
  %v425 = vpop.f32.mrb[0].mxu0
  %v426 = vadd.f32 0.0, %v425
  %v427 = vpop.f32.mrb[0].mxu0
  %428 = vdwg.mxu0
  %429 = vmatprep.subr.mxu0 0.0
  %430 = vmatpush1.msra.mxu0 %v338
  %431 = vmatprep.subr.mxu0 0.0
  %432 = vmatpush1.msra.mxu0 %v339
  %433 = vmatprep.subr.mxu0 0.0
  %434 = vmatpush1.msra.mxu0 %v340
  %435 = vmatprep.subr.mxu0 0.0
  %436 = vmatpush1.msra.mxu0 %v341
  %437 = vmatprep.subr.mxu0 0.0
  %438 = vmatpush1.msra.mxu0 0.0
  %439 = vmatprep.subr.mxu0 0.0
  %440 = vmatpush1.msra.mxu0 0.0
  %441 = vmatprep.subr.mxu0 0.0
  %442 = vmatpush1.msra.mxu0 0.0
  %443 = vmatprep.subr.mxu0 0.0
  %444 = vmatpush1.msra.mxu0 0.0
  %445 = vmatprep.subr.mxu0 0.0
  %446 = vmatpush1.msra.mxu0 0.0
  %447 = vmatprep.subr.mxu0 0.0
  %448 = vmatpush1.msra.mxu0 0.0
  %449 = vmatprep.subr.mxu0 0.0
  %450 = vmatpush1.msra.mxu0 0.0
  %451 = vmatprep.subr.mxu0 0.0
  %452 = vmatpush1.msra.mxu0 0.0
  %453 = vmatprep.subr.mxu0 0.0
  %454 = vmatpush1.msra.mxu0 0.0
  %455 = vmatprep.subr.mxu0 0.0
  %456 = vmatpush1.msra.mxu0 0.0
  %457 = vmatprep.subr.mxu0 0.0
  %458 = vmatpush1.msra.mxu0 0.0
  %459 = vmatprep.subr.mxu0 0.0
  %460 = vmatpush1.msra.mxu0 0.0
  %461 = vmatprep.subr.mxu0 0.0
  %462 = vmatpush1.msra.mxu0 0.0
  %463 = vmatprep.subr.mxu0 0.0
  %464 = vmatpush1.msra.mxu0 0.0
  %465 = vmatprep.subr.mxu0 0.0
  %466 = vmatpush1.msra.mxu0 0.0
  %467 = vmatprep.subr.mxu0 0.0
  %468 = vmatpush1.msra.mxu0 0.0
  %469 = vmatprep.subr.mxu0 0.0
  %470 = vmatpush1.msra.mxu0 0.0
  %471 = vmatprep.subr.mxu0 0.0
  %472 = vmatpush1.msra.mxu0 0.0
  %473 = vmatprep.subr.mxu0 0.0
  %474 = vmatpush1.msra.mxu0 0.0
  %475 = vmatprep.subr.mxu0 0.0
  %476 = vmatpush1.msra.mxu0 0.0
  %477 = vmatprep.subr.mxu0 0.0
  %478 = vmatpush1.msra.mxu0 0.0
  %479 = vmatprep.subr.mxu0 0.0
  %480 = vmatpush1.msra.mxu0 0.0
  %481 = vmatprep.subr.mxu0 0.0
  %482 = vmatpush1.msra.mxu0 0.0
  %483 = vmatprep.subr.mxu0 0.0
  %484 = vmatpush1.msra.mxu0 0.0
  %485 = vmatprep.subr.mxu0 0.0
  %486 = vmatpush1.msra.mxu0 0.0
  %487 = vmatprep.subr.mxu0 0.0
  %488 = vmatpush1.msra.mxu0 0.0
  %489 = vmatprep.subr.mxu0 0.0
  %490 = vmatpush1.msra.mxu0 0.0
  %491 = vmatprep.subr.mxu0 0.0
  %492 = vmatpush1.msra.mxu0 0.0
  %493 = vmatprep.mubr.f32.mxu0 0.0
  %494 = vmatmul.mubr.f32.gmra.mrb[0].mxu0 %v357
  %v495 = vpop.f32.mrb[0].mxu0
  %v496 = vadd.f32 0.0, %v495
  %v497 = vpop.f32.mrb[0].mxu0
  %498 = vdwg.mxu0
  %499 = vmatprep.subr.mxu0 0.0
  %500 = vmatpush1.msra.mxu0 %v343
  %501 = vmatprep.subr.mxu0 0.0
  %502 = vmatpush1.msra.mxu0 %v344
  %503 = vmatprep.subr.mxu0 0.0
  %504 = vmatpush1.msra.mxu0 %v345
  %505 = vmatprep.subr.mxu0 0.0
  %506 = vmatpush1.msra.mxu0 %v346
  %507 = vmatprep.subr.mxu0 0.0
  %508 = vmatpush1.msra.mxu0 0.0
  %509 = vmatprep.subr.mxu0 0.0
  %510 = vmatpush1.msra.mxu0 0.0
  %511 = vmatprep.subr.mxu0 0.0
  %512 = vmatpush1.msra.mxu0 0.0
  %513 = vmatprep.subr.mxu0 0.0
  %514 = vmatpush1.msra.mxu0 0.0
  %515 = vmatprep.subr.mxu0 0.0
  %516 = vmatpush1.msra.mxu0 0.0
  %517 = vmatprep.subr.mxu0 0.0
  %518 = vmatpush1.msra.mxu0 0.0
  %519 = vmatprep.subr.mxu0 0.0
  %520 = vmatpush1.msra.mxu0 0.0
  %521 = vmatprep.subr.mxu0 0.0
  %522 = vmatpush1.msra.mxu0 0.0
  %523 = vmatprep.subr.mxu0 0.0
  %524 = vmatpush1.msra.mxu0 0.0
  %525 = vmatprep.subr.mxu0 0.0
  %526 = vmatpush1.msra.mxu0 0.0
  %527 = vmatprep.subr.mxu0 0.0
  %528 = vmatpush1.msra.mxu0 0.0
  %529 = vmatprep.subr.mxu0 0.0
  %530 = vmatpush1.msra.mxu0 0.0
  %531 = vmatprep.subr.mxu0 0.0
  %532 = vmatpush1.msra.mxu0 0.0
  %533 = vmatprep.subr.mxu0 0.0
  %534 = vmatpush1.msra.mxu0 0.0
  %535 = vmatprep.subr.mxu0 0.0
  %536 = vmatpush1.msra.mxu0 0.0
  %537 = vmatprep.subr.mxu0 0.0
  %538 = vmatpush1.msra.mxu0 0.0
  %539 = vmatprep.subr.mxu0 0.0
  %540 = vmatpush1.msra.mxu0 0.0
  %541 = vmatprep.subr.mxu0 0.0
  %542 = vmatpush1.msra.mxu0 0.0
  %543 = vmatprep.subr.mxu0 0.0
  %544 = vmatpush1.msra.mxu0 0.0
  %545 = vmatprep.subr.mxu0 0.0
  %546 = vmatpush1.msra.mxu0 0.0
  %547 = vmatprep.subr.mxu0 0.0
  %548 = vmatpush1.msra.mxu0 0.0
  %549 = vmatprep.subr.mxu0 0.0
  %550 = vmatpush1.msra.mxu0 0.0
  %551 = vmatprep.subr.mxu0 0.0
  %552 = vmatpush1.msra.mxu0 0.0
  %553 = vmatprep.subr.mxu0 0.0
  %554 = vmatpush1.msra.mxu0 0.0
  %555 = vmatprep.subr.mxu0 0.0
  %556 = vmatpush1.msra.mxu0 0.0
  %557 = vmatprep.subr.mxu0 0.0
  %558 = vmatpush1.msra.mxu0 0.0
  %559 = vmatprep.subr.mxu0 0.0
  %560 = vmatpush1.msra.mxu0 0.0
  %561 = vmatprep.subr.mxu0 0.0
  %562 = vmatpush1.msra.mxu0 0.0
  %563 = vmatprep.mubr.f32.mxu0 0.0
  %564 = vmatmul.mubr.f32.gmra.mrb[0].mxu0 %v357
  %v565 = vpop.f32.mrb[0].mxu0
  %v566 = vadd.f32 %v353, %v565
  %v567 = vpop.f32.mrb[0].mxu0
  %568 = vdwg.mxu0
  %v569 = vadd.f32 %v138, %v426
  %v570 = vxor.u32 %v569, 2147483648
  %v571 = vmul.f32 %v570, 1.442695
  %v572 = vpow.pop %v571
  %v573 = vadd.f32 %v572, 1.0
  %v574 = vrcp.pop %v573
  %v575 = vmul.f32 1.0, %v574
  %v576 = vadd.f32 %v233, %v496
  %v577 = vxor.u32 %v576, 2147483648
  %v578 = vmul.f32 %v577, 1.442695
  %v579 = vpow.pop %v578
  %v580 = vadd.f32 %v579, 1.0
  %v581 = vrcp.pop %v580
  %v582 = vmul.f32 1.0, %v581
  %v583 = vmul.f32 %v575, %v566
  %v584 = vadd.f32 %v325, %v583
  %v585 = vtanh.pop %v584
  %v586 = vsub.f32 1.0, %v582
  %v587 = vmul.f32 %v586, %v585
  %v588 = vmul.f32 %v582, 0.0
  %v589 = vadd.f32 %v587, %v588
  %vm590 = vcmask 254976
  %591 = vst.msk [vmem:[#allocation2] sm:$0x3] %vm590, %v589
  %v593 = vsel %vm355, %v589, 0
  %595 = vmatprep.subr.mxu0 0.0
  %596 = vmatpush1.msra.mxu0 %v333
  %597 = vmatprep.subr.mxu0 0.0
  %598 = vmatpush1.msra.mxu0 %v334
  %599 = vmatprep.subr.mxu0 0.0
  %600 = vmatpush1.msra.mxu0 %v335
  %601 = vmatprep.subr.mxu0 0.0
  %602 = vmatpush1.msra.mxu0 %v336
  %603 = vmatprep.subr.mxu0 0.0
  %604 = vmatpush1.msra.mxu0 0.0
  %605 = vmatprep.subr.mxu0 0.0
  %606 = vmatpush1.msra.mxu0 0.0
  %607 = vmatprep.subr.mxu0 0.0
  %608 = vmatpush1.msra.mxu0 0.0
  %609 = vmatprep.subr.mxu0 0.0
  %610 = vmatpush1.msra.mxu0 0.0
  %611 = vmatprep.subr.mxu0 0.0
  %612 = vmatpush1.msra.mxu0 0.0
  %613 = vmatprep.subr.mxu0 0.0
  %614 = vmatpush1.msra.mxu0 0.0
  %615 = vmatprep.subr.mxu0 0.0
  %616 = vmatpush1.msra.mxu0 0.0
  %617 = vmatprep.subr.mxu0 0.0
  %618 = vmatpush1.msra.mxu0 0.0
  %619 = vmatprep.subr.mxu0 0.0
  %620 = vmatpush1.msra.mxu0 0.0
  %621 = vmatprep.subr.mxu0 0.0
  %622 = vmatpush1.msra.mxu0 0.0
  %623 = vmatprep.subr.mxu0 0.0
  %624 = vmatpush1.msra.mxu0 0.0
  %625 = vmatprep.subr.mxu0 0.0
  %626 = vmatpush1.msra.mxu0 0.0
  %627 = vmatprep.subr.mxu0 0.0
  %628 = vmatpush1.msra.mxu0 0.0
  %629 = vmatprep.subr.mxu0 0.0
  %630 = vmatpush1.msra.mxu0 0.0
  %631 = vmatprep.subr.mxu0 0.0
  %632 = vmatpush1.msra.mxu0 0.0
  %633 = vmatprep.subr.mxu0 0.0
  %634 = vmatpush1.msra.mxu0 0.0
  %635 = vmatprep.subr.mxu0 0.0
  %636 = vmatpush1.msra.mxu0 0.0
  %637 = vmatprep.subr.mxu0 0.0
  %638 = vmatpush1.msra.mxu0 0.0
  %639 = vmatprep.subr.mxu0 0.0
  %640 = vmatpush1.msra.mxu0 0.0
  %641 = vmatprep.subr.mxu0 0.0
  %642 = vmatpush1.msra.mxu0 0.0
  %643 = vmatprep.subr.mxu0 0.0
  %644 = vmatpush1.msra.mxu0 0.0
  %645 = vmatprep.subr.mxu0 0.0
  %646 = vmatpush1.msra.mxu0 0.0
  %647 = vmatprep.subr.mxu0 0.0
  %648 = vmatpush1.msra.mxu0 0.0
  %649 = vmatprep.subr.mxu0 0.0
  %650 = vmatpush1.msra.mxu0 0.0
  %651 = vmatprep.subr.mxu0 0.0
  %652 = vmatpush1.msra.mxu0 0.0
  %653 = vmatprep.subr.mxu0 0.0
  %654 = vmatpush1.msra.mxu0 0.0
  %655 = vmatprep.subr.mxu0 0.0
  %656 = vmatpush1.msra.mxu0 0.0
  %657 = vmatprep.subr.mxu0 0.0
  %658 = vmatpush1.msra.mxu0 0.0
  %659 = vmatprep.mubr.f32.mxu0 0.0
  %660 = vmatmul.mubr.f32.gmra.mrb[0].mxu0 %v593
  %v661 = vpop.f32.mrb[0].mxu0
  %v662 = vadd.f32 0.0, %v661
  %v663 = vpop.f32.mrb[0].mxu0
  %664 = vdwg.mxu0
  %665 = vmatprep.subr.mxu0 0.0
  %666 = vmatpush1.msra.mxu0 %v338
  %667 = vmatprep.subr.mxu0 0.0
  %668 = vmatpush1.msra.mxu0 %v339
  %669 = vmatprep.subr.mxu0 0.0
  %670 = vmatpush1.msra.mxu0 %v340
  %671 = vmatprep.subr.mxu0 0.0
  %672 = vmatpush1.msra.mxu0 %v341
  %673 = vmatprep.subr.mxu0 0.0
  %674 = vmatpush1.msra.mxu0 0.0
  %675 = vmatprep.subr.mxu0 0.0
  %676 = vmatpush1.msra.mxu0 0.0
  %677 = vmatprep.subr.mxu0 0.0
  %678 = vmatpush1.msra.mxu0 0.0
  %679 = vmatprep.subr.mxu0 0.0
  %680 = vmatpush1.msra.mxu0 0.0
  %681 = vmatprep.subr.mxu0 0.0
  %682 = vmatpush1.msra.mxu0 0.0
  %683 = vmatprep.subr.mxu0 0.0
  %684 = vmatpush1.msra.mxu0 0.0
  %685 = vmatprep.subr.mxu0 0.0
  %686 = vmatpush1.msra.mxu0 0.0
  %687 = vmatprep.subr.mxu0 0.0
  %688 = vmatpush1.msra.mxu0 0.0
  %689 = vmatprep.subr.mxu0 0.0
  %690 = vmatpush1.msra.mxu0 0.0
  %691 = vmatprep.subr.mxu0 0.0
  %692 = vmatpush1.msra.mxu0 0.0
  %693 = vmatprep.subr.mxu0 0.0
  %694 = vmatpush1.msra.mxu0 0.0
  %695 = vmatprep.subr.mxu0 0.0
  %696 = vmatpush1.msra.mxu0 0.0
  %697 = vmatprep.subr.mxu0 0.0
  %698 = vmatpush1.msra.mxu0 0.0
  %699 = vmatprep.subr.mxu0 0.0
  %700 = vmatpush1.msra.mxu0 0.0
  %701 = vmatprep.subr.mxu0 0.0
  %702 = vmatpush1.msra.mxu0 0.0
  %703 = vmatprep.subr.mxu0 0.0
  %704 = vmatpush1.msra.mxu0 0.0
  %705 = vmatprep.subr.mxu0 0.0
  %706 = vmatpush1.msra.mxu0 0.0
  %707 = vmatprep.subr.mxu0 0.0
  %708 = vmatpush1.msra.mxu0 0.0
  %709 = vmatprep.subr.mxu0 0.0
  %710 = vmatpush1.msra.mxu0 0.0
  %711 = vmatprep.subr.mxu0 0.0
  %712 = vmatpush1.msra.mxu0 0.0
  %713 = vmatprep.subr.mxu0 0.0
  %714 = vmatpush1.msra.mxu0 0.0
  %715 = vmatprep.subr.mxu0 0.0
  %716 = vmatpush1.msra.mxu0 0.0
  %717 = vmatprep.subr.mxu0 0.0
  %718 = vmatpush1.msra.mxu0 0.0
  %719 = vmatprep.subr.mxu0 0.0
  %720 = vmatpush1.msra.mxu0 0.0
  %721 = vmatprep.subr.mxu0 0.0
  %722 = vmatpush1.msra.mxu0 0.0
  %723 = vmatprep.subr.mxu0 0.0
  %724 = vmatpush1.msra.mxu0 0.0
  %725 = vmatprep.subr.mxu0 0.0
  %726 = vmatpush1.msra.mxu0 0.0
  %727 = vmatprep.subr.mxu0 0.0
  %728 = vmatpush1.msra.mxu0 0.0
  %729 = vmatprep.mubr.f32.mxu0 0.0
  %730 = vmatmul.mubr.f32.gmra.mrb[0].mxu0 %v593
  %v731 = vpop.f32.mrb[0].mxu0
  %v732 = vadd.f32 0.0, %v731
  %v733 = vpop.f32.mrb[0].mxu0
  %734 = vdwg.mxu0
  %735 = vmatprep.subr.mxu0 0.0
  %736 = vmatpush1.msra.mxu0 %v343
  %737 = vmatprep.subr.mxu0 0.0
  %738 = vmatpush1.msra.mxu0 %v344
  %739 = vmatprep.subr.mxu0 0.0
  %740 = vmatpush1.msra.mxu0 %v345
  %741 = vmatprep.subr.mxu0 0.0
  %742 = vmatpush1.msra.mxu0 %v346
  %743 = vmatprep.subr.mxu0 0.0
  %744 = vmatpush1.msra.mxu0 0.0
  %745 = vmatprep.subr.mxu0 0.0
  %746 = vmatpush1.msra.mxu0 0.0
  %747 = vmatprep.subr.mxu0 0.0
  %748 = vmatpush1.msra.mxu0 0.0
  %749 = vmatprep.subr.mxu0 0.0
  %750 = vmatpush1.msra.mxu0 0.0
  %751 = vmatprep.subr.mxu0 0.0
  %752 = vmatpush1.msra.mxu0 0.0
  %753 = vmatprep.subr.mxu0 0.0
  %754 = vmatpush1.msra.mxu0 0.0
  %755 = vmatprep.subr.mxu0 0.0
  %756 = vmatpush1.msra.mxu0 0.0
  %757 = vmatprep.subr.mxu0 0.0
  %758 = vmatpush1.msra.mxu0 0.0
  %759 = vmatprep.subr.mxu0 0.0
  %760 = vmatpush1.msra.mxu0 0.0
  %761 = vmatprep.subr.mxu0 0.0
  %762 = vmatpush1.msra.mxu0 0.0
  %763 = vmatprep.subr.mxu0 0.0
  %764 = vmatpush1.msra.mxu0 0.0
  %765 = vmatprep.subr.mxu0 0.0
  %766 = vmatpush1.msra.mxu0 0.0
  %767 = vmatprep.subr.mxu0 0.0
  %768 = vmatpush1.msra.mxu0 0.0
  %769 = vmatprep.subr.mxu0 0.0
  %770 = vmatpush1.msra.mxu0 0.0
  %771 = vmatprep.subr.mxu0 0.0
  %772 = vmatpush1.msra.mxu0 0.0
  %773 = vmatprep.subr.mxu0 0.0
  %774 = vmatpush1.msra.mxu0 0.0
  %775 = vmatprep.subr.mxu0 0.0
  %776 = vmatpush1.msra.mxu0 0.0
  %777 = vmatprep.subr.mxu0 0.0
  %778 = vmatpush1.msra.mxu0 0.0
  %779 = vmatprep.subr.mxu0 0.0
  %780 = vmatpush1.msra.mxu0 0.0
  %781 = vmatprep.subr.mxu0 0.0
  %782 = vmatpush1.msra.mxu0 0.0
  %783 = vmatprep.subr.mxu0 0.0
  %784 = vmatpush1.msra.mxu0 0.0
  %785 = vmatprep.subr.mxu0 0.0
  %786 = vmatpush1.msra.mxu0 0.0
  %787 = vmatprep.subr.mxu0 0.0
  %788 = vmatpush1.msra.mxu0 0.0
  %789 = vmatprep.subr.mxu0 0.0
  %790 = vmatpush1.msra.mxu0 0.0
  %791 = vmatprep.subr.mxu0 0.0
  %792 = vmatpush1.msra.mxu0 0.0
  %793 = vmatprep.subr.mxu0 0.0
  %794 = vmatpush1.msra.mxu0 0.0
  %795 = vmatprep.subr.mxu0 0.0
  %796 = vmatpush1.msra.mxu0 0.0
  %797 = vmatprep.subr.mxu0 0.0
  %798 = vmatpush1.msra.mxu0 0.0
  %799 = vmatprep.mubr.f32.mxu0 0.0
  %800 = vmatmul.mubr.f32.gmra.mrb[0].mxu0 %v593
  %v801 = vpop.f32.mrb[0].mxu0
  %v802 = vadd.f32 %v353, %v801
  %v803 = vpop.f32.mrb[0].mxu0
  %804 = vdwg.mxu0
  %v806 = vrot.slane %v662, 6
  %v808 = vadd.f32 %v138, %v806
  %v809 = vxor.u32 %v808, 2147483648
  %v810 = vmul.f32 %v809, 1.442695
  %v811 = vpow.pop %v810
  %v812 = vadd.f32 %v811, 1.0
  %v813 = vrcp.pop %v812
  %v814 = vmul.f32 1.0, %v813
  %v816 = vrot.slane %v732, 6
  %v818 = vadd.f32 %v233, %v816
  %v819 = vxor.u32 %v818, 2147483648
  %v820 = vmul.f32 %v819, 1.442695
  %v821 = vpow.pop %v820
  %v822 = vadd.f32 %v821, 1.0
  %v823 = vrcp.pop %v822
  %v824 = vmul.f32 1.0, %v823
  %v826 = vrot.slane %v802, 6
  %v828 = vmul.f32 %v814, %v826
  %v829 = vadd.f32 %v325, %v828
  %v830 = vtanh.pop %v829
  %v831 = vsub.f32 1.0, %v824
  %v832 = vmul.f32 %v831, %v830
  %v833 = vrot.slane %v589, 6
  %v835 = vmul.f32 %v824, %v833
  %v836 = vadd.f32 %v832, %v835
  %vm837 = vcmask 257026
  %838 = vst.msk [vmem:[#allocation2] sm:$0xc] %vm837, %v836
  %v840 = vrot.slane %v836, 2
  %v841 = vsel %vm355, %v840, 0
  %843 = vmatprep.subr.mxu0 0.0
  %844 = vmatpush1.msra.mxu0 %v333
  %845 = vmatprep.subr.mxu0 0.0
  %846 = vmatpush1.msra.mxu0 %v334
  %847 = vmatprep.subr.mxu0 0.0
  %848 = vmatpush1.msra.mxu0 %v335
  %849 = vmatprep.subr.mxu0 0.0
  %850 = vmatpush1.msra.mxu0 %v336
  %851 = vmatprep.subr.mxu0 0.0
  %852 = vmatpush1.msra.mxu0 0.0
  %853 = vmatprep.subr.mxu0 0.0
  %854 = vmatpush1.msra.mxu0 0.0
  %855 = vmatprep.subr.mxu0 0.0
  %856 = vmatpush1.msra.mxu0 0.0
  %857 = vmatprep.subr.mxu0 0.0
  %858 = vmatpush1.msra.mxu0 0.0
  %859 = vmatprep.subr.mxu0 0.0
  %860 = vmatpush1.msra.mxu0 0.0
  %861 = vmatprep.subr.mxu0 0.0
  %862 = vmatpush1.msra.mxu0 0.0
  %863 = vmatprep.subr.mxu0 0.0
  %864 = vmatpush1.msra.mxu0 0.0
  %865 = vmatprep.subr.mxu0 0.0
  %866 = vmatpush1.msra.mxu0 0.0
  %867 = vmatprep.subr.mxu0 0.0
  %868 = vmatpush1.msra.mxu0 0.0
  %869 = vmatprep.subr.mxu0 0.0
  %870 = vmatpush1.msra.mxu0 0.0
  %871 = vmatprep.subr.mxu0 0.0
  %872 = vmatpush1.msra.mxu0 0.0
  %873 = vmatprep.subr.mxu0 0.0
  %874 = vmatpush1.msra.mxu0 0.0
  %875 = vmatprep.subr.mxu0 0.0
  %876 = vmatpush1.msra.mxu0 0.0
  %877 = vmatprep.subr.mxu0 0.0
  %878 = vmatpush1.msra.mxu0 0.0
  %879 = vmatprep.subr.mxu0 0.0
  %880 = vmatpush1.msra.mxu0 0.0
  %881 = vmatprep.subr.mxu0 0.0
  %882 = vmatpush1.msra.mxu0 0.0
  %883 = vmatprep.subr.mxu0 0.0
  %884 = vmatpush1.msra.mxu0 0.0
  %885 = vmatprep.subr.mxu0 0.0
  %886 = vmatpush1.msra.mxu0 0.0
  %887 = vmatprep.subr.mxu0 0.0
  %888 = vmatpush1.msra.mxu0 0.0
  %889 = vmatprep.subr.mxu0 0.0
  %890 = vmatpush1.msra.mxu0 0.0
  %891 = vmatprep.subr.mxu0 0.0
  %892 = vmatpush1.msra.mxu0 0.0
  %893 = vmatprep.subr.mxu0 0.0
  %894 = vmatpush1.msra.mxu0 0.0
  %895 = vmatprep.subr.mxu0 0.0
  %896 = vmatpush1.msra.mxu0 0.0
  %897 = vmatprep.subr.mxu0 0.0
  %898 = vmatpush1.msra.mxu0 0.0
  %899 = vmatprep.subr.mxu0 0.0
  %900 = vmatpush1.msra.mxu0 0.0
  %901 = vmatprep.subr.mxu0 0.0
  %902 = vmatpush1.msra.mxu0 0.0
  %903 = vmatprep.subr.mxu0 0.0
  %904 = vmatpush1.msra.mxu0 0.0
  %905 = vmatprep.subr.mxu0 0.0
  %906 = vmatpush1.msra.mxu0 0.0
  %907 = vmatprep.mubr.f32.mxu0 0.0
  %908 = vmatmul.mubr.f32.gmra.mrb[0].mxu0 %v841
  %v909 = vpop.f32.mrb[0].mxu0
  %v910 = vadd.f32 0.0, %v909
  %v911 = vpop.f32.mrb[0].mxu0
  %912 = vdwg.mxu0
  %913 = vmatprep.subr.mxu0 0.0
  %914 = vmatpush1.msra.mxu0 %v338
  %915 = vmatprep.subr.mxu0 0.0
  %916 = vmatpush1.msra.mxu0 %v339
  %917 = vmatprep.subr.mxu0 0.0
  %918 = vmatpush1.msra.mxu0 %v340
  %919 = vmatprep.subr.mxu0 0.0
  %920 = vmatpush1.msra.mxu0 %v341
  %921 = vmatprep.subr.mxu0 0.0
  %922 = vmatpush1.msra.mxu0 0.0
  %923 = vmatprep.subr.mxu0 0.0
  %924 = vmatpush1.msra.mxu0 0.0
  %925 = vmatprep.subr.mxu0 0.0
  %926 = vmatpush1.msra.mxu0 0.0
  %927 = vmatprep.subr.mxu0 0.0
  %928 = vmatpush1.msra.mxu0 0.0
  %929 = vmatprep.subr.mxu0 0.0
  %930 = vmatpush1.msra.mxu0 0.0
  %931 = vmatprep.subr.mxu0 0.0
  %932 = vmatpush1.msra.mxu0 0.0
  %933 = vmatprep.subr.mxu0 0.0
  %934 = vmatpush1.msra.mxu0 0.0
  %935 = vmatprep.subr.mxu0 0.0
  %936 = vmatpush1.msra.mxu0 0.0
  %937 = vmatprep.subr.mxu0 0.0
  %938 = vmatpush1.msra.mxu0 0.0
  %939 = vmatprep.subr.mxu0 0.0
  %940 = vmatpush1.msra.mxu0 0.0
  %941 = vmatprep.subr.mxu0 0.0
  %942 = vmatpush1.msra.mxu0 0.0
  %943 = vmatprep.subr.mxu0 0.0
  %944 = vmatpush1.msra.mxu0 0.0
  %945 = vmatprep.subr.mxu0 0.0
  %946 = vmatpush1.msra.mxu0 0.0
  %947 = vmatprep.subr.mxu0 0.0
  %948 = vmatpush1.msra.mxu0 0.0
  %949 = vmatprep.subr.mxu0 0.0
  %950 = vmatpush1.msra.mxu0 0.0
  %951 = vmatprep.subr.mxu0 0.0
  %952 = vmatpush1.msra.mxu0 0.0
  %953 = vmatprep.subr.mxu0 0.0
  %954 = vmatpush1.msra.mxu0 0.0
  %955 = vmatprep.subr.mxu0 0.0
  %956 = vmatpush1.msra.mxu0 0.0
  %957 = vmatprep.subr.mxu0 0.0
  %958 = vmatpush1.msra.mxu0 0.0
  %959 = vmatprep.subr.mxu0 0.0
  %960 = vmatpush1.msra.mxu0 0.0
  %961 = vmatprep.subr.mxu0 0.0
  %962 = vmatpush1.msra.mxu0 0.0
  %963 = vmatprep.subr.mxu0 0.0
  %964 = vmatpush1.msra.mxu0 0.0
  %965 = vmatprep.subr.mxu0 0.0
  %966 = vmatpush1.msra.mxu0 0.0
  %967 = vmatprep.subr.mxu0 0.0
  %968 = vmatpush1.msra.mxu0 0.0
  %969 = vmatprep.subr.mxu0 0.0
  %970 = vmatpush1.msra.mxu0 0.0
  %971 = vmatprep.subr.mxu0 0.0
  %972 = vmatpush1.msra.mxu0 0.0
  %973 = vmatprep.subr.mxu0 0.0
  %974 = vmatpush1.msra.mxu0 0.0
  %975 = vmatprep.subr.mxu0 0.0
  %976 = vmatpush1.msra.mxu0 0.0
  %977 = vmatprep.mubr.f32.mxu0 0.0
  %978 = vmatmul.mubr.f32.gmra.mrb[0].mxu0 %v841
  %v979 = vpop.f32.mrb[0].mxu0
  %v980 = vadd.f32 0.0, %v979
  %v981 = vpop.f32.mrb[0].mxu0
  %982 = vdwg.mxu0
  %983 = vmatprep.subr.mxu0 0.0
  %984 = vmatpush1.msra.mxu0 %v343
  %985 = vmatprep.subr.mxu0 0.0
  %986 = vmatpush1.msra.mxu0 %v344
  %987 = vmatprep.subr.mxu0 0.0
  %988 = vmatpush1.msra.mxu0 %v345
  %989 = vmatprep.subr.mxu0 0.0
  %990 = vmatpush1.msra.mxu0 %v346
  %991 = vmatprep.subr.mxu0 0.0
  %992 = vmatpush1.msra.mxu0 0.0
  %993 = vmatprep.subr.mxu0 0.0
  %994 = vmatpush1.msra.mxu0 0.0
  %995 = vmatprep.subr.mxu0 0.0
  %996 = vmatpush1.msra.mxu0 0.0
  %997 = vmatprep.subr.mxu0 0.0
  %998 = vmatpush1.msra.mxu0 0.0
  %999 = vmatprep.subr.mxu0 0.0
  %1000 = vmatpush1.msra.mxu0 0.0
  %1001 = vmatprep.subr.mxu0 0.0
  %1002 = vmatpush1.msra.mxu0 0.0
  %1003 = vmatprep.subr.mxu0 0.0
  %1004 = vmatpush1.msra.mxu0 0.0
  %1005 = vmatprep.subr.mxu0 0.0
  %1006 = vmatpush1.msra.mxu0 0.0
  %1007 = vmatprep.subr.mxu0 0.0
  %1008 = vmatpush1.msra.mxu0 0.0
  %1009 = vmatprep.subr.mxu0 0.0
  %1010 = vmatpush1.msra.mxu0 0.0
  %1011 = vmatprep.subr.mxu0 0.0
  %1012 = vmatpush1.msra.mxu0 0.0
  %1013 = vmatprep.subr.mxu0 0.0
  %1014 = vmatpush1.msra.mxu0 0.0
  %1015 = vmatprep.subr.mxu0 0.0
  %1016 = vmatpush1.msra.mxu0 0.0
  %1017 = vmatprep.subr.mxu0 0.0
  %1018 = vmatpush1.msra.mxu0 0.0
  %1019 = vmatprep.subr.mxu0 0.0
  %1020 = vmatpush1.msra.mxu0 0.0
  %1021 = vmatprep.subr.mxu0 0.0
  %1022 = vmatpush1.msra.mxu0 0.0
  %1023 = vmatprep.subr.mxu0 0.0
  %1024 = vmatpush1.msra.mxu0 0.0
  %1025 = vmatprep.subr.mxu0 0.0
  %1026 = vmatpush1.msra.mxu0 0.0
  %1027 = vmatprep.subr.mxu0 0.0
  %1028 = vmatpush1.msra.mxu0 0.0
  %1029 = vmatprep.subr.mxu0 0.0
  %1030 = vmatpush1.msra.mxu0 0.0
  %1031 = vmatprep.subr.mxu0 0.0
  %1032 = vmatpush1.msra.mxu0 0.0
  %1033 = vmatprep.subr.mxu0 0.0
  %1034 = vmatpush1.msra.mxu0 0.0
  %1035 = vmatprep.subr.mxu0 0.0
  %1036 = vmatpush1.msra.mxu0 0.0
  %1037 = vmatprep.subr.mxu0 0.0
  %1038 = vmatpush1.msra.mxu0 0.0
  %1039 = vmatprep.subr.mxu0 0.0
  %1040 = vmatpush1.msra.mxu0 0.0
  %1041 = vmatprep.subr.mxu0 0.0
  %1042 = vmatpush1.msra.mxu0 0.0
  %1043 = vmatprep.subr.mxu0 0.0
  %1044 = vmatpush1.msra.mxu0 0.0
  %1045 = vmatprep.subr.mxu0 0.0
  %1046 = vmatpush1.msra.mxu0 0.0
  %1047 = vmatprep.mubr.f32.mxu0 0.0
  %1048 = vmatmul.mubr.f32.gmra.mrb[0].mxu0 %v841
  %v1049 = vpop.f32.mrb[0].mxu0
  %v1050 = vadd.f32 %v353, %v1049
  %v1051 = vpop.f32.mrb[0].mxu0
  %1052 = vdwg.mxu0
  %v1054 = vrot.slane %v910, 4
  %v1056 = vadd.f32 %v138, %v1054
  %v1057 = vxor.u32 %v1056, 2147483648
  %v1058 = vmul.f32 %v1057, 1.442695
  %v1059 = vpow.pop %v1058
  %v1060 = vadd.f32 %v1059, 1.0
  %v1061 = vrcp.pop %v1060
  %v1062 = vmul.f32 1.0, %v1061
  %v1064 = vrot.slane %v980, 4
  %v1066 = vadd.f32 %v233, %v1064
  %v1067 = vxor.u32 %v1066, 2147483648
  %v1068 = vmul.f32 %v1067, 1.442695
  %v1069 = vpow.pop %v1068
  %v1070 = vadd.f32 %v1069, 1.0
  %v1071 = vrcp.pop %v1070
  %v1072 = vmul.f32 1.0, %v1071
  %v1074 = vrot.slane %v1050, 4
  %v1076 = vmul.f32 %v1062, %v1074
  %v1077 = vadd.f32 %v325, %v1076
  %v1078 = vtanh.pop %v1077
  %v1079 = vsub.f32 1.0, %v1072
  %v1080 = vmul.f32 %v1079, %v1078
  %v1081 = vrot.slane %v836, 6
  %v1083 = vmul.f32 %v1072, %v1081
  %v1084 = vadd.f32 %v1080, %v1083
  %vm1085 = vcmask 259076
  %1086 = vst.msk [vmem:[#allocation2] sm:$0x30] %vm1085, %v1084
  %v1088 = vrot.slane %v1084, 4
  %v1089 = vsel %vm355, %v1088, 0
  %1091 = vmatprep.subr.mxu0 0.0
  %1092 = vmatpush1.msra.mxu0 %v333
  %1093 = vmatprep.subr.mxu0 0.0
  %1094 = vmatpush1.msra.mxu0 %v334
  %1095 = vmatprep.subr.mxu0 0.0
  %1096 = vmatpush1.msra.mxu0 %v335
  %1097 = vmatprep.subr.mxu0 0.0
  %1098 = vmatpush1.msra.mxu0 %v336
  %1099 = vmatprep.subr.mxu0 0.0
  %1100 = vmatpush1.msra.mxu0 0.0
  %1101 = vmatprep.subr.mxu0 0.0
  %1102 = vmatpush1.msra.mxu0 0.0
  %1103 = vmatprep.subr.mxu0 0.0
  %1104 = vmatpush1.msra.mxu0 0.0
  %1105 = vmatprep.subr.mxu0 0.0
  %1106 = vmatpush1.msra.mxu0 0.0
  %1107 = vmatprep.subr.mxu0 0.0
  %1108 = vmatpush1.msra.mxu0 0.0
  %1109 = vmatprep.subr.mxu0 0.0
  %1110 = vmatpush1.msra.mxu0 0.0
  %1111 = vmatprep.subr.mxu0 0.0
  %1112 = vmatpush1.msra.mxu0 0.0
  %1113 = vmatprep.subr.mxu0 0.0
  %1114 = vmatpush1.msra.mxu0 0.0
  %1115 = vmatprep.subr.mxu0 0.0
  %1116 = vmatpush1.msra.mxu0 0.0
  %1117 = vmatprep.subr.mxu0 0.0
  %1118 = vmatpush1.msra.mxu0 0.0
  %1119 = vmatprep.subr.mxu0 0.0
  %1120 = vmatpush1.msra.mxu0 0.0
  %1121 = vmatprep.subr.mxu0 0.0
  %1122 = vmatpush1.msra.mxu0 0.0
  %1123 = vmatprep.subr.mxu0 0.0
  %1124 = vmatpush1.msra.mxu0 0.0
  %1125 = vmatprep.subr.mxu0 0.0
  %1126 = vmatpush1.msra.mxu0 0.0
  %1127 = vmatprep.subr.mxu0 0.0
  %1128 = vmatpush1.msra.mxu0 0.0
  %1129 = vmatprep.subr.mxu0 0.0
  %1130 = vmatpush1.msra.mxu0 0.0
  %1131 = vmatprep.subr.mxu0 0.0
  %1132 = vmatpush1.msra.mxu0 0.0
  %1133 = vmatprep.subr.mxu0 0.0
  %1134 = vmatpush1.msra.mxu0 0.0
  %1135 = vmatprep.subr.mxu0 0.0
  %1136 = vmatpush1.msra.mxu0 0.0
  %1137 = vmatprep.subr.mxu0 0.0
  %1138 = vmatpush1.msra.mxu0 0.0
  %1139 = vmatprep.subr.mxu0 0.0
  %1140 = vmatpush1.msra.mxu0 0.0
  %1141 = vmatprep.subr.mxu0 0.0
  %1142 = vmatpush1.msra.mxu0 0.0
  %1143 = vmatprep.subr.mxu0 0.0
  %1144 = vmatpush1.msra.mxu0 0.0
  %1145 = vmatprep.subr.mxu0 0.0
  %1146 = vmatpush1.msra.mxu0 0.0
  %1147 = vmatprep.subr.mxu0 0.0
  %1148 = vmatpush1.msra.mxu0 0.0
  %1149 = vmatprep.subr.mxu0 0.0
  %1150 = vmatpush1.msra.mxu0 0.0
  %1151 = vmatprep.subr.mxu0 0.0
  %1152 = vmatpush1.msra.mxu0 0.0
  %1153 = vmatprep.subr.mxu0 0.0
  %1154 = vmatpush1.msra.mxu0 0.0
  %1155 = vmatprep.mubr.f32.mxu0 0.0
  %1156 = vmatmul.mubr.f32.gmra.mrb[0].mxu0 %v1089
  %v1157 = vpop.f32.mrb[0].mxu0
  %v1158 = vadd.f32 0.0, %v1157
  %v1159 = vpop.f32.mrb[0].mxu0
  %1160 = vdwg.mxu0
  %1161 = vmatprep.subr.mxu0 0.0
  %1162 = vmatpush1.msra.mxu0 %v338
  %1163 = vmatprep.subr.mxu0 0.0
  %1164 = vmatpush1.msra.mxu0 %v339
  %1165 = vmatprep.subr.mxu0 0.0
  %1166 = vmatpush1.msra.mxu0 %v340
  %1167 = vmatprep.subr.mxu0 0.0
  %1168 = vmatpush1.msra.mxu0 %v341
  %1169 = vmatprep.subr.mxu0 0.0
  %1170 = vmatpush1.msra.mxu0 0.0
  %1171 = vmatprep.subr.mxu0 0.0
  %1172 = vmatpush1.msra.mxu0 0.0
  %1173 = vmatprep.subr.mxu0 0.0
  %1174 = vmatpush1.msra.mxu0 0.0
  %1175 = vmatprep.subr.mxu0 0.0
  %1176 = vmatpush1.msra.mxu0 0.0
  %1177 = vmatprep.subr.mxu0 0.0
  %1178 = vmatpush1.msra.mxu0 0.0
  %1179 = vmatprep.subr.mxu0 0.0
  %1180 = vmatpush1.msra.mxu0 0.0
  %1181 = vmatprep.subr.mxu0 0.0
  %1182 = vmatpush1.msra.mxu0 0.0
  %1183 = vmatprep.subr.mxu0 0.0
  %1184 = vmatpush1.msra.mxu0 0.0
  %1185 = vmatprep.subr.mxu0 0.0
  %1186 = vmatpush1.msra.mxu0 0.0
  %1187 = vmatprep.subr.mxu0 0.0
  %1188 = vmatpush1.msra.mxu0 0.0
  %1189 = vmatprep.subr.mxu0 0.0
  %1190 = vmatpush1.msra.mxu0 0.0
  %1191 = vmatprep.subr.mxu0 0.0
  %1192 = vmatpush1.msra.mxu0 0.0
  %1193 = vmatprep.subr.mxu0 0.0
  %1194 = vmatpush1.msra.mxu0 0.0
  %1195 = vmatprep.subr.mxu0 0.0
  %1196 = vmatpush1.msra.mxu0 0.0
  %1197 = vmatprep.subr.mxu0 0.0
  %1198 = vmatpush1.msra.mxu0 0.0
  %1199 = vmatprep.subr.mxu0 0.0
  %1200 = vmatpush1.msra.mxu0 0.0
  %1201 = vmatprep.subr.mxu0 0.0
  %1202 = vmatpush1.msra.mxu0 0.0
  %1203 = vmatprep.subr.mxu0 0.0
  %1204 = vmatpush1.msra.mxu0 0.0
  %1205 = vmatprep.subr.mxu0 0.0
  %1206 = vmatpush1.msra.mxu0 0.0
  %1207 = vmatprep.subr.mxu0 0.0
  %1208 = vmatpush1.msra.mxu0 0.0
  %1209 = vmatprep.subr.mxu0 0.0
  %1210 = vmatpush1.msra.mxu0 0.0
  %1211 = vmatprep.subr.mxu0 0.0
  %1212 = vmatpush1.msra.mxu0 0.0
  %1213 = vmatprep.subr.mxu0 0.0
  %1214 = vmatpush1.msra.mxu0 0.0
  %1215 = vmatprep.subr.mxu0 0.0
  %1216 = vmatpush1.msra.mxu0 0.0
  %1217 = vmatprep.subr.mxu0 0.0
  %1218 = vmatpush1.msra.mxu0 0.0
  %1219 = vmatprep.subr.mxu0 0.0
  %1220 = vmatpush1.msra.mxu0 0.0
  %1221 = vmatprep.subr.mxu0 0.0
  %1222 = vmatpush1.msra.mxu0 0.0
  %1223 = vmatprep.subr.mxu0 0.0
  %1224 = vmatpush1.msra.mxu0 0.0
  %1225 = vmatprep.mubr.f32.mxu0 0.0
  %1226 = vmatmul.mubr.f32.gmra.mrb[0].mxu0 %v1089
  %v1227 = vpop.f32.mrb[0].mxu0
  %v1228 = vadd.f32 0.0, %v1227
  %v1229 = vpop.f32.mrb[0].mxu0
  %1230 = vdwg.mxu0
  %1231 = vmatprep.subr.mxu0 0.0
  %1232 = vmatpush1.msra.mxu0 %v343
  %1233 = vmatprep.subr.mxu0 0.0
  %1234 = vmatpush1.msra.mxu0 %v344
  %1235 = vmatprep.subr.mxu0 0.0
  %1236 = vmatpush1.msra.mxu0 %v345
  %1237 = vmatprep.subr.mxu0 0.0
  %1238 = vmatpush1.msra.mxu0 %v346
  %1239 = vmatprep.subr.mxu0 0.0
  %1240 = vmatpush1.msra.mxu0 0.0
  %1241 = vmatprep.subr.mxu0 0.0
  %1242 = vmatpush1.msra.mxu0 0.0
  %1243 = vmatprep.subr.mxu0 0.0
  %1244 = vmatpush1.msra.mxu0 0.0
  %1245 = vmatprep.subr.mxu0 0.0
  %1246 = vmatpush1.msra.mxu0 0.0
  %1247 = vmatprep.subr.mxu0 0.0
  %1248 = vmatpush1.msra.mxu0 0.0
  %1249 = vmatprep.subr.mxu0 0.0
  %1250 = vmatpush1.msra.mxu0 0.0
  %1251 = vmatprep.subr.mxu0 0.0
  %1252 = vmatpush1.msra.mxu0 0.0
  %1253 = vmatprep.subr.mxu0 0.0
  %1254 = vmatpush1.msra.mxu0 0.0
  %1255 = vmatprep.subr.mxu0 0.0
  %1256 = vmatpush1.msra.mxu0 0.0
  %1257 = vmatprep.subr.mxu0 0.0
  %1258 = vmatpush1.msra.mxu0 0.0
  %1259 = vmatprep.subr.mxu0 0.0
  %1260 = vmatpush1.msra.mxu0 0.0
  %1261 = vmatprep.subr.mxu0 0.0
  %1262 = vmatpush1.msra.mxu0 0.0
  %1263 = vmatprep.subr.mxu0 0.0
  %1264 = vmatpush1.msra.mxu0 0.0
  %1265 = vmatprep.subr.mxu0 0.0
  %1266 = vmatpush1.msra.mxu0 0.0
  %1267 = vmatprep.subr.mxu0 0.0
  %1268 = vmatpush1.msra.mxu0 0.0
  %1269 = vmatprep.subr.mxu0 0.0
  %1270 = vmatpush1.msra.mxu0 0.0
  %1271 = vmatprep.subr.mxu0 0.0
  %1272 = vmatpush1.msra.mxu0 0.0
  %1273 = vmatprep.subr.mxu0 0.0
  %1274 = vmatpush1.msra.mxu0 0.0
  %1275 = vmatprep.subr.mxu0 0.0
  %1276 = vmatpush1.msra.mxu0 0.0
  %1277 = vmatprep.subr.mxu0 0.0
  %1278 = vmatpush1.msra.mxu0 0.0
  %1279 = vmatprep.subr.mxu0 0.0
  %1280 = vmatpush1.msra.mxu0 0.0
  %1281 = vmatprep.subr.mxu0 0.0
  %1282 = vmatpush1.msra.mxu0 0.0
  %1283 = vmatprep.subr.mxu0 0.0
  %1284 = vmatpush1.msra.mxu0 0.0
  %1285 = vmatprep.subr.mxu0 0.0
  %1286 = vmatpush1.msra.mxu0 0.0
  %1287 = vmatprep.subr.mxu0 0.0
  %1288 = vmatpush1.msra.mxu0 0.0
  %1289 = vmatprep.subr.mxu0 0.0
  %1290 = vmatpush1.msra.mxu0 0.0
  %1291 = vmatprep.subr.mxu0 0.0
  %1292 = vmatpush1.msra.mxu0 0.0
  %1293 = vmatprep.subr.mxu0 0.0
  %1294 = vmatpush1.msra.mxu0 0.0
  %1295 = vmatprep.mubr.f32.mxu0 0.0
  %1296 = vmatmul.mubr.f32.gmra.mrb[0].mxu0 %v1089
  %v1297 = vpop.f32.mrb[0].mxu0
  %v1298 = vadd.f32 %v353, %v1297
  %v1299 = vpop.f32.mrb[0].mxu0
  %1300 = vdwg.mxu0
  %v1302 = vrot.slane %v1158, 2
  %v1304 = vadd.f32 %v138, %v1302
  %v1305 = vxor.u32 %v1304, 2147483648
  %v1306 = vmul.f32 %v1305, 1.442695
  %v1307 = vpow.pop %v1306
  %v1308 = vadd.f32 %v1307, 1.0
  %v1309 = vrcp.pop %v1308
  %v1310 = vmul.f32 1.0, %v1309
  %v1312 = vrot.slane %v1228, 2
  %v1314 = vadd.f32 %v233, %v1312
  %v1315 = vxor.u32 %v1314, 2147483648
  %v1316 = vmul.f32 %v1315, 1.442695
  %v1317 = vpow.pop %v1316
  %v1318 = vadd.f32 %v1317, 1.0
  %v1319 = vrcp.pop %v1318
  %v1320 = vmul.f32 1.0, %v1319
  %v1322 = vrot.slane %v1298, 2
  %v1324 = vmul.f32 %v1310, %v1322
  %v1325 = vadd.f32 %v325, %v1324
  %v1326 = vtanh.pop %v1325
  %v1327 = vsub.f32 1.0, %v1320
  %v1328 = vmul.f32 %v1327, %v1326
  %v1329 = vrot.slane %v1084, 6
  %v1331 = vmul.f32 %v1320, %v1329
  %v1332 = vadd.f32 %v1328, %v1331
  %vm1333 = vcmask 261126
  %1334 = vst.msk [vmem:[#allocation2] sm:$0xc0] %vm1333, %v1332
  %v1336 = vrot.slane %v1332, 6
  %v1337 = vsel %vm355, %v1336, 0
  %1339 = vmatprep.subr.mxu0 0.0
  %1340 = vmatpush1.msra.mxu0 %v333
  %1341 = vmatprep.subr.mxu0 0.0
  %1342 = vmatpush1.msra.mxu0 %v334
  %1343 = vmatprep.subr.mxu0 0.0
  %1344 = vmatpush1.msra.mxu0 %v335
  %1345 = vmatprep.subr.mxu0 0.0
  %1346 = vmatpush1.msra.mxu0 %v336
  %1347 = vmatprep.subr.mxu0 0.0
  %1348 = vmatpush1.msra.mxu0 0.0
  %1349 = vmatprep.subr.mxu0 0.0
  %1350 = vmatpush1.msra.mxu0 0.0
  %1351 = vmatprep.subr.mxu0 0.0
  %1352 = vmatpush1.msra.mxu0 0.0
  %1353 = vmatprep.subr.mxu0 0.0
  %1354 = vmatpush1.msra.mxu0 0.0
  %1355 = vmatprep.subr.mxu0 0.0
  %1356 = vmatpush1.msra.mxu0 0.0
  %1357 = vmatprep.subr.mxu0 0.0
  %1358 = vmatpush1.msra.mxu0 0.0
  %1359 = vmatprep.subr.mxu0 0.0
  %1360 = vmatpush1.msra.mxu0 0.0
  %1361 = vmatprep.subr.mxu0 0.0
  %1362 = vmatpush1.msra.mxu0 0.0
  %1363 = vmatprep.subr.mxu0 0.0
  %1364 = vmatpush1.msra.mxu0 0.0
  %1365 = vmatprep.subr.mxu0 0.0
  %1366 = vmatpush1.msra.mxu0 0.0
  %1367 = vmatprep.subr.mxu0 0.0
  %1368 = vmatpush1.msra.mxu0 0.0
  %1369 = vmatprep.subr.mxu0 0.0
  %1370 = vmatpush1.msra.mxu0 0.0
  %1371 = vmatprep.subr.mxu0 0.0
  %1372 = vmatpush1.msra.mxu0 0.0
  %1373 = vmatprep.subr.mxu0 0.0
  %1374 = vmatpush1.msra.mxu0 0.0
  %1375 = vmatprep.subr.mxu0 0.0
  %1376 = vmatpush1.msra.mxu0 0.0
  %1377 = vmatprep.subr.mxu0 0.0
  %1378 = vmatpush1.msra.mxu0 0.0
  %1379 = vmatprep.subr.mxu0 0.0
  %1380 = vmatpush1.msra.mxu0 0.0
  %1381 = vmatprep.subr.mxu0 0.0
  %1382 = vmatpush1.msra.mxu0 0.0
  %1383 = vmatprep.subr.mxu0 0.0
  %1384 = vmatpush1.msra.mxu0 0.0
  %1385 = vmatprep.subr.mxu0 0.0
  %1386 = vmatpush1.msra.mxu0 0.0
  %1387 = vmatprep.subr.mxu0 0.0
  %1388 = vmatpush1.msra.mxu0 0.0
  %1389 = vmatprep.subr.mxu0 0.0
  %1390 = vmatpush1.msra.mxu0 0.0
  %1391 = vmatprep.subr.mxu0 0.0
  %1392 = vmatpush1.msra.mxu0 0.0
  %1393 = vmatprep.subr.mxu0 0.0
  %1394 = vmatpush1.msra.mxu0 0.0
  %1395 = vmatprep.subr.mxu0 0.0
  %1396 = vmatpush1.msra.mxu0 0.0
  %1397 = vmatprep.subr.mxu0 0.0
  %1398 = vmatpush1.msra.mxu0 0.0
  %1399 = vmatprep.subr.mxu0 0.0
  %1400 = vmatpush1.msra.mxu0 0.0
  %1401 = vmatprep.subr.mxu0 0.0
  %1402 = vmatpush1.msra.mxu0 0.0
  %1403 = vmatprep.mubr.f32.mxu0 0.0
  %1404 = vmatmul.mubr.f32.gmra.mrb[0].mxu0 %v1337
  %v1405 = vpop.f32.mrb[0].mxu0
  %v1406 = vadd.f32 0.0, %v1405
  %v1407 = vpop.f32.mrb[0].mxu0
  %1408 = vdwg.mxu0
  %1409 = vmatprep.subr.mxu0 0.0
  %1410 = vmatpush1.msra.mxu0 %v338
  %1411 = vmatprep.subr.mxu0 0.0
  %1412 = vmatpush1.msra.mxu0 %v339
  %1413 = vmatprep.subr.mxu0 0.0
  %1414 = vmatpush1.msra.mxu0 %v340
  %1415 = vmatprep.subr.mxu0 0.0
  %1416 = vmatpush1.msra.mxu0 %v341
  %1417 = vmatprep.subr.mxu0 0.0
  %1418 = vmatpush1.msra.mxu0 0.0
  %1419 = vmatprep.subr.mxu0 0.0
  %1420 = vmatpush1.msra.mxu0 0.0
  %1421 = vmatprep.subr.mxu0 0.0
  %1422 = vmatpush1.msra.mxu0 0.0
  %1423 = vmatprep.subr.mxu0 0.0
  %1424 = vmatpush1.msra.mxu0 0.0
  %1425 = vmatprep.subr.mxu0 0.0
  %1426 = vmatpush1.msra.mxu0 0.0
  %1427 = vmatprep.subr.mxu0 0.0
  %1428 = vmatpush1.msra.mxu0 0.0
  %1429 = vmatprep.subr.mxu0 0.0
  %1430 = vmatpush1.msra.mxu0 0.0
  %1431 = vmatprep.subr.mxu0 0.0
  %1432 = vmatpush1.msra.mxu0 0.0
  %1433 = vmatprep.subr.mxu0 0.0
  %1434 = vmatpush1.msra.mxu0 0.0
  %1435 = vmatprep.subr.mxu0 0.0
  %1436 = vmatpush1.msra.mxu0 0.0
  %1437 = vmatprep.subr.mxu0 0.0
  %1438 = vmatpush1.msra.mxu0 0.0
  %1439 = vmatprep.subr.mxu0 0.0
  %1440 = vmatpush1.msra.mxu0 0.0
  %1441 = vmatprep.subr.mxu0 0.0
  %1442 = vmatpush1.msra.mxu0 0.0
  %1443 = vmatprep.subr.mxu0 0.0
  %1444 = vmatpush1.msra.mxu0 0.0
  %1445 = vmatprep.subr.mxu0 0.0
  %1446 = vmatpush1.msra.mxu0 0.0
  %1447 = vmatprep.subr.mxu0 0.0
  %1448 = vmatpush1.msra.mxu0 0.0
  %1449 = vmatprep.subr.mxu0 0.0
  %1450 = vmatpush1.msra.mxu0 0.0
  %1451 = vmatprep.subr.mxu0 0.0
  %1452 = vmatpush1.msra.mxu0 0.0
  %1453 = vmatprep.subr.mxu0 0.0
  %1454 = vmatpush1.msra.mxu0 0.0
  %1455 = vmatprep.subr.mxu0 0.0
  %1456 = vmatpush1.msra.mxu0 0.0
  %1457 = vmatprep.subr.mxu0 0.0
  %1458 = vmatpush1.msra.mxu0 0.0
  %1459 = vmatprep.subr.mxu0 0.0
  %1460 = vmatpush1.msra.mxu0 0.0
  %1461 = vmatprep.subr.mxu0 0.0
  %1462 = vmatpush1.msra.mxu0 0.0
  %1463 = vmatprep.subr.mxu0 0.0
  %1464 = vmatpush1.msra.mxu0 0.0
  %1465 = vmatprep.subr.mxu0 0.0
  %1466 = vmatpush1.msra.mxu0 0.0
  %1467 = vmatprep.subr.mxu0 0.0
  %1468 = vmatpush1.msra.mxu0 0.0
  %1469 = vmatprep.subr.mxu0 0.0
  %1470 = vmatpush1.msra.mxu0 0.0
  %1471 = vmatprep.subr.mxu0 0.0
  %1472 = vmatpush1.msra.mxu0 0.0
  %1473 = vmatprep.mubr.f32.mxu0 0.0
  %1474 = vmatmul.mubr.f32.gmra.mrb[0].mxu0 %v1337
  %v1475 = vpop.f32.mrb[0].mxu0
  %v1476 = vadd.f32 0.0, %v1475
  %v1477 = vpop.f32.mrb[0].mxu0
  %1478 = vdwg.mxu0
  %1479 = vmatprep.subr.mxu0 0.0
  %1480 = vmatpush1.msra.mxu0 %v343
  %1481 = vmatprep.subr.mxu0 0.0
  %1482 = vmatpush1.msra.mxu0 %v344
  %1483 = vmatprep.subr.mxu0 0.0
  %1484 = vmatpush1.msra.mxu0 %v345
  %1485 = vmatprep.subr.mxu0 0.0
  %1486 = vmatpush1.msra.mxu0 %v346
  %1487 = vmatprep.subr.mxu0 0.0
  %1488 = vmatpush1.msra.mxu0 0.0
  %1489 = vmatprep.subr.mxu0 0.0
  %1490 = vmatpush1.msra.mxu0 0.0
  %1491 = vmatprep.subr.mxu0 0.0
  %1492 = vmatpush1.msra.mxu0 0.0
  %1493 = vmatprep.subr.mxu0 0.0
  %1494 = vmatpush1.msra.mxu0 0.0
  %1495 = vmatprep.subr.mxu0 0.0
  %1496 = vmatpush1.msra.mxu0 0.0
  %1497 = vmatprep.subr.mxu0 0.0
  %1498 = vmatpush1.msra.mxu0 0.0
  %1499 = vmatprep.subr.mxu0 0.0
  %1500 = vmatpush1.msra.mxu0 0.0
  %1501 = vmatprep.subr.mxu0 0.0
  %1502 = vmatpush1.msra.mxu0 0.0
  %1503 = vmatprep.subr.mxu0 0.0
  %1504 = vmatpush1.msra.mxu0 0.0
  %1505 = vmatprep.subr.mxu0 0.0
  %1506 = vmatpush1.msra.mxu0 0.0
  %1507 = vmatprep.subr.mxu0 0.0
  %1508 = vmatpush1.msra.mxu0 0.0
  %1509 = vmatprep.subr.mxu0 0.0
  %1510 = vmatpush1.msra.mxu0 0.0
  %1511 = vmatprep.subr.mxu0 0.0
  %1512 = vmatpush1.msra.mxu0 0.0
  %1513 = vmatprep.subr.mxu0 0.0
  %1514 = vmatpush1.msra.mxu0 0.0
  %1515 = vmatprep.subr.mxu0 0.0
  %1516 = vmatpush1.msra.mxu0 0.0
  %1517 = vmatprep.subr.mxu0 0.0
  %1518 = vmatpush1.msra.mxu0 0.0
  %1519 = vmatprep.subr.mxu0 0.0
  %1520 = vmatpush1.msra.mxu0 0.0
  %1521 = vmatprep.subr.mxu0 0.0
  %1522 = vmatpush1.msra.mxu0 0.0
  %1523 = vmatprep.subr.mxu0 0.0
  %1524 = vmatpush1.msra.mxu0 0.0
  %1525 = vmatprep.subr.mxu0 0.0
  %1526 = vmatpush1.msra.mxu0 0.0
  %1527 = vmatprep.subr.mxu0 0.0
  %1528 = vmatpush1.msra.mxu0 0.0
  %1529 = vmatprep.subr.mxu0 0.0
  %1530 = vmatpush1.msra.mxu0 0.0
  %1531 = vmatprep.subr.mxu0 0.0
  %1532 = vmatpush1.msra.mxu0 0.0
  %1533 = vmatprep.subr.mxu0 0.0
  %1534 = vmatpush1.msra.mxu0 0.0
  %1535 = vmatprep.subr.mxu0 0.0
  %1536 = vmatpush1.msra.mxu0 0.0
  %1537 = vmatprep.subr.mxu0 0.0
  %1538 = vmatpush1.msra.mxu0 0.0
  %1539 = vmatprep.subr.mxu0 0.0
  %1540 = vmatpush1.msra.mxu0 0.0
  %1541 = vmatprep.subr.mxu0 0.0
  %1542 = vmatpush1.msra.mxu0 0.0
  %1543 = vmatprep.mubr.f32.mxu0 0.0
  %1544 = vmatmul.mubr.f32.gmra.mrb[0].mxu0 %v1337
  %v1545 = vpop.f32.mrb[0].mxu0
  %v1546 = vadd.f32 %v353, %v1545
  %v1547 = vpop.f32.mrb[0].mxu0
  %1548 = vdwg.mxu0
  %v1549 = vadd.f32 %v143, %v1406
  %v1550 = vxor.u32 %v1549, 2147483648
  %v1551 = vmul.f32 %v1550, 1.442695
  %v1552 = vpow.pop %v1551
  %v1553 = vadd.f32 %v1552, 1.0
  %v1554 = vrcp.pop %v1553
  %v1555 = vmul.f32 1.0, %v1554
  %v1556 = vadd.f32 %v238, %v1476
  %v1557 = vxor.u32 %v1556, 2147483648
  %v1558 = vmul.f32 %v1557, 1.442695
  %v1559 = vpow.pop %v1558
  %v1560 = vadd.f32 %v1559, 1.0
  %v1561 = vrcp.pop %v1560
  %v1562 = vmul.f32 1.0, %v1561
  %v1563 = vmul.f32 %v1555, %v1546
  %v1564 = vadd.f32 %v330, %v1563
  %v1565 = vtanh.pop %v1564
  %v1566 = vsub.f32 1.0, %v1562
  %v1567 = vmul.f32 %v1566, %v1565
  %v1569 = vmul.f32 %v1562, %v1336
  %v1570 = vadd.f32 %v1567, %v1569
  %1571 = vst.msk [vmem:[#allocation2 + $0x8] sm:$0x3] %vm590, %v1570
  %v1573 = vsel %vm355, %v1570, 0
  %1575 = vmatprep.subr.mxu0 0.0
  %1576 = vmatpush1.msra.mxu0 %v333
  %1577 = vmatprep.subr.mxu0 0.0
  %1578 = vmatpush1.msra.mxu0 %v334
  %1579 = vmatprep.subr.mxu0 0.0
  %1580 = vmatpush1.msra.mxu0 %v335
  %1581 = vmatprep.subr.mxu0 0.0
  %1582 = vmatpush1.msra.mxu0 %v336
  %1583 = vmatprep.subr.mxu0 0.0
  %1584 = vmatpush1.msra.mxu0 0.0
  %1585 = vmatprep.subr.mxu0 0.0
  %1586 = vmatpush1.msra.mxu0 0.0
  %1587 = vmatprep.subr.mxu0 0.0
  %1588 = vmatpush1.msra.mxu0 0.0
  %1589 = vmatprep.subr.mxu0 0.0
  %1590 = vmatpush1.msra.mxu0 0.0
  %1591 = vmatprep.subr.mxu0 0.0
  %1592 = vmatpush1.msra.mxu0 0.0
  %1593 = vmatprep.subr.mxu0 0.0
  %1594 = vmatpush1.msra.mxu0 0.0
  %1595 = vmatprep.subr.mxu0 0.0
  %1596 = vmatpush1.msra.mxu0 0.0
  %1597 = vmatprep.subr.mxu0 0.0
  %1598 = vmatpush1.msra.mxu0 0.0
  %1599 = vmatprep.subr.mxu0 0.0
  %1600 = vmatpush1.msra.mxu0 0.0
  %1601 = vmatprep.subr.mxu0 0.0
  %1602 = vmatpush1.msra.mxu0 0.0
  %1603 = vmatprep.subr.mxu0 0.0
  %1604 = vmatpush1.msra.mxu0 0.0
  %1605 = vmatprep.subr.mxu0 0.0
  %1606 = vmatpush1.msra.mxu0 0.0
  %1607 = vmatprep.subr.mxu0 0.0
  %1608 = vmatpush1.msra.mxu0 0.0
  %1609 = vmatprep.subr.mxu0 0.0
  %1610 = vmatpush1.msra.mxu0 0.0
  %1611 = vmatprep.subr.mxu0 0.0
  %1612 = vmatpush1.msra.mxu0 0.0
  %1613 = vmatprep.subr.mxu0 0.0
  %1614 = vmatpush1.msra.mxu0 0.0
  %1615 = vmatprep.subr.mxu0 0.0
  %1616 = vmatpush1.msra.mxu0 0.0
  %1617 = vmatprep.subr.mxu0 0.0
  %1618 = vmatpush1.msra.mxu0 0.0
  %1619 = vmatprep.subr.mxu0 0.0
  %1620 = vmatpush1.msra.mxu0 0.0
  %1621 = vmatprep.subr.mxu0 0.0
  %1622 = vmatpush1.msra.mxu0 0.0
  %1623 = vmatprep.subr.mxu0 0.0
  %1624 = vmatpush1.msra.mxu0 0.0
  %1625 = vmatprep.subr.mxu0 0.0
  %1626 = vmatpush1.msra.mxu0 0.0
  %1627 = vmatprep.subr.mxu0 0.0
  %1628 = vmatpush1.msra.mxu0 0.0
  %1629 = vmatprep.subr.mxu0 0.0
  %1630 = vmatpush1.msra.mxu0 0.0
  %1631 = vmatprep.subr.mxu0 0.0
  %1632 = vmatpush1.msra.mxu0 0.0
  %1633 = vmatprep.subr.mxu0 0.0
  %1634 = vmatpush1.msra.mxu0 0.0
  %1635 = vmatprep.subr.mxu0 0.0
  %1636 = vmatpush1.msra.mxu0 0.0
  %1637 = vmatprep.subr.mxu0 0.0
  %1638 = vmatpush1.msra.mxu0 0.0
  %1639 = vmatprep.mubr.f32.mxu0 0.0
  %1640 = vmatmul.mubr.f32.gmra.mrb[0].mxu0 %v1573
  %v1641 = vpop.f32.mrb[0].mxu0
  %v1642 = vadd.f32 0.0, %v1641
  %v1643 = vpop.f32.mrb[0].mxu0
  %1644 = vdwg.mxu0
  %1645 = vmatprep.subr.mxu0 0.0
  %1646 = vmatpush1.msra.mxu0 %v338
  %1647 = vmatprep.subr.mxu0 0.0
  %1648 = vmatpush1.msra.mxu0 %v339
  %1649 = vmatprep.subr.mxu0 0.0
  %1650 = vmatpush1.msra.mxu0 %v340
  %1651 = vmatprep.subr.mxu0 0.0
  %1652 = vmatpush1.msra.mxu0 %v341
  %1653 = vmatprep.subr.mxu0 0.0
  %1654 = vmatpush1.msra.mxu0 0.0
  %1655 = vmatprep.subr.mxu0 0.0
  %1656 = vmatpush1.msra.mxu0 0.0
  %1657 = vmatprep.subr.mxu0 0.0
  %1658 = vmatpush1.msra.mxu0 0.0
  %1659 = vmatprep.subr.mxu0 0.0
  %1660 = vmatpush1.msra.mxu0 0.0
  %1661 = vmatprep.subr.mxu0 0.0
  %1662 = vmatpush1.msra.mxu0 0.0
  %1663 = vmatprep.subr.mxu0 0.0
  %1664 = vmatpush1.msra.mxu0 0.0
  %1665 = vmatprep.subr.mxu0 0.0
  %1666 = vmatpush1.msra.mxu0 0.0
  %1667 = vmatprep.subr.mxu0 0.0
  %1668 = vmatpush1.msra.mxu0 0.0
  %1669 = vmatprep.subr.mxu0 0.0
  %1670 = vmatpush1.msra.mxu0 0.0
  %1671 = vmatprep.subr.mxu0 0.0
  %1672 = vmatpush1.msra.mxu0 0.0
  %1673 = vmatprep.subr.mxu0 0.0
  %1674 = vmatpush1.msra.mxu0 0.0
  %1675 = vmatprep.subr.mxu0 0.0
  %1676 = vmatpush1.msra.mxu0 0.0
  %1677 = vmatprep.subr.mxu0 0.0
  %1678 = vmatpush1.msra.mxu0 0.0
  %1679 = vmatprep.subr.mxu0 0.0
  %1680 = vmatpush1.msra.mxu0 0.0
  %1681 = vmatprep.subr.mxu0 0.0
  %1682 = vmatpush1.msra.mxu0 0.0
  %1683 = vmatprep.subr.mxu0 0.0
  %1684 = vmatpush1.msra.mxu0 0.0
  %1685 = vmatprep.subr.mxu0 0.0
  %1686 = vmatpush1.msra.mxu0 0.0
  %1687 = vmatprep.subr.mxu0 0.0
  %1688 = vmatpush1.msra.mxu0 0.0
  %1689 = vmatprep.subr.mxu0 0.0
  %1690 = vmatpush1.msra.mxu0 0.0
  %1691 = vmatprep.subr.mxu0 0.0
  %1692 = vmatpush1.msra.mxu0 0.0
  %1693 = vmatprep.subr.mxu0 0.0
  %1694 = vmatpush1.msra.mxu0 0.0
  %1695 = vmatprep.subr.mxu0 0.0
  %1696 = vmatpush1.msra.mxu0 0.0
  %1697 = vmatprep.subr.mxu0 0.0
  %1698 = vmatpush1.msra.mxu0 0.0
  %1699 = vmatprep.subr.mxu0 0.0
  %1700 = vmatpush1.msra.mxu0 0.0
  %1701 = vmatprep.subr.mxu0 0.0
  %1702 = vmatpush1.msra.mxu0 0.0
  %1703 = vmatprep.subr.mxu0 0.0
  %1704 = vmatpush1.msra.mxu0 0.0
  %1705 = vmatprep.subr.mxu0 0.0
  %1706 = vmatpush1.msra.mxu0 0.0
  %1707 = vmatprep.subr.mxu0 0.0
  %1708 = vmatpush1.msra.mxu0 0.0
  %1709 = vmatprep.mubr.f32.mxu0 0.0
  %1710 = vmatmul.mubr.f32.gmra.mrb[0].mxu0 %v1573
  %v1711 = vpop.f32.mrb[0].mxu0
  %v1712 = vadd.f32 0.0, %v1711
  %v1713 = vpop.f32.mrb[0].mxu0
  %1714 = vdwg.mxu0
  %1715 = vmatprep.subr.mxu0 0.0
  %1716 = vmatpush1.msra.mxu0 %v343
  %1717 = vmatprep.subr.mxu0 0.0
  %1718 = vmatpush1.msra.mxu0 %v344
  %1719 = vmatprep.subr.mxu0 0.0
  %1720 = vmatpush1.msra.mxu0 %v345
  %1721 = vmatprep.subr.mxu0 0.0
  %1722 = vmatpush1.msra.mxu0 %v346
  %1723 = vmatprep.subr.mxu0 0.0
  %1724 = vmatpush1.msra.mxu0 0.0
  %1725 = vmatprep.subr.mxu0 0.0
  %1726 = vmatpush1.msra.mxu0 0.0
  %1727 = vmatprep.subr.mxu0 0.0
  %1728 = vmatpush1.msra.mxu0 0.0
  %1729 = vmatprep.subr.mxu0 0.0
  %1730 = vmatpush1.msra.mxu0 0.0
  %1731 = vmatprep.subr.mxu0 0.0
  %1732 = vmatpush1.msra.mxu0 0.0
  %1733 = vmatprep.subr.mxu0 0.0
  %1734 = vmatpush1.msra.mxu0 0.0
  %1735 = vmatprep.subr.mxu0 0.0
  %1736 = vmatpush1.msra.mxu0 0.0
  %1737 = vmatprep.subr.mxu0 0.0
  %1738 = vmatpush1.msra.mxu0 0.0
  %1739 = vmatprep.subr.mxu0 0.0
  %1740 = vmatpush1.msra.mxu0 0.0
  %1741 = vmatprep.subr.mxu0 0.0
  %1742 = vmatpush1.msra.mxu0 0.0
  %1743 = vmatprep.subr.mxu0 0.0
  %1744 = vmatpush1.msra.mxu0 0.0
  %1745 = vmatprep.subr.mxu0 0.0
  %1746 = vmatpush1.msra.mxu0 0.0
  %1747 = vmatprep.subr.mxu0 0.0
  %1748 = vmatpush1.msra.mxu0 0.0
  %1749 = vmatprep.subr.mxu0 0.0
  %1750 = vmatpush1.msra.mxu0 0.0
  %1751 = vmatprep.subr.mxu0 0.0
  %1752 = vmatpush1.msra.mxu0 0.0
  %1753 = vmatprep.subr.mxu0 0.0
  %1754 = vmatpush1.msra.mxu0 0.0
  %1755 = vmatprep.subr.mxu0 0.0
  %1756 = vmatpush1.msra.mxu0 0.0
  %1757 = vmatprep.subr.mxu0 0.0
  %1758 = vmatpush1.msra.mxu0 0.0
  %1759 = vmatprep.subr.mxu0 0.0
  %1760 = vmatpush1.msra.mxu0 0.0
  %1761 = vmatprep.subr.mxu0 0.0
  %1762 = vmatpush1.msra.mxu0 0.0
  %1763 = vmatprep.subr.mxu0 0.0
  %1764 = vmatpush1.msra.mxu0 0.0
  %1765 = vmatprep.subr.mxu0 0.0
  %1766 = vmatpush1.msra.mxu0 0.0
  %1767 = vmatprep.subr.mxu0 0.0
  %1768 = vmatpush1.msra.mxu0 0.0
  %1769 = vmatprep.subr.mxu0 0.0
  %1770 = vmatpush1.msra.mxu0 0.0
  %1771 = vmatprep.subr.mxu0 0.0
  %1772 = vmatpush1.msra.mxu0 0.0
  %1773 = vmatprep.subr.mxu0 0.0
  %1774 = vmatpush1.msra.mxu0 0.0
  %1775 = vmatprep.subr.mxu0 0.0
  %1776 = vmatpush1.msra.mxu0 0.0
  %1777 = vmatprep.subr.mxu0 0.0
  %1778 = vmatpush1.msra.mxu0 0.0
  %1779 = vmatprep.mubr.f32.mxu0 0.0
  %1780 = vmatmul.mubr.f32.gmra.mrb[0].mxu0 %v1573
  %v1781 = vpop.f32.mrb[0].mxu0
  %v1782 = vadd.f32 %v353, %v1781
  %v1783 = vpop.f32.mrb[0].mxu0
  %1784 = vdwg.mxu0
  %v1786 = vrot.slane %v1642, 6
  %v1788 = vadd.f32 %v143, %v1786
  %v1789 = vxor.u32 %v1788, 2147483648
  %v1790 = vmul.f32 %v1789, 1.442695
  %v1791 = vpow.pop %v1790
  %v1792 = vadd.f32 %v1791, 1.0
  %v1793 = vrcp.pop %v1792
  %v1794 = vmul.f32 1.0, %v1793
  %v1796 = vrot.slane %v1712, 6
  %v1798 = vadd.f32 %v238, %v1796
  %v1799 = vxor.u32 %v1798, 2147483648
  %v1800 = vmul.f32 %v1799, 1.442695
  %v1801 = vpow.pop %v1800
  %v1802 = vadd.f32 %v1801, 1.0
  %v1803 = vrcp.pop %v1802
  %v1804 = vmul.f32 1.0, %v1803
  %v1806 = vrot.slane %v1782, 6
  %v1808 = vmul.f32 %v1794, %v1806
  %v1809 = vadd.f32 %v330, %v1808
  %v1810 = vtanh.pop %v1809
  %v1811 = vsub.f32 1.0, %v1804
  %v1812 = vmul.f32 %v1811, %v1810
  %v1813 = vrot.slane %v1570, 6
  %v1815 = vmul.f32 %v1804, %v1813
  %v1816 = vadd.f32 %v1812, %v1815
  %1817 = vst.msk [vmem:[#allocation2 + $0x8] sm:$0xc] %vm837, %v1816
  %v1819 = vrot.slane %v1816, 2
  %v1820 = vsel %vm355, %v1819, 0
  %1822 = vmatprep.subr.mxu0 0.0
  %1823 = vmatpush1.msra.mxu0 %v333
  %1824 = vmatprep.subr.mxu0 0.0
  %1825 = vmatpush1.msra.mxu0 %v334
  %1826 = vmatprep.subr.mxu0 0.0
  %1827 = vmatpush1.msra.mxu0 %v335
  %1828 = vmatprep.subr.mxu0 0.0
  %1829 = vmatpush1.msra.mxu0 %v336
  %1830 = vmatprep.subr.mxu0 0.0
  %1831 = vmatpush1.msra.mxu0 0.0
  %1832 = vmatprep.subr.mxu0 0.0
  %1833 = vmatpush1.msra.mxu0 0.0
  %1834 = vmatprep.subr.mxu0 0.0
  %1835 = vmatpush1.msra.mxu0 0.0
  %1836 = vmatprep.subr.mxu0 0.0
  %1837 = vmatpush1.msra.mxu0 0.0
  %1838 = vmatprep.subr.mxu0 0.0
  %1839 = vmatpush1.msra.mxu0 0.0
  %1840 = vmatprep.subr.mxu0 0.0
  %1841 = vmatpush1.msra.mxu0 0.0
  %1842 = vmatprep.subr.mxu0 0.0
  %1843 = vmatpush1.msra.mxu0 0.0
  %1844 = vmatprep.subr.mxu0 0.0
  %1845 = vmatpush1.msra.mxu0 0.0
  %1846 = vmatprep.subr.mxu0 0.0
  %1847 = vmatpush1.msra.mxu0 0.0
  %1848 = vmatprep.subr.mxu0 0.0
  %1849 = vmatpush1.msra.mxu0 0.0
  %1850 = vmatprep.subr.mxu0 0.0
  %1851 = vmatpush1.msra.mxu0 0.0
  %1852 = vmatprep.subr.mxu0 0.0
  %1853 = vmatpush1.msra.mxu0 0.0
  %1854 = vmatprep.subr.mxu0 0.0
  %1855 = vmatpush1.msra.mxu0 0.0
  %1856 = vmatprep.subr.mxu0 0.0
  %1857 = vmatpush1.msra.mxu0 0.0
  %1858 = vmatprep.subr.mxu0 0.0
  %1859 = vmatpush1.msra.mxu0 0.0
  %1860 = vmatprep.subr.mxu0 0.0
  %1861 = vmatpush1.msra.mxu0 0.0
  %1862 = vmatprep.subr.mxu0 0.0
  %1863 = vmatpush1.msra.mxu0 0.0
  %1864 = vmatprep.subr.mxu0 0.0
  %1865 = vmatpush1.msra.mxu0 0.0
  %1866 = vmatprep.subr.mxu0 0.0
  %1867 = vmatpush1.msra.mxu0 0.0
  %1868 = vmatprep.subr.mxu0 0.0
  %1869 = vmatpush1.msra.mxu0 0.0
  %1870 = vmatprep.subr.mxu0 0.0
  %1871 = vmatpush1.msra.mxu0 0.0
  %1872 = vmatprep.subr.mxu0 0.0
  %1873 = vmatpush1.msra.mxu0 0.0
  %1874 = vmatprep.subr.mxu0 0.0
  %1875 = vmatpush1.msra.mxu0 0.0
  %1876 = vmatprep.subr.mxu0 0.0
  %1877 = vmatpush1.msra.mxu0 0.0
  %1878 = vmatprep.subr.mxu0 0.0
  %1879 = vmatpush1.msra.mxu0 0.0
  %1880 = vmatprep.subr.mxu0 0.0
  %1881 = vmatpush1.msra.mxu0 0.0
  %1882 = vmatprep.subr.mxu0 0.0
  %1883 = vmatpush1.msra.mxu0 0.0
  %1884 = vmatprep.subr.mxu0 0.0
  %1885 = vmatpush1.msra.mxu0 0.0
  %1886 = vmatprep.mubr.f32.mxu0 0.0
  %1887 = vmatmul.mubr.f32.gmra.mrb[0].mxu0 %v1820
  %v1888 = vpop.f32.mrb[0].mxu0
  %v1889 = vadd.f32 0.0, %v1888
  %v1890 = vpop.f32.mrb[0].mxu0
  %1891 = vdwg.mxu0
  %1892 = vmatprep.subr.mxu0 0.0
  %1893 = vmatpush1.msra.mxu0 %v338
  %1894 = vmatprep.subr.mxu0 0.0
  %1895 = vmatpush1.msra.mxu0 %v339
  %1896 = vmatprep.subr.mxu0 0.0
  %1897 = vmatpush1.msra.mxu0 %v340
  %1898 = vmatprep.subr.mxu0 0.0
  %1899 = vmatpush1.msra.mxu0 %v341
  %1900 = vmatprep.subr.mxu0 0.0
  %1901 = vmatpush1.msra.mxu0 0.0
  %1902 = vmatprep.subr.mxu0 0.0
  %1903 = vmatpush1.msra.mxu0 0.0
  %1904 = vmatprep.subr.mxu0 0.0
  %1905 = vmatpush1.msra.mxu0 0.0
  %1906 = vmatprep.subr.mxu0 0.0
  %1907 = vmatpush1.msra.mxu0 0.0
  %1908 = vmatprep.subr.mxu0 0.0
  %1909 = vmatpush1.msra.mxu0 0.0
  %1910 = vmatprep.subr.mxu0 0.0
  %1911 = vmatpush1.msra.mxu0 0.0
  %1912 = vmatprep.subr.mxu0 0.0
  %1913 = vmatpush1.msra.mxu0 0.0
  %1914 = vmatprep.subr.mxu0 0.0
  %1915 = vmatpush1.msra.mxu0 0.0
  %1916 = vmatprep.subr.mxu0 0.0
  %1917 = vmatpush1.msra.mxu0 0.0
  %1918 = vmatprep.subr.mxu0 0.0
  %1919 = vmatpush1.msra.mxu0 0.0
  %1920 = vmatprep.subr.mxu0 0.0
  %1921 = vmatpush1.msra.mxu0 0.0
  %1922 = vmatprep.subr.mxu0 0.0
  %1923 = vmatpush1.msra.mxu0 0.0
  %1924 = vmatprep.subr.mxu0 0.0
  %1925 = vmatpush1.msra.mxu0 0.0
  %1926 = vmatprep.subr.mxu0 0.0
  %1927 = vmatpush1.msra.mxu0 0.0
  %1928 = vmatprep.subr.mxu0 0.0
  %1929 = vmatpush1.msra.mxu0 0.0
  %1930 = vmatprep.subr.mxu0 0.0
  %1931 = vmatpush1.msra.mxu0 0.0
  %1932 = vmatprep.subr.mxu0 0.0
  %1933 = vmatpush1.msra.mxu0 0.0
  %1934 = vmatprep.subr.mxu0 0.0
  %1935 = vmatpush1.msra.mxu0 0.0
  %1936 = vmatprep.subr.mxu0 0.0
  %1937 = vmatpush1.msra.mxu0 0.0
  %1938 = vmatprep.subr.mxu0 0.0
  %1939 = vmatpush1.msra.mxu0 0.0
  %1940 = vmatprep.subr.mxu0 0.0
  %1941 = vmatpush1.msra.mxu0 0.0
  %1942 = vmatprep.subr.mxu0 0.0
  %1943 = vmatpush1.msra.mxu0 0.0
  %1944 = vmatprep.subr.mxu0 0.0
  %1945 = vmatpush1.msra.mxu0 0.0
  %1946 = vmatprep.subr.mxu0 0.0
  %1947 = vmatpush1.msra.mxu0 0.0
  %1948 = vmatprep.subr.mxu0 0.0
  %1949 = vmatpush1.msra.mxu0 0.0
  %1950 = vmatprep.subr.mxu0 0.0
  %1951 = vmatpush1.msra.mxu0 0.0
  %1952 = vmatprep.subr.mxu0 0.0
  %1953 = vmatpush1.msra.mxu0 0.0
  %1954 = vmatprep.subr.mxu0 0.0
  %1955 = vmatpush1.msra.mxu0 0.0
  %1956 = vmatprep.mubr.f32.mxu0 0.0
  %1957 = vmatmul.mubr.f32.gmra.mrb[0].mxu0 %v1820
  %v1958 = vpop.f32.mrb[0].mxu0
  %v1959 = vadd.f32 0.0, %v1958
  %v1960 = vpop.f32.mrb[0].mxu0
  %1961 = vdwg.mxu0
  %1962 = vmatprep.subr.mxu0 0.0
  %1963 = vmatpush1.msra.mxu0 %v343
  %1964 = vmatprep.subr.mxu0 0.0
  %1965 = vmatpush1.msra.mxu0 %v344
  %1966 = vmatprep.subr.mxu0 0.0
  %1967 = vmatpush1.msra.mxu0 %v345
  %1968 = vmatprep.subr.mxu0 0.0
  %1969 = vmatpush1.msra.mxu0 %v346
  %1970 = vmatprep.subr.mxu0 0.0
  %1971 = vmatpush1.msra.mxu0 0.0
  %1972 = vmatprep.subr.mxu0 0.0
  %1973 = vmatpush1.msra.mxu0 0.0
  %1974 = vmatprep.subr.mxu0 0.0
  %1975 = vmatpush1.msra.mxu0 0.0
  %1976 = vmatprep.subr.mxu0 0.0
  %1977 = vmatpush1.msra.mxu0 0.0
  %1978 = vmatprep.subr.mxu0 0.0
  %1979 = vmatpush1.msra.mxu0 0.0
  %1980 = vmatprep.subr.mxu0 0.0
  %1981 = vmatpush1.msra.mxu0 0.0
  %1982 = vmatprep.subr.mxu0 0.0
  %1983 = vmatpush1.msra.mxu0 0.0
  %1984 = vmatprep.subr.mxu0 0.0
  %1985 = vmatpush1.msra.mxu0 0.0
  %1986 = vmatprep.subr.mxu0 0.0
  %1987 = vmatpush1.msra.mxu0 0.0
  %1988 = vmatprep.subr.mxu0 0.0
  %1989 = vmatpush1.msra.mxu0 0.0
  %1990 = vmatprep.subr.mxu0 0.0
  %1991 = vmatpush1.msra.mxu0 0.0
  %1992 = vmatprep.subr.mxu0 0.0
  %1993 = vmatpush1.msra.mxu0 0.0
  %1994 = vmatprep.subr.mxu0 0.0
  %1995 = vmatpush1.msra.mxu0 0.0
  %1996 = vmatprep.subr.mxu0 0.0
  %1997 = vmatpush1.msra.mxu0 0.0
  %1998 = vmatprep.subr.mxu0 0.0
  %1999 = vmatpush1.msra.mxu0 0.0
  %2000 = vmatprep.subr.mxu0 0.0
  %2001 = vmatpush1.msra.mxu0 0.0
  %2002 = vmatprep.subr.mxu0 0.0
  %2003 = vmatpush1.msra.mxu0 0.0
  %2004 = vmatprep.subr.mxu0 0.0
  %2005 = vmatpush1.msra.mxu0 0.0
  %2006 = vmatprep.subr.mxu0 0.0
  %2007 = vmatpush1.msra.mxu0 0.0
  %2008 = vmatprep.subr.mxu0 0.0
  %2009 = vmatpush1.msra.mxu0 0.0
  %2010 = vmatprep.subr.mxu0 0.0
  %2011 = vmatpush1.msra.mxu0 0.0
  %2012 = vmatprep.subr.mxu0 0.0
  %2013 = vmatpush1.msra.mxu0 0.0
  %2014 = vmatprep.subr.mxu0 0.0
  %2015 = vmatpush1.msra.mxu0 0.0
  %2016 = vmatprep.subr.mxu0 0.0
  %2017 = vmatpush1.msra.mxu0 0.0
  %2018 = vmatprep.subr.mxu0 0.0
  %2019 = vmatpush1.msra.mxu0 0.0
  %2020 = vmatprep.subr.mxu0 0.0
  %2021 = vmatpush1.msra.mxu0 0.0
  %2022 = vmatprep.subr.mxu0 0.0
  %2023 = vmatpush1.msra.mxu0 0.0
  %2024 = vmatprep.subr.mxu0 0.0
  %2025 = vmatpush1.msra.mxu0 0.0
  %2026 = vmatprep.mubr.f32.mxu0 0.0
  %2027 = vmatmul.mubr.f32.gmra.mrb[0].mxu0 %v1820
  %v2028 = vpop.f32.mrb[0].mxu0
  %v2029 = vadd.f32 %v353, %v2028
  %v2030 = vpop.f32.mrb[0].mxu0
  %2031 = vdwg.mxu0
  %v2033 = vrot.slane %v1889, 4
  %v2035 = vadd.f32 %v143, %v2033
  %v2036 = vxor.u32 %v2035, 2147483648
  %v2037 = vmul.f32 %v2036, 1.442695
  %v2038 = vpow.pop %v2037
  %v2039 = vadd.f32 %v2038, 1.0
  %v2040 = vrcp.pop %v2039
  %v2041 = vmul.f32 1.0, %v2040
  %v2043 = vrot.slane %v1959, 4
  %v2045 = vadd.f32 %v238, %v2043
  %v2046 = vxor.u32 %v2045, 2147483648
  %v2047 = vmul.f32 %v2046, 1.442695
  %v2048 = vpow.pop %v2047
  %v2049 = vadd.f32 %v2048, 1.0
  %v2050 = vrcp.pop %v2049
  %v2051 = vmul.f32 1.0, %v2050
  %v2053 = vrot.slane %v2029, 4
  %v2055 = vmul.f32 %v2041, %v2053
  %v2056 = vadd.f32 %v330, %v2055
  %v2057 = vtanh.pop %v2056
  %v2058 = vsub.f32 1.0, %v2051
  %v2059 = vmul.f32 %v2058, %v2057
  %v2060 = vrot.slane %v1816, 6
  %v2062 = vmul.f32 %v2051, %v2060
  %v2063 = vadd.f32 %v2059, %v2062
  %2064 = vst.msk [vmem:[#allocation2 + $0x8] sm:$0x30] %vm1085, %v2063
  %v2066 = vrot.slane %v2063, 4
  %v2067 = vsel %vm355, %v2066, 0
  %2069 = vmatprep.subr.mxu0 0.0
  %2070 = vmatpush1.msra.mxu0 %v333
  %2071 = vmatprep.subr.mxu0 0.0
  %2072 = vmatpush1.msra.mxu0 %v334
  %2073 = vmatprep.subr.mxu0 0.0
  %2074 = vmatpush1.msra.mxu0 %v335
  %2075 = vmatprep.subr.mxu0 0.0
  %2076 = vmatpush1.msra.mxu0 %v336
  %2077 = vmatprep.subr.mxu0 0.0
  %2078 = vmatpush1.msra.mxu0 0.0
  %2079 = vmatprep.subr.mxu0 0.0
  %2080 = vmatpush1.msra.mxu0 0.0
  %2081 = vmatprep.subr.mxu0 0.0
  %2082 = vmatpush1.msra.mxu0 0.0
  %2083 = vmatprep.subr.mxu0 0.0
  %2084 = vmatpush1.msra.mxu0 0.0
  %2085 = vmatprep.subr.mxu0 0.0
  %2086 = vmatpush1.msra.mxu0 0.0
  %2087 = vmatprep.subr.mxu0 0.0
  %2088 = vmatpush1.msra.mxu0 0.0
  %2089 = vmatprep.subr.mxu0 0.0
  %2090 = vmatpush1.msra.mxu0 0.0
  %2091 = vmatprep.subr.mxu0 0.0
  %2092 = vmatpush1.msra.mxu0 0.0
  %2093 = vmatprep.subr.mxu0 0.0
  %2094 = vmatpush1.msra.mxu0 0.0
  %2095 = vmatprep.subr.mxu0 0.0
  %2096 = vmatpush1.msra.mxu0 0.0
  %2097 = vmatprep.subr.mxu0 0.0
  %2098 = vmatpush1.msra.mxu0 0.0
  %2099 = vmatprep.subr.mxu0 0.0
  %2100 = vmatpush1.msra.mxu0 0.0
  %2101 = vmatprep.subr.mxu0 0.0
  %2102 = vmatpush1.msra.mxu0 0.0
  %2103 = vmatprep.subr.mxu0 0.0
  %2104 = vmatpush1.msra.mxu0 0.0
  %2105 = vmatprep.subr.mxu0 0.0
  %2106 = vmatpush1.msra.mxu0 0.0
  %2107 = vmatprep.subr.mxu0 0.0
  %2108 = vmatpush1.msra.mxu0 0.0
  %2109 = vmatprep.subr.mxu0 0.0
  %2110 = vmatpush1.msra.mxu0 0.0
  %2111 = vmatprep.subr.mxu0 0.0
  %2112 = vmatpush1.msra.mxu0 0.0
  %2113 = vmatprep.subr.mxu0 0.0
  %2114 = vmatpush1.msra.mxu0 0.0
  %2115 = vmatprep.subr.mxu0 0.0
  %2116 = vmatpush1.msra.mxu0 0.0
  %2117 = vmatprep.subr.mxu0 0.0
  %2118 = vmatpush1.msra.mxu0 0.0
  %2119 = vmatprep.subr.mxu0 0.0
  %2120 = vmatpush1.msra.mxu0 0.0
  %2121 = vmatprep.subr.mxu0 0.0
  %2122 = vmatpush1.msra.mxu0 0.0
  %2123 = vmatprep.subr.mxu0 0.0
  %2124 = vmatpush1.msra.mxu0 0.0
  %2125 = vmatprep.subr.mxu0 0.0
  %2126 = vmatpush1.msra.mxu0 0.0
  %2127 = vmatprep.subr.mxu0 0.0
  %2128 = vmatpush1.msra.mxu0 0.0
  %2129 = vmatprep.subr.mxu0 0.0
  %2130 = vmatpush1.msra.mxu0 0.0
  %2131 = vmatprep.subr.mxu0 0.0
  %2132 = vmatpush1.msra.mxu0 0.0
  %2133 = vmatprep.mubr.f32.mxu0 0.0
  %2134 = vmatmul.mubr.f32.gmra.mrb[0].mxu0 %v2067
  %v2135 = vpop.f32.mrb[0].mxu0
  %v2136 = vadd.f32 0.0, %v2135
  %v2137 = vpop.f32.mrb[0].mxu0
  %2138 = vdwg.mxu0
  %2139 = vmatprep.subr.mxu0 0.0
  %2140 = vmatpush1.msra.mxu0 %v338
  %2141 = vmatprep.subr.mxu0 0.0
  %2142 = vmatpush1.msra.mxu0 %v339
  %2143 = vmatprep.subr.mxu0 0.0
  %2144 = vmatpush1.msra.mxu0 %v340
  %2145 = vmatprep.subr.mxu0 0.0
  %2146 = vmatpush1.msra.mxu0 %v341
  %2147 = vmatprep.subr.mxu0 0.0
  %2148 = vmatpush1.msra.mxu0 0.0
  %2149 = vmatprep.subr.mxu0 0.0
  %2150 = vmatpush1.msra.mxu0 0.0
  %2151 = vmatprep.subr.mxu0 0.0
  %2152 = vmatpush1.msra.mxu0 0.0
  %2153 = vmatprep.subr.mxu0 0.0
  %2154 = vmatpush1.msra.mxu0 0.0
  %2155 = vmatprep.subr.mxu0 0.0
  %2156 = vmatpush1.msra.mxu0 0.0
  %2157 = vmatprep.subr.mxu0 0.0
  %2158 = vmatpush1.msra.mxu0 0.0
  %2159 = vmatprep.subr.mxu0 0.0
  %2160 = vmatpush1.msra.mxu0 0.0
  %2161 = vmatprep.subr.mxu0 0.0
  %2162 = vmatpush1.msra.mxu0 0.0
  %2163 = vmatprep.subr.mxu0 0.0
  %2164 = vmatpush1.msra.mxu0 0.0
  %2165 = vmatprep.subr.mxu0 0.0
  %2166 = vmatpush1.msra.mxu0 0.0
  %2167 = vmatprep.subr.mxu0 0.0
  %2168 = vmatpush1.msra.mxu0 0.0
  %2169 = vmatprep.subr.mxu0 0.0
  %2170 = vmatpush1.msra.mxu0 0.0
  %2171 = vmatprep.subr.mxu0 0.0
  %2172 = vmatpush1.msra.mxu0 0.0
  %2173 = vmatprep.subr.mxu0 0.0
  %2174 = vmatpush1.msra.mxu0 0.0
  %2175 = vmatprep.subr.mxu0 0.0
  %2176 = vmatpush1.msra.mxu0 0.0
  %2177 = vmatprep.subr.mxu0 0.0
  %2178 = vmatpush1.msra.mxu0 0.0
  %2179 = vmatprep.subr.mxu0 0.0
  %2180 = vmatpush1.msra.mxu0 0.0
  %2181 = vmatprep.subr.mxu0 0.0
  %2182 = vmatpush1.msra.mxu0 0.0
  %2183 = vmatprep.subr.mxu0 0.0
  %2184 = vmatpush1.msra.mxu0 0.0
  %2185 = vmatprep.subr.mxu0 0.0
  %2186 = vmatpush1.msra.mxu0 0.0
  %2187 = vmatprep.subr.mxu0 0.0
  %2188 = vmatpush1.msra.mxu0 0.0
  %2189 = vmatprep.subr.mxu0 0.0
  %2190 = vmatpush1.msra.mxu0 0.0
  %2191 = vmatprep.subr.mxu0 0.0
  %2192 = vmatpush1.msra.mxu0 0.0
  %2193 = vmatprep.subr.mxu0 0.0
  %2194 = vmatpush1.msra.mxu0 0.0
  %2195 = vmatprep.subr.mxu0 0.0
  %2196 = vmatpush1.msra.mxu0 0.0
  %2197 = vmatprep.subr.mxu0 0.0
  %2198 = vmatpush1.msra.mxu0 0.0
  %2199 = vmatprep.subr.mxu0 0.0
  %2200 = vmatpush1.msra.mxu0 0.0
  %2201 = vmatprep.subr.mxu0 0.0
  %2202 = vmatpush1.msra.mxu0 0.0
  %2203 = vmatprep.mubr.f32.mxu0 0.0
  %2204 = vmatmul.mubr.f32.gmra.mrb[0].mxu0 %v2067
  %v2205 = vpop.f32.mrb[0].mxu0
  %v2206 = vadd.f32 0.0, %v2205
  %v2207 = vpop.f32.mrb[0].mxu0
  %2208 = vdwg.mxu0
  %2209 = vmatprep.subr.mxu0 0.0
  %2210 = vmatpush1.msra.mxu0 %v343
  %2211 = vmatprep.subr.mxu0 0.0
  %2212 = vmatpush1.msra.mxu0 %v344
  %2213 = vmatprep.subr.mxu0 0.0
  %2214 = vmatpush1.msra.mxu0 %v345
  %2215 = vmatprep.subr.mxu0 0.0
  %2216 = vmatpush1.msra.mxu0 %v346
  %2217 = vmatprep.subr.mxu0 0.0
  %2218 = vmatpush1.msra.mxu0 0.0
  %2219 = vmatprep.subr.mxu0 0.0
  %2220 = vmatpush1.msra.mxu0 0.0
  %2221 = vmatprep.subr.mxu0 0.0
  %2222 = vmatpush1.msra.mxu0 0.0
  %2223 = vmatprep.subr.mxu0 0.0
  %2224 = vmatpush1.msra.mxu0 0.0
  %2225 = vmatprep.subr.mxu0 0.0
  %2226 = vmatpush1.msra.mxu0 0.0
  %2227 = vmatprep.subr.mxu0 0.0
  %2228 = vmatpush1.msra.mxu0 0.0
  %2229 = vmatprep.subr.mxu0 0.0
  %2230 = vmatpush1.msra.mxu0 0.0
  %2231 = vmatprep.subr.mxu0 0.0
  %2232 = vmatpush1.msra.mxu0 0.0
  %2233 = vmatprep.subr.mxu0 0.0
  %2234 = vmatpush1.msra.mxu0 0.0
  %2235 = vmatprep.subr.mxu0 0.0
  %2236 = vmatpush1.msra.mxu0 0.0
  %2237 = vmatprep.subr.mxu0 0.0
  %2238 = vmatpush1.msra.mxu0 0.0
  %2239 = vmatprep.subr.mxu0 0.0
  %2240 = vmatpush1.msra.mxu0 0.0
  %2241 = vmatprep.subr.mxu0 0.0
  %2242 = vmatpush1.msra.mxu0 0.0
  %2243 = vmatprep.subr.mxu0 0.0
  %2244 = vmatpush1.msra.mxu0 0.0
  %2245 = vmatprep.subr.mxu0 0.0
  %2246 = vmatpush1.msra.mxu0 0.0
  %2247 = vmatprep.subr.mxu0 0.0
  %2248 = vmatpush1.msra.mxu0 0.0
  %2249 = vmatprep.subr.mxu0 0.0
  %2250 = vmatpush1.msra.mxu0 0.0
  %2251 = vmatprep.subr.mxu0 0.0
  %2252 = vmatpush1.msra.mxu0 0.0
  %2253 = vmatprep.subr.mxu0 0.0
  %2254 = vmatpush1.msra.mxu0 0.0
  %2255 = vmatprep.subr.mxu0 0.0
  %2256 = vmatpush1.msra.mxu0 0.0
  %2257 = vmatprep.subr.mxu0 0.0
  %2258 = vmatpush1.msra.mxu0 0.0
  %2259 = vmatprep.subr.mxu0 0.0
  %2260 = vmatpush1.msra.mxu0 0.0
  %2261 = vmatprep.subr.mxu0 0.0
  %2262 = vmatpush1.msra.mxu0 0.0
  %2263 = vmatprep.subr.mxu0 0.0
  %2264 = vmatpush1.msra.mxu0 0.0
  %2265 = vmatprep.subr.mxu0 0.0
  %2266 = vmatpush1.msra.mxu0 0.0
  %2267 = vmatprep.subr.mxu0 0.0
  %2268 = vmatpush1.msra.mxu0 0.0
  %2269 = vmatprep.subr.mxu0 0.0
  %2270 = vmatpush1.msra.mxu0 0.0
  %2271 = vmatprep.subr.mxu0 0.0
  %2272 = vmatpush1.msra.mxu0 0.0
  %2273 = vmatprep.mubr.f32.mxu0 0.0
  %2274 = vmatmul.mubr.f32.gmra.mrb[0].mxu0 %v2067
  %v2275 = vpop.f32.mrb[0].mxu0
  %v2276 = vadd.f32 %v353, %v2275
  %v2277 = vpop.f32.mrb[0].mxu0
  %2278 = vdwg.mxu0
  %v2280 = vrot.slane %v2136, 2
  %v2282 = vadd.f32 %v143, %v2280
  %v2283 = vxor.u32 %v2282, 2147483648
  %v2284 = vmul.f32 %v2283, 1.442695
  %v2285 = vpow.pop %v2284
  %v2286 = vadd.f32 %v2285, 1.0
  %v2287 = vrcp.pop %v2286
  %v2288 = vmul.f32 1.0, %v2287
  %v2290 = vrot.slane %v2206, 2
  %v2292 = vadd.f32 %v238, %v2290
  %v2293 = vxor.u32 %v2292, 2147483648
  %v2294 = vmul.f32 %v2293, 1.442695
  %v2295 = vpow.pop %v2294
  %v2296 = vadd.f32 %v2295, 1.0
  %v2297 = vrcp.pop %v2296
  %v2298 = vmul.f32 1.0, %v2297
  %v2300 = vrot.slane %v2276, 2
  %v2302 = vmul.f32 %v2288, %v2300
  %v2303 = vadd.f32 %v330, %v2302
  %v2304 = vtanh.pop %v2303
  %v2305 = vsub.f32 1.0, %v2298
  %v2306 = vmul.f32 %v2305, %v2304
  %v2307 = vrot.slane %v2063, 6
  %v2309 = vmul.f32 %v2298, %v2307
  %v2310 = vadd.f32 %v2306, %v2309
  %2311 = vst.msk [vmem:[#allocation2 + $0x8] sm:$0xc0] %vm1333, %v2310
  %v2312 = vld [vmem:[#allocation2] sm:$0xff]
  %v2313 = vld [vmem:[#allocation2 + $0x8] sm:$0xff]
  %v2314 = vld [vmem:[%s5] sm:$0xff]
  %v2315 = vld [vmem:[%s5 + $0x8] sm:$0xff]
  %v2316 = vld [vmem:[%s5 + $0x10] sm:$0xff]
  %v2317 = vld [vmem:[%s5 + $0x18] sm:$0xff]
  %v2318 = vld [vmem:[%s7] sm:$0x1]
  %v2319 = vld [vmem:[%s8] sm:$0x1]
  %v2320 = vadd.f32 %v2318, %v2319
  %v2322 = vlaneseq
  %v2323 = vshrl.u32 %v2322, 7
  %v2324 = vsub.s32 0, %v2323
  %v2325 = vrot.slane %v2320, %v2324
  %v2328 = vsel %vm355, %v2312, 0
  %v2331 = vsel %vm355, %v2313, 0
  %2333 = vmatprep.subr.mxu0 0.0
  %2334 = vmatpush1.msra.mxu0 %v2314
  %2335 = vmatprep.subr.mxu0 0.0
  %2336 = vmatpush1.msra.mxu0 %v2315
  %2337 = vmatprep.subr.mxu0 0.0
  %2338 = vmatpush1.msra.mxu0 %v2316
  %2339 = vmatprep.subr.mxu0 0.0
  %2340 = vmatpush1.msra.mxu0 %v2317
  %2341 = vmatprep.subr.mxu0 0.0
  %2342 = vmatpush1.msra.mxu0 0.0
  %2343 = vmatprep.subr.mxu0 0.0
  %2344 = vmatpush1.msra.mxu0 0.0
  %2345 = vmatprep.subr.mxu0 0.0
  %2346 = vmatpush1.msra.mxu0 0.0
  %2347 = vmatprep.subr.mxu0 0.0
  %2348 = vmatpush1.msra.mxu0 0.0
  %2349 = vmatprep.subr.mxu0 0.0
  %2350 = vmatpush1.msra.mxu0 0.0
  %2351 = vmatprep.subr.mxu0 0.0
  %2352 = vmatpush1.msra.mxu0 0.0
  %2353 = vmatprep.subr.mxu0 0.0
  %2354 = vmatpush1.msra.mxu0 0.0
  %2355 = vmatprep.subr.mxu0 0.0
  %2356 = vmatpush1.msra.mxu0 0.0
  %2357 = vmatprep.subr.mxu0 0.0
  %2358 = vmatpush1.msra.mxu0 0.0
  %2359 = vmatprep.subr.mxu0 0.0
  %2360 = vmatpush1.msra.mxu0 0.0
  %2361 = vmatprep.subr.mxu0 0.0
  %2362 = vmatpush1.msra.mxu0 0.0
  %2363 = vmatprep.subr.mxu0 0.0
  %2364 = vmatpush1.msra.mxu0 0.0
  %2365 = vmatprep.subr.mxu0 0.0
  %2366 = vmatpush1.msra.mxu0 0.0
  %2367 = vmatprep.subr.mxu0 0.0
  %2368 = vmatpush1.msra.mxu0 0.0
  %2369 = vmatprep.subr.mxu0 0.0
  %2370 = vmatpush1.msra.mxu0 0.0
  %2371 = vmatprep.subr.mxu0 0.0
  %2372 = vmatpush1.msra.mxu0 0.0
  %2373 = vmatprep.subr.mxu0 0.0
  %2374 = vmatpush1.msra.mxu0 0.0
  %2375 = vmatprep.subr.mxu0 0.0
  %2376 = vmatpush1.msra.mxu0 0.0
  %2377 = vmatprep.subr.mxu0 0.0
  %2378 = vmatpush1.msra.mxu0 0.0
  %2379 = vmatprep.subr.mxu0 0.0
  %2380 = vmatpush1.msra.mxu0 0.0
  %2381 = vmatprep.subr.mxu0 0.0
  %2382 = vmatpush1.msra.mxu0 0.0
  %2383 = vmatprep.subr.mxu0 0.0
  %2384 = vmatpush1.msra.mxu0 0.0
  %2385 = vmatprep.subr.mxu0 0.0
  %2386 = vmatpush1.msra.mxu0 0.0
  %2387 = vmatprep.subr.mxu0 0.0
  %2388 = vmatpush1.msra.mxu0 0.0
  %2389 = vmatprep.subr.mxu0 0.0
  %2390 = vmatpush1.msra.mxu0 0.0
  %2391 = vmatprep.subr.mxu0 0.0
  %2392 = vmatpush1.msra.mxu0 0.0
  %2393 = vmatprep.subr.mxu0 0.0
  %2394 = vmatpush1.msra.mxu0 0.0
  %2395 = vmatprep.subr.mxu0 0.0
  %2396 = vmatpush1.msra.mxu0 0.0
  %2397 = vmatprep.mubr.f32.mxu0 0.0
  %2398 = vmatmul.mubr.f32.gmra.mrb[0].mxu0 %v2328
  %v2399 = vpop.f32.mrb[0].mxu0
  %v2400 = vadd.f32 %v2325, %v2399
  %v2401 = vpop.f32.mrb[0].mxu0
  %2402 = vmatprep.mubr.f32.mxu0 0.0
  %2403 = vmatmul.mubr.f32.gmra.mrb[0].mxu0 %v2331
  %v2404 = vpop.f32.mrb[0].mxu0
  %v2405 = vadd.f32 %v2325, %v2404
  %v2406 = vpop.f32.mrb[0].mxu0
  %2407 = vdwg.mxu0
  %s2408 = scalar_lea.vmem %s5, 32
  %v2409 = vld [vmem:[%s2408] sm:$0xff]
  %v2410 = vld [vmem:[%s2408 + $0x8] sm:$0xff]
  %v2411 = vld [vmem:[%s2408 + $0x10] sm:$0xff]
  %v2412 = vld [vmem:[%s2408 + $0x18] sm:$0xff]
  %s2413 = scalar_lea.vmem %s7, 1
  %v2414 = vld [vmem:[%s2413] sm:$0x1]
  %s2415 = scalar_lea.vmem %s8, 1
  %v2416 = vld [vmem:[%s2415] sm:$0x1]
  %v2417 = vadd.f32 %v2414, %v2416
  %v2419 = vlaneseq
  %v2420 = vshrl.u32 %v2419, 7
  %v2421 = vsub.s32 0, %v2420
  %v2422 = vrot.slane %v2417, %v2421
  %2424 = vmatprep.subr.mxu0 0.0
  %2425 = vmatpush1.msra.mxu0 %v2409
  %2426 = vmatprep.subr.mxu0 0.0
  %2427 = vmatpush1.msra.mxu0 %v2410
  %2428 = vmatprep.subr.mxu0 0.0
  %2429 = vmatpush1.msra.mxu0 %v2411
  %2430 = vmatprep.subr.mxu0 0.0
  %2431 = vmatpush1.msra.mxu0 %v2412
  %2432 = vmatprep.subr.mxu0 0.0
  %2433 = vmatpush1.msra.mxu0 0.0
  %2434 = vmatprep.subr.mxu0 0.0
  %2435 = vmatpush1.msra.mxu0 0.0
  %2436 = vmatprep.subr.mxu0 0.0
  %2437 = vmatpush1.msra.mxu0 0.0
  %2438 = vmatprep.subr.mxu0 0.0
  %2439 = vmatpush1.msra.mxu0 0.0
  %2440 = vmatprep.subr.mxu0 0.0
  %2441 = vmatpush1.msra.mxu0 0.0
  %2442 = vmatprep.subr.mxu0 0.0
  %2443 = vmatpush1.msra.mxu0 0.0
  %2444 = vmatprep.subr.mxu0 0.0
  %2445 = vmatpush1.msra.mxu0 0.0
  %2446 = vmatprep.subr.mxu0 0.0
  %2447 = vmatpush1.msra.mxu0 0.0
  %2448 = vmatprep.subr.mxu0 0.0
  %2449 = vmatpush1.msra.mxu0 0.0
  %2450 = vmatprep.subr.mxu0 0.0
  %2451 = vmatpush1.msra.mxu0 0.0
  %2452 = vmatprep.subr.mxu0 0.0
  %2453 = vmatpush1.msra.mxu0 0.0
  %2454 = vmatprep.subr.mxu0 0.0
  %2455 = vmatpush1.msra.mxu0 0.0
  %2456 = vmatprep.subr.mxu0 0.0
  %2457 = vmatpush1.msra.mxu0 0.0
  %2458 = vmatprep.subr.mxu0 0.0
  %2459 = vmatpush1.msra.mxu0 0.0
  %2460 = vmatprep.subr.mxu0 0.0
  %2461 = vmatpush1.msra.mxu0 0.0
  %2462 = vmatprep.subr.mxu0 0.0
  %2463 = vmatpush1.msra.mxu0 0.0
  %2464 = vmatprep.subr.mxu0 0.0
  %2465 = vmatpush1.msra.mxu0 0.0
  %2466 = vmatprep.subr.mxu0 0.0
  %2467 = vmatpush1.msra.mxu0 0.0
  %2468 = vmatprep.subr.mxu0 0.0
  %2469 = vmatpush1.msra.mxu0 0.0
  %2470 = vmatprep.subr.mxu0 0.0
  %2471 = vmatpush1.msra.mxu0 0.0
  %2472 = vmatprep.subr.mxu0 0.0
  %2473 = vmatpush1.msra.mxu0 0.0
  %2474 = vmatprep.subr.mxu0 0.0
  %2475 = vmatpush1.msra.mxu0 0.0
  %2476 = vmatprep.subr.mxu0 0.0
  %2477 = vmatpush1.msra.mxu0 0.0
  %2478 = vmatprep.subr.mxu0 0.0
  %2479 = vmatpush1.msra.mxu0 0.0
  %2480 = vmatprep.subr.mxu0 0.0
  %2481 = vmatpush1.msra.mxu0 0.0
  %2482 = vmatprep.subr.mxu0 0.0
  %2483 = vmatpush1.msra.mxu0 0.0
  %2484 = vmatprep.subr.mxu0 0.0
  %2485 = vmatpush1.msra.mxu0 0.0
  %2486 = vmatprep.subr.mxu0 0.0
  %2487 = vmatpush1.msra.mxu0 0.0
  %2488 = vmatprep.mubr.f32.mxu0 0.0
  %2489 = vmatmul.mubr.f32.gmra.mrb[0].mxu0 %v2328
  %v2490 = vpop.f32.mrb[0].mxu0
  %v2491 = vadd.f32 %v2422, %v2490
  %v2492 = vpop.f32.mrb[0].mxu0
  %2493 = vmatprep.mubr.f32.mxu0 0.0
  %2494 = vmatmul.mubr.f32.gmra.mrb[0].mxu0 %v2331
  %v2495 = vpop.f32.mrb[0].mxu0
  %v2496 = vadd.f32 %v2422, %v2495
  %v2497 = vpop.f32.mrb[0].mxu0
  %2498 = vdwg.mxu0
  %s2499 = scalar_lea.vmem %s5, 64
  %v2500 = vld [vmem:[%s2499] sm:$0xff]
  %v2501 = vld [vmem:[%s2499 + $0x8] sm:$0xff]
  %v2502 = vld [vmem:[%s2499 + $0x10] sm:$0xff]
  %v2503 = vld [vmem:[%s2499 + $0x18] sm:$0xff]
  %s2504 = scalar_lea.vmem %s7, 2
  %v2505 = vld [vmem:[%s2504] sm:$0x1]
  %v2507 = vlaneseq
  %v2508 = vshrl.u32 %v2507, 7
  %v2509 = vsub.s32 0, %v2508
  %v2510 = vrot.slane %v2505, %v2509
  %2512 = vmatprep.subr.mxu0 0.0
  %2513 = vmatpush1.msra.mxu0 %v2500
  %2514 = vmatprep.subr.mxu0 0.0
  %2515 = vmatpush1.msra.mxu0 %v2501
  %2516 = vmatprep.subr.mxu0 0.0
  %2517 = vmatpush1.msra.mxu0 %v2502
  %2518 = vmatprep.subr.mxu0 0.0
  %2519 = vmatpush1.msra.mxu0 %v2503
  %2520 = vmatprep.subr.mxu0 0.0
  %2521 = vmatpush1.msra.mxu0 0.0
  %2522 = vmatprep.subr.mxu0 0.0
  %2523 = vmatpush1.msra.mxu0 0.0
  %2524 = vmatprep.subr.mxu0 0.0
  %2525 = vmatpush1.msra.mxu0 0.0
  %2526 = vmatprep.subr.mxu0 0.0
  %2527 = vmatpush1.msra.mxu0 0.0
  %2528 = vmatprep.subr.mxu0 0.0
  %2529 = vmatpush1.msra.mxu0 0.0
  %2530 = vmatprep.subr.mxu0 0.0
  %2531 = vmatpush1.msra.mxu0 0.0
  %2532 = vmatprep.subr.mxu0 0.0
  %2533 = vmatpush1.msra.mxu0 0.0
  %2534 = vmatprep.subr.mxu0 0.0
  %2535 = vmatpush1.msra.mxu0 0.0
  %2536 = vmatprep.subr.mxu0 0.0
  %2537 = vmatpush1.msra.mxu0 0.0
  %2538 = vmatprep.subr.mxu0 0.0
  %2539 = vmatpush1.msra.mxu0 0.0
  %2540 = vmatprep.subr.mxu0 0.0
  %2541 = vmatpush1.msra.mxu0 0.0
  %2542 = vmatprep.subr.mxu0 0.0
  %2543 = vmatpush1.msra.mxu0 0.0
  %2544 = vmatprep.subr.mxu0 0.0
  %2545 = vmatpush1.msra.mxu0 0.0
  %2546 = vmatprep.subr.mxu0 0.0
  %2547 = vmatpush1.msra.mxu0 0.0
  %2548 = vmatprep.subr.mxu0 0.0
  %2549 = vmatpush1.msra.mxu0 0.0
  %2550 = vmatprep.subr.mxu0 0.0
  %2551 = vmatpush1.msra.mxu0 0.0
  %2552 = vmatprep.subr.mxu0 0.0
  %2553 = vmatpush1.msra.mxu0 0.0
  %2554 = vmatprep.subr.mxu0 0.0
  %2555 = vmatpush1.msra.mxu0 0.0
  %2556 = vmatprep.subr.mxu0 0.0
  %2557 = vmatpush1.msra.mxu0 0.0
  %2558 = vmatprep.subr.mxu0 0.0
  %2559 = vmatpush1.msra.mxu0 0.0
  %2560 = vmatprep.subr.mxu0 0.0
  %2561 = vmatpush1.msra.mxu0 0.0
  %2562 = vmatprep.subr.mxu0 0.0
  %2563 = vmatpush1.msra.mxu0 0.0
  %2564 = vmatprep.subr.mxu0 0.0
  %2565 = vmatpush1.msra.mxu0 0.0
  %2566 = vmatprep.subr.mxu0 0.0
  %2567 = vmatpush1.msra.mxu0 0.0
  %2568 = vmatprep.subr.mxu0 0.0
  %2569 = vmatpush1.msra.mxu0 0.0
  %2570 = vmatprep.subr.mxu0 0.0
  %2571 = vmatpush1.msra.mxu0 0.0
  %2572 = vmatprep.subr.mxu0 0.0
  %2573 = vmatpush1.msra.mxu0 0.0
  %2574 = vmatprep.subr.mxu0 0.0
  %2575 = vmatpush1.msra.mxu0 0.0
  %2576 = vmatprep.mubr.f32.mxu0 0.0
  %2577 = vmatmul.mubr.f32.gmra.mrb[0].mxu0 %v2328
  %v2578 = vpop.f32.mrb[0].mxu0
  %v2579 = vadd.f32 %v2510, %v2578
  %v2580 = vpop.f32.mrb[0].mxu0
  %2581 = vmatprep.mubr.f32.mxu0 0.0
  %2582 = vmatmul.mubr.f32.gmra.mrb[0].mxu0 %v2331
  %v2583 = vpop.f32.mrb[0].mxu0
  %v2584 = vadd.f32 %v2510, %v2583
  %v2585 = vpop.f32.mrb[0].mxu0
  %2586 = vdwg.mxu0
  %v2587 = vld [vmem:[%s6] sm:$0xff]
  %v2588 = vld [vmem:[%s6 + $0x8] sm:$0xff]
  %v2589 = vld [vmem:[%s6 + $0x10] sm:$0xff]
  %v2590 = vld [vmem:[%s6 + $0x18] sm:$0xff]
  %s2591 = scalar_lea.vmem %s6, 32
  %v2592 = vld [vmem:[%s2591] sm:$0xff]
  %v2593 = vld [vmem:[%s2591 + $0x8] sm:$0xff]
  %v2594 = vld [vmem:[%s2591 + $0x10] sm:$0xff]
  %v2595 = vld [vmem:[%s2591 + $0x18] sm:$0xff]
  %s2596 = scalar_lea.vmem %s6, 64
  %v2597 = vld [vmem:[%s2596] sm:$0xff]
  %v2598 = vld [vmem:[%s2596 + $0x8] sm:$0xff]
  %v2599 = vld [vmem:[%s2596 + $0x10] sm:$0xff]
  %v2600 = vld [vmem:[%s2596 + $0x18] sm:$0xff]
  %s2601 = scalar_lea.vmem %s8, 2
  %v2602 = vld [vmem:[%s2601] sm:$0x1]
  %v2604 = vlaneseq
  %v2605 = vshrl.u32 %v2604, 7
  %v2606 = vsub.s32 0, %v2605
  %v2607 = vrot.slane %v2602, %v2606
  %2609 = vmatprep.subr.mxu0 0.0
  %2610 = vmatpush1.msra.mxu0 %v2587
  %2611 = vmatprep.subr.mxu0 0.0
  %2612 = vmatpush1.msra.mxu0 %v2588
  %2613 = vmatprep.subr.mxu0 0.0
  %2614 = vmatpush1.msra.mxu0 %v2589
  %2615 = vmatprep.subr.mxu0 0.0
  %2616 = vmatpush1.msra.mxu0 %v2590
  %2617 = vmatprep.subr.mxu0 0.0
  %2618 = vmatpush1.msra.mxu0 0.0
  %2619 = vmatprep.subr.mxu0 0.0
  %2620 = vmatpush1.msra.mxu0 0.0
  %2621 = vmatprep.subr.mxu0 0.0
  %2622 = vmatpush1.msra.mxu0 0.0
  %2623 = vmatprep.subr.mxu0 0.0
  %2624 = vmatpush1.msra.mxu0 0.0
  %2625 = vmatprep.subr.mxu0 0.0
  %2626 = vmatpush1.msra.mxu0 0.0
  %2627 = vmatprep.subr.mxu0 0.0
  %2628 = vmatpush1.msra.mxu0 0.0
  %2629 = vmatprep.subr.mxu0 0.0
  %2630 = vmatpush1.msra.mxu0 0.0
  %2631 = vmatprep.subr.mxu0 0.0
  %2632 = vmatpush1.msra.mxu0 0.0
  %2633 = vmatprep.subr.mxu0 0.0
  %2634 = vmatpush1.msra.mxu0 0.0
  %2635 = vmatprep.subr.mxu0 0.0
  %2636 = vmatpush1.msra.mxu0 0.0
  %2637 = vmatprep.subr.mxu0 0.0
  %2638 = vmatpush1.msra.mxu0 0.0
  %2639 = vmatprep.subr.mxu0 0.0
  %2640 = vmatpush1.msra.mxu0 0.0
  %2641 = vmatprep.subr.mxu0 0.0
  %2642 = vmatpush1.msra.mxu0 0.0
  %2643 = vmatprep.subr.mxu0 0.0
  %2644 = vmatpush1.msra.mxu0 0.0
  %2645 = vmatprep.subr.mxu0 0.0
  %2646 = vmatpush1.msra.mxu0 0.0
  %2647 = vmatprep.subr.mxu0 0.0
  %2648 = vmatpush1.msra.mxu0 0.0
  %2649 = vmatprep.subr.mxu0 0.0
  %2650 = vmatpush1.msra.mxu0 0.0
  %2651 = vmatprep.subr.mxu0 0.0
  %2652 = vmatpush1.msra.mxu0 0.0
  %2653 = vmatprep.subr.mxu0 0.0
  %2654 = vmatpush1.msra.mxu0 0.0
  %2655 = vmatprep.subr.mxu0 0.0
  %2656 = vmatpush1.msra.mxu0 0.0
  %2657 = vmatprep.subr.mxu0 0.0
  %2658 = vmatpush1.msra.mxu0 0.0
  %2659 = vmatprep.subr.mxu0 0.0
  %2660 = vmatpush1.msra.mxu0 0.0
  %2661 = vmatprep.subr.mxu0 0.0
  %2662 = vmatpush1.msra.mxu0 0.0
  %2663 = vmatprep.subr.mxu0 0.0
  %2664 = vmatpush1.msra.mxu0 0.0
  %2665 = vmatprep.subr.mxu0 0.0
  %2666 = vmatpush1.msra.mxu0 0.0
  %2667 = vmatprep.subr.mxu0 0.0
  %2668 = vmatpush1.msra.mxu0 0.0
  %2669 = vmatprep.subr.mxu0 0.0
  %2670 = vmatpush1.msra.mxu0 0.0
  %2671 = vmatprep.subr.mxu0 0.0
  %2672 = vmatpush1.msra.mxu0 0.0
  %2673 = vmatprep.mubr.f32.mxu0 0.0
  %2674 = vmatmul.mubr.f32.gmra.mrb[0].mxu0 %v357
  %v2675 = vpop.f32.mrb[0].mxu0
  %v2676 = vadd.f32 0.0, %v2675
  %v2677 = vpop.f32.mrb[0].mxu0
  %2678 = vdwg.mxu0
  %2679 = vmatprep.subr.mxu0 0.0
  %2680 = vmatpush1.msra.mxu0 %v2592
  %2681 = vmatprep.subr.mxu0 0.0
  %2682 = vmatpush1.msra.mxu0 %v2593
  %2683 = vmatprep.subr.mxu0 0.0
  %2684 = vmatpush1.msra.mxu0 %v2594
  %2685 = vmatprep.subr.mxu0 0.0
  %2686 = vmatpush1.msra.mxu0 %v2595
  %2687 = vmatprep.subr.mxu0 0.0
  %2688 = vmatpush1.msra.mxu0 0.0
  %2689 = vmatprep.subr.mxu0 0.0
  %2690 = vmatpush1.msra.mxu0 0.0
  %2691 = vmatprep.subr.mxu0 0.0
  %2692 = vmatpush1.msra.mxu0 0.0
  %2693 = vmatprep.subr.mxu0 0.0
  %2694 = vmatpush1.msra.mxu0 0.0
  %2695 = vmatprep.subr.mxu0 0.0
  %2696 = vmatpush1.msra.mxu0 0.0
  %2697 = vmatprep.subr.mxu0 0.0
  %2698 = vmatpush1.msra.mxu0 0.0
  %2699 = vmatprep.subr.mxu0 0.0
  %2700 = vmatpush1.msra.mxu0 0.0
  %2701 = vmatprep.subr.mxu0 0.0
  %2702 = vmatpush1.msra.mxu0 0.0
  %2703 = vmatprep.subr.mxu0 0.0
  %2704 = vmatpush1.msra.mxu0 0.0
  %2705 = vmatprep.subr.mxu0 0.0
  %2706 = vmatpush1.msra.mxu0 0.0
  %2707 = vmatprep.subr.mxu0 0.0
  %2708 = vmatpush1.msra.mxu0 0.0
  %2709 = vmatprep.subr.mxu0 0.0
  %2710 = vmatpush1.msra.mxu0 0.0
  %2711 = vmatprep.subr.mxu0 0.0
  %2712 = vmatpush1.msra.mxu0 0.0
  %2713 = vmatprep.subr.mxu0 0.0
  %2714 = vmatpush1.msra.mxu0 0.0
  %2715 = vmatprep.subr.mxu0 0.0
  %2716 = vmatpush1.msra.mxu0 0.0
  %2717 = vmatprep.subr.mxu0 0.0
  %2718 = vmatpush1.msra.mxu0 0.0
  %2719 = vmatprep.subr.mxu0 0.0
  %2720 = vmatpush1.msra.mxu0 0.0
  %2721 = vmatprep.subr.mxu0 0.0
  %2722 = vmatpush1.msra.mxu0 0.0
  %2723 = vmatprep.subr.mxu0 0.0
  %2724 = vmatpush1.msra.mxu0 0.0
  %2725 = vmatprep.subr.mxu0 0.0
  %2726 = vmatpush1.msra.mxu0 0.0
  %2727 = vmatprep.subr.mxu0 0.0
  %2728 = vmatpush1.msra.mxu0 0.0
  %2729 = vmatprep.subr.mxu0 0.0
  %2730 = vmatpush1.msra.mxu0 0.0
  %2731 = vmatprep.subr.mxu0 0.0
  %2732 = vmatpush1.msra.mxu0 0.0
  %2733 = vmatprep.subr.mxu0 0.0
  %2734 = vmatpush1.msra.mxu0 0.0
  %2735 = vmatprep.subr.mxu0 0.0
  %2736 = vmatpush1.msra.mxu0 0.0
  %2737 = vmatprep.subr.mxu0 0.0
  %2738 = vmatpush1.msra.mxu0 0.0
  %2739 = vmatprep.subr.mxu0 0.0
  %2740 = vmatpush1.msra.mxu0 0.0
  %2741 = vmatprep.subr.mxu0 0.0
  %2742 = vmatpush1.msra.mxu0 0.0
  %2743 = vmatprep.mubr.f32.mxu0 0.0
  %2744 = vmatmul.mubr.f32.gmra.mrb[0].mxu0 %v357
  %v2745 = vpop.f32.mrb[0].mxu0
  %v2746 = vadd.f32 0.0, %v2745
  %v2747 = vpop.f32.mrb[0].mxu0
  %2748 = vdwg.mxu0
  %2749 = vmatprep.subr.mxu0 0.0
  %2750 = vmatpush1.msra.mxu0 %v2597
  %2751 = vmatprep.subr.mxu0 0.0
  %2752 = vmatpush1.msra.mxu0 %v2598
  %2753 = vmatprep.subr.mxu0 0.0
  %2754 = vmatpush1.msra.mxu0 %v2599
  %2755 = vmatprep.subr.mxu0 0.0
  %2756 = vmatpush1.msra.mxu0 %v2600
  %2757 = vmatprep.subr.mxu0 0.0
  %2758 = vmatpush1.msra.mxu0 0.0
  %2759 = vmatprep.subr.mxu0 0.0
  %2760 = vmatpush1.msra.mxu0 0.0
  %2761 = vmatprep.subr.mxu0 0.0
  %2762 = vmatpush1.msra.mxu0 0.0
  %2763 = vmatprep.subr.mxu0 0.0
  %2764 = vmatpush1.msra.mxu0 0.0
  %2765 = vmatprep.subr.mxu0 0.0
  %2766 = vmatpush1.msra.mxu0 0.0
  %2767 = vmatprep.subr.mxu0 0.0
  %2768 = vmatpush1.msra.mxu0 0.0
  %2769 = vmatprep.subr.mxu0 0.0
  %2770 = vmatpush1.msra.mxu0 0.0
  %2771 = vmatprep.subr.mxu0 0.0
  %2772 = vmatpush1.msra.mxu0 0.0
  %2773 = vmatprep.subr.mxu0 0.0
  %2774 = vmatpush1.msra.mxu0 0.0
  %2775 = vmatprep.subr.mxu0 0.0
  %2776 = vmatpush1.msra.mxu0 0.0
  %2777 = vmatprep.subr.mxu0 0.0
  %2778 = vmatpush1.msra.mxu0 0.0
  %2779 = vmatprep.subr.mxu0 0.0
  %2780 = vmatpush1.msra.mxu0 0.0
  %2781 = vmatprep.subr.mxu0 0.0
  %2782 = vmatpush1.msra.mxu0 0.0
  %2783 = vmatprep.subr.mxu0 0.0
  %2784 = vmatpush1.msra.mxu0 0.0
  %2785 = vmatprep.subr.mxu0 0.0
  %2786 = vmatpush1.msra.mxu0 0.0
  %2787 = vmatprep.subr.mxu0 0.0
  %2788 = vmatpush1.msra.mxu0 0.0
  %2789 = vmatprep.subr.mxu0 0.0
  %2790 = vmatpush1.msra.mxu0 0.0
  %2791 = vmatprep.subr.mxu0 0.0
  %2792 = vmatpush1.msra.mxu0 0.0
  %2793 = vmatprep.subr.mxu0 0.0
  %2794 = vmatpush1.msra.mxu0 0.0
  %2795 = vmatprep.subr.mxu0 0.0
  %2796 = vmatpush1.msra.mxu0 0.0
  %2797 = vmatprep.subr.mxu0 0.0
  %2798 = vmatpush1.msra.mxu0 0.0
  %2799 = vmatprep.subr.mxu0 0.0
  %2800 = vmatpush1.msra.mxu0 0.0
  %2801 = vmatprep.subr.mxu0 0.0
  %2802 = vmatpush1.msra.mxu0 0.0
  %2803 = vmatprep.subr.mxu0 0.0
  %2804 = vmatpush1.msra.mxu0 0.0
  %2805 = vmatprep.subr.mxu0 0.0
  %2806 = vmatpush1.msra.mxu0 0.0
  %2807 = vmatprep.subr.mxu0 0.0
  %2808 = vmatpush1.msra.mxu0 0.0
  %2809 = vmatprep.subr.mxu0 0.0
  %2810 = vmatpush1.msra.mxu0 0.0
  %2811 = vmatprep.subr.mxu0 0.0
  %2812 = vmatpush1.msra.mxu0 0.0
  %2813 = vmatprep.mubr.f32.mxu0 0.0
  %2814 = vmatmul.mubr.f32.gmra.mrb[0].mxu0 %v357
  %v2815 = vpop.f32.mrb[0].mxu0
  %v2816 = vadd.f32 %v2607, %v2815
  %v2817 = vpop.f32.mrb[0].mxu0
  %2818 = vdwg.mxu0
  %v2819 = vadd.f32 %v2400, %v2676
  %v2820 = vxor.u32 %v2819, 2147483648
  %v2821 = vmul.f32 %v2820, 1.442695
  %v2822 = vpow.pop %v2821
  %v2823 = vadd.f32 %v2822, 1.0
  %v2824 = vrcp.pop %v2823
  %v2825 = vmul.f32 1.0, %v2824
  %v2826 = vadd.f32 %v2491, %v2746
  %v2827 = vxor.u32 %v2826, 2147483648
  %v2828 = vmul.f32 %v2827, 1.442695
  %v2829 = vpow.pop %v2828
  %v2830 = vadd.f32 %v2829, 1.0
  %v2831 = vrcp.pop %v2830
  %v2832 = vmul.f32 1.0, %v2831
  %v2833 = vmul.f32 %v2825, %v2816
  %v2834 = vadd.f32 %v2579, %v2833
  %v2835 = vtanh.pop %v2834
  %v2836 = vsub.f32 1.0, %v2832
  %v2837 = vmul.f32 %v2836, %v2835
  %v2838 = vmul.f32 %v2832, 0.0
  %v2839 = vadd.f32 %v2837, %v2838
  %2840 = vst.msk [vmem:[#allocation2] sm:$0x3] %vm590, %v2839
  %v2842 = vsel %vm355, %v2839, 0
  %2844 = vmatprep.subr.mxu0 0.0
  %2845 = vmatpush1.msra.mxu0 %v2587
  %2846 = vmatprep.subr.mxu0 0.0
  %2847 = vmatpush1.msra.mxu0 %v2588
  %2848 = vmatprep.subr.mxu0 0.0
  %2849 = vmatpush1.msra.mxu0 %v2589
  %2850 = vmatprep.subr.mxu0 0.0
  %2851 = vmatpush1.msra.mxu0 %v2590
  %2852 = vmatprep.subr.mxu0 0.0
  %2853 = vmatpush1.msra.mxu0 0.0
  %2854 = vmatprep.subr.mxu0 0.0
  %2855 = vmatpush1.msra.mxu0 0.0
  %2856 = vmatprep.subr.mxu0 0.0
  %2857 = vmatpush1.msra.mxu0 0.0
  %2858 = vmatprep.subr.mxu0 0.0
  %2859 = vmatpush1.msra.mxu0 0.0
  %2860 = vmatprep.subr.mxu0 0.0
  %2861 = vmatpush1.msra.mxu0 0.0
  %2862 = vmatprep.subr.mxu0 0.0
  %2863 = vmatpush1.msra.mxu0 0.0
  %2864 = vmatprep.subr.mxu0 0.0
  %2865 = vmatpush1.msra.mxu0 0.0
  %2866 = vmatprep.subr.mxu0 0.0
  %2867 = vmatpush1.msra.mxu0 0.0
  %2868 = vmatprep.subr.mxu0 0.0
  %2869 = vmatpush1.msra.mxu0 0.0
  %2870 = vmatprep.subr.mxu0 0.0
  %2871 = vmatpush1.msra.mxu0 0.0
  %2872 = vmatprep.subr.mxu0 0.0
  %2873 = vmatpush1.msra.mxu0 0.0
  %2874 = vmatprep.subr.mxu0 0.0
  %2875 = vmatpush1.msra.mxu0 0.0
  %2876 = vmatprep.subr.mxu0 0.0
  %2877 = vmatpush1.msra.mxu0 0.0
  %2878 = vmatprep.subr.mxu0 0.0
  %2879 = vmatpush1.msra.mxu0 0.0
  %2880 = vmatprep.subr.mxu0 0.0
  %2881 = vmatpush1.msra.mxu0 0.0
  %2882 = vmatprep.subr.mxu0 0.0
  %2883 = vmatpush1.msra.mxu0 0.0
  %2884 = vmatprep.subr.mxu0 0.0
  %2885 = vmatpush1.msra.mxu0 0.0
  %2886 = vmatprep.subr.mxu0 0.0
  %2887 = vmatpush1.msra.mxu0 0.0
  %2888 = vmatprep.subr.mxu0 0.0
  %2889 = vmatpush1.msra.mxu0 0.0
  %2890 = vmatprep.subr.mxu0 0.0
  %2891 = vmatpush1.msra.mxu0 0.0
  %2892 = vmatprep.subr.mxu0 0.0
  %2893 = vmatpush1.msra.mxu0 0.0
  %2894 = vmatprep.subr.mxu0 0.0
  %2895 = vmatpush1.msra.mxu0 0.0
  %2896 = vmatprep.subr.mxu0 0.0
  %2897 = vmatpush1.msra.mxu0 0.0
  %2898 = vmatprep.subr.mxu0 0.0
  %2899 = vmatpush1.msra.mxu0 0.0
  %2900 = vmatprep.subr.mxu0 0.0
  %2901 = vmatpush1.msra.mxu0 0.0
  %2902 = vmatprep.subr.mxu0 0.0
  %2903 = vmatpush1.msra.mxu0 0.0
  %2904 = vmatprep.subr.mxu0 0.0
  %2905 = vmatpush1.msra.mxu0 0.0
  %2906 = vmatprep.subr.mxu0 0.0
  %2907 = vmatpush1.msra.mxu0 0.0
  %2908 = vmatprep.mubr.f32.mxu0 0.0
  %2909 = vmatmul.mubr.f32.gmra.mrb[0].mxu0 %v2842
  %v2910 = vpop.f32.mrb[0].mxu0
  %v2911 = vadd.f32 0.0, %v2910
  %v2912 = vpop.f32.mrb[0].mxu0
  %2913 = vdwg.mxu0
  %2914 = vmatprep.subr.mxu0 0.0
  %2915 = vmatpush1.msra.mxu0 %v2592
  %2916 = vmatprep.subr.mxu0 0.0
  %2917 = vmatpush1.msra.mxu0 %v2593
  %2918 = vmatprep.subr.mxu0 0.0
  %2919 = vmatpush1.msra.mxu0 %v2594
  %2920 = vmatprep.subr.mxu0 0.0
  %2921 = vmatpush1.msra.mxu0 %v2595
  %2922 = vmatprep.subr.mxu0 0.0
  %2923 = vmatpush1.msra.mxu0 0.0
  %2924 = vmatprep.subr.mxu0 0.0
  %2925 = vmatpush1.msra.mxu0 0.0
  %2926 = vmatprep.subr.mxu0 0.0
  %2927 = vmatpush1.msra.mxu0 0.0
  %2928 = vmatprep.subr.mxu0 0.0
  %2929 = vmatpush1.msra.mxu0 0.0
  %2930 = vmatprep.subr.mxu0 0.0
  %2931 = vmatpush1.msra.mxu0 0.0
  %2932 = vmatprep.subr.mxu0 0.0
  %2933 = vmatpush1.msra.mxu0 0.0
  %2934 = vmatprep.subr.mxu0 0.0
  %2935 = vmatpush1.msra.mxu0 0.0
  %2936 = vmatprep.subr.mxu0 0.0
  %2937 = vmatpush1.msra.mxu0 0.0
  %2938 = vmatprep.subr.mxu0 0.0
  %2939 = vmatpush1.msra.mxu0 0.0
  %2940 = vmatprep.subr.mxu0 0.0
  %2941 = vmatpush1.msra.mxu0 0.0
  %2942 = vmatprep.subr.mxu0 0.0
  %2943 = vmatpush1.msra.mxu0 0.0
  %2944 = vmatprep.subr.mxu0 0.0
  %2945 = vmatpush1.msra.mxu0 0.0
  %2946 = vmatprep.subr.mxu0 0.0
  %2947 = vmatpush1.msra.mxu0 0.0
  %2948 = vmatprep.subr.mxu0 0.0
  %2949 = vmatpush1.msra.mxu0 0.0
  %2950 = vmatprep.subr.mxu0 0.0
  %2951 = vmatpush1.msra.mxu0 0.0
  %2952 = vmatprep.subr.mxu0 0.0
  %2953 = vmatpush1.msra.mxu0 0.0
  %2954 = vmatprep.subr.mxu0 0.0
  %2955 = vmatpush1.msra.mxu0 0.0
  %2956 = vmatprep.subr.mxu0 0.0
  %2957 = vmatpush1.msra.mxu0 0.0
  %2958 = vmatprep.subr.mxu0 0.0
  %2959 = vmatpush1.msra.mxu0 0.0
  %2960 = vmatprep.subr.mxu0 0.0
  %2961 = vmatpush1.msra.mxu0 0.0
  %2962 = vmatprep.subr.mxu0 0.0
  %2963 = vmatpush1.msra.mxu0 0.0
  %2964 = vmatprep.subr.mxu0 0.0
  %2965 = vmatpush1.msra.mxu0 0.0
  %2966 = vmatprep.subr.mxu0 0.0
  %2967 = vmatpush1.msra.mxu0 0.0
  %2968 = vmatprep.subr.mxu0 0.0
  %2969 = vmatpush1.msra.mxu0 0.0
  %2970 = vmatprep.subr.mxu0 0.0
  %2971 = vmatpush1.msra.mxu0 0.0
  %2972 = vmatprep.subr.mxu0 0.0
  %2973 = vmatpush1.msra.mxu0 0.0
  %2974 = vmatprep.subr.mxu0 0.0
  %2975 = vmatpush1.msra.mxu0 0.0
  %2976 = vmatprep.subr.mxu0 0.0
  %2977 = vmatpush1.msra.mxu0 0.0
  %2978 = vmatprep.mubr.f32.mxu0 0.0
  %2979 = vmatmul.mubr.f32.gmra.mrb[0].mxu0 %v2842
  %v2980 = vpop.f32.mrb[0].mxu0
  %v2981 = vadd.f32 0.0, %v2980
  %v2982 = vpop.f32.mrb[0].mxu0
  %2983 = vdwg.mxu0
  %2984 = vmatprep.subr.mxu0 0.0
  %2985 = vmatpush1.msra.mxu0 %v2597
  %2986 = vmatprep.subr.mxu0 0.0
  %2987 = vmatpush1.msra.mxu0 %v2598
  %2988 = vmatprep.subr.mxu0 0.0
  %2989 = vmatpush1.msra.mxu0 %v2599
  %2990 = vmatprep.subr.mxu0 0.0
  %2991 = vmatpush1.msra.mxu0 %v2600
  %2992 = vmatprep.subr.mxu0 0.0
  %2993 = vmatpush1.msra.mxu0 0.0
  %2994 = vmatprep.subr.mxu0 0.0
  %2995 = vmatpush1.msra.mxu0 0.0
  %2996 = vmatprep.subr.mxu0 0.0
  %2997 = vmatpush1.msra.mxu0 0.0
  %2998 = vmatprep.subr.mxu0 0.0
  %2999 = vmatpush1.msra.mxu0 0.0
  %3000 = vmatprep.subr.mxu0 0.0
  %3001 = vmatpush1.msra.mxu0 0.0
  %3002 = vmatprep.subr.mxu0 0.0
  %3003 = vmatpush1.msra.mxu0 0.0
  %3004 = vmatprep.subr.mxu0 0.0
  %3005 = vmatpush1.msra.mxu0 0.0
  %3006 = vmatprep.subr.mxu0 0.0
  %3007 = vmatpush1.msra.mxu0 0.0
  %3008 = vmatprep.subr.mxu0 0.0
  %3009 = vmatpush1.msra.mxu0 0.0
  %3010 = vmatprep.subr.mxu0 0.0
  %3011 = vmatpush1.msra.mxu0 0.0
  %3012 = vmatprep.subr.mxu0 0.0
  %3013 = vmatpush1.msra.mxu0 0.0
  %3014 = vmatprep.subr.mxu0 0.0
  %3015 = vmatpush1.msra.mxu0 0.0
  %3016 = vmatprep.subr.mxu0 0.0
  %3017 = vmatpush1.msra.mxu0 0.0
  %3018 = vmatprep.subr.mxu0 0.0
  %3019 = vmatpush1.msra.mxu0 0.0
  %3020 = vmatprep.subr.mxu0 0.0
  %3021 = vmatpush1.msra.mxu0 0.0
  %3022 = vmatprep.subr.mxu0 0.0
  %3023 = vmatpush1.msra.mxu0 0.0
  %3024 = vmatprep.subr.mxu0 0.0
  %3025 = vmatpush1.msra.mxu0 0.0
  %3026 = vmatprep.subr.mxu0 0.0
  %3027 = vmatpush1.msra.mxu0 0.0
  %3028 = vmatprep.subr.mxu0 0.0
  %3029 = vmatpush1.msra.mxu0 0.0
  %3030 = vmatprep.subr.mxu0 0.0
  %3031 = vmatpush1.msra.mxu0 0.0
  %3032 = vmatprep.subr.mxu0 0.0
  %3033 = vmatpush1.msra.mxu0 0.0
  %3034 = vmatprep.subr.mxu0 0.0
  %3035 = vmatpush1.msra.mxu0 0.0
  %3036 = vmatprep.subr.mxu0 0.0
  %3037 = vmatpush1.msra.mxu0 0.0
  %3038 = vmatprep.subr.mxu0 0.0
  %3039 = vmatpush1.msra.mxu0 0.0
  %3040 = vmatprep.subr.mxu0 0.0
  %3041 = vmatpush1.msra.mxu0 0.0
  %3042 = vmatprep.subr.mxu0 0.0
  %3043 = vmatpush1.msra.mxu0 0.0
  %3044 = vmatprep.subr.mxu0 0.0
  %3045 = vmatpush1.msra.mxu0 0.0
  %3046 = vmatprep.subr.mxu0 0.0
  %3047 = vmatpush1.msra.mxu0 0.0
  %3048 = vmatprep.mubr.f32.mxu0 0.0
  %3049 = vmatmul.mubr.f32.gmra.mrb[0].mxu0 %v2842
  %v3050 = vpop.f32.mrb[0].mxu0
  %v3051 = vadd.f32 %v2607, %v3050
  %v3052 = vpop.f32.mrb[0].mxu0
  %3053 = vdwg.mxu0
  %v3055 = vrot.slane %v2911, 6
  %v3057 = vadd.f32 %v2400, %v3055
  %v3058 = vxor.u32 %v3057, 2147483648
  %v3059 = vmul.f32 %v3058, 1.442695
  %v3060 = vpow.pop %v3059
  %v3061 = vadd.f32 %v3060, 1.0
  %v3062 = vrcp.pop %v3061
  %v3063 = vmul.f32 1.0, %v3062
  %v3065 = vrot.slane %v2981, 6
  %v3067 = vadd.f32 %v2491, %v3065
  %v3068 = vxor.u32 %v3067, 2147483648
  %v3069 = vmul.f32 %v3068, 1.442695
  %v3070 = vpow.pop %v3069
  %v3071 = vadd.f32 %v3070, 1.0
  %v3072 = vrcp.pop %v3071
  %v3073 = vmul.f32 1.0, %v3072
  %v3075 = vrot.slane %v3051, 6
  %v3077 = vmul.f32 %v3063, %v3075
  %v3078 = vadd.f32 %v2579, %v3077
  %v3079 = vtanh.pop %v3078
  %v3080 = vsub.f32 1.0, %v3073
  %v3081 = vmul.f32 %v3080, %v3079
  %v3082 = vrot.slane %v2839, 6
  %v3084 = vmul.f32 %v3073, %v3082
  %v3085 = vadd.f32 %v3081, %v3084
  %3086 = vst.msk [vmem:[#allocation2] sm:$0xc] %vm837, %v3085
  %v3088 = vrot.slane %v3085, 2
  %v3089 = vsel %vm355, %v3088, 0
  %3091 = vmatprep.subr.mxu0 0.0
  %3092 = vmatpush1.msra.mxu0 %v2587
  %3093 = vmatprep.subr.mxu0 0.0
  %3094 = vmatpush1.msra.mxu0 %v2588
  %3095 = vmatprep.subr.mxu0 0.0
  %3096 = vmatpush1.msra.mxu0 %v2589
  %3097 = vmatprep.subr.mxu0 0.0
  %3098 = vmatpush1.msra.mxu0 %v2590
  %3099 = vmatprep.subr.mxu0 0.0
  %3100 = vmatpush1.msra.mxu0 0.0
  %3101 = vmatprep.subr.mxu0 0.0
  %3102 = vmatpush1.msra.mxu0 0.0
  %3103 = vmatprep.subr.mxu0 0.0
  %3104 = vmatpush1.msra.mxu0 0.0
  %3105 = vmatprep.subr.mxu0 0.0
  %3106 = vmatpush1.msra.mxu0 0.0
  %3107 = vmatprep.subr.mxu0 0.0
  %3108 = vmatpush1.msra.mxu0 0.0
  %3109 = vmatprep.subr.mxu0 0.0
  %3110 = vmatpush1.msra.mxu0 0.0
  %3111 = vmatprep.subr.mxu0 0.0
  %3112 = vmatpush1.msra.mxu0 0.0
  %3113 = vmatprep.subr.mxu0 0.0
  %3114 = vmatpush1.msra.mxu0 0.0
  %3115 = vmatprep.subr.mxu0 0.0
  %3116 = vmatpush1.msra.mxu0 0.0
  %3117 = vmatprep.subr.mxu0 0.0
  %3118 = vmatpush1.msra.mxu0 0.0
  %3119 = vmatprep.subr.mxu0 0.0
  %3120 = vmatpush1.msra.mxu0 0.0
  %3121 = vmatprep.subr.mxu0 0.0
  %3122 = vmatpush1.msra.mxu0 0.0
  %3123 = vmatprep.subr.mxu0 0.0
  %3124 = vmatpush1.msra.mxu0 0.0
  %3125 = vmatprep.subr.mxu0 0.0
  %3126 = vmatpush1.msra.mxu0 0.0
  %3127 = vmatprep.subr.mxu0 0.0
  %3128 = vmatpush1.msra.mxu0 0.0
  %3129 = vmatprep.subr.mxu0 0.0
  %3130 = vmatpush1.msra.mxu0 0.0
  %3131 = vmatprep.subr.mxu0 0.0
  %3132 = vmatpush1.msra.mxu0 0.0
  %3133 = vmatprep.subr.mxu0 0.0
  %3134 = vmatpush1.msra.mxu0 0.0
  %3135 = vmatprep.subr.mxu0 0.0
  %3136 = vmatpush1.msra.mxu0 0.0
  %3137 = vmatprep.subr.mxu0 0.0
  %3138 = vmatpush1.msra.mxu0 0.0
  %3139 = vmatprep.subr.mxu0 0.0
  %3140 = vmatpush1.msra.mxu0 0.0
  %3141 = vmatprep.subr.mxu0 0.0
  %3142 = vmatpush1.msra.mxu0 0.0
  %3143 = vmatprep.subr.mxu0 0.0
  %3144 = vmatpush1.msra.mxu0 0.0
  %3145 = vmatprep.subr.mxu0 0.0
  %3146 = vmatpush1.msra.mxu0 0.0
  %3147 = vmatprep.subr.mxu0 0.0
  %3148 = vmatpush1.msra.mxu0 0.0
  %3149 = vmatprep.subr.mxu0 0.0
  %3150 = vmatpush1.msra.mxu0 0.0
  %3151 = vmatprep.subr.mxu0 0.0
  %3152 = vmatpush1.msra.mxu0 0.0
  %3153 = vmatprep.subr.mxu0 0.0
  %3154 = vmatpush1.msra.mxu0 0.0
  %3155 = vmatprep.mubr.f32.mxu0 0.0
  %3156 = vmatmul.mubr.f32.gmra.mrb[0].mxu0 %v3089
  %v3157 = vpop.f32.mrb[0].mxu0
  %v3158 = vadd.f32 0.0, %v3157
  %v3159 = vpop.f32.mrb[0].mxu0
  %3160 = vdwg.mxu0
  %3161 = vmatprep.subr.mxu0 0.0
  %3162 = vmatpush1.msra.mxu0 %v2592
  %3163 = vmatprep.subr.mxu0 0.0
  %3164 = vmatpush1.msra.mxu0 %v2593
  %3165 = vmatprep.subr.mxu0 0.0
  %3166 = vmatpush1.msra.mxu0 %v2594
  %3167 = vmatprep.subr.mxu0 0.0
  %3168 = vmatpush1.msra.mxu0 %v2595
  %3169 = vmatprep.subr.mxu0 0.0
  %3170 = vmatpush1.msra.mxu0 0.0
  %3171 = vmatprep.subr.mxu0 0.0
  %3172 = vmatpush1.msra.mxu0 0.0
  %3173 = vmatprep.subr.mxu0 0.0
  %3174 = vmatpush1.msra.mxu0 0.0
  %3175 = vmatprep.subr.mxu0 0.0
  %3176 = vmatpush1.msra.mxu0 0.0
  %3177 = vmatprep.subr.mxu0 0.0
  %3178 = vmatpush1.msra.mxu0 0.0
  %3179 = vmatprep.subr.mxu0 0.0
  %3180 = vmatpush1.msra.mxu0 0.0
  %3181 = vmatprep.subr.mxu0 0.0
  %3182 = vmatpush1.msra.mxu0 0.0
  %3183 = vmatprep.subr.mxu0 0.0
  %3184 = vmatpush1.msra.mxu0 0.0
  %3185 = vmatprep.subr.mxu0 0.0
  %3186 = vmatpush1.msra.mxu0 0.0
  %3187 = vmatprep.subr.mxu0 0.0
  %3188 = vmatpush1.msra.mxu0 0.0
  %3189 = vmatprep.subr.mxu0 0.0
  %3190 = vmatpush1.msra.mxu0 0.0
  %3191 = vmatprep.subr.mxu0 0.0
  %3192 = vmatpush1.msra.mxu0 0.0
  %3193 = vmatprep.subr.mxu0 0.0
  %3194 = vmatpush1.msra.mxu0 0.0
  %3195 = vmatprep.subr.mxu0 0.0
  %3196 = vmatpush1.msra.mxu0 0.0
  %3197 = vmatprep.subr.mxu0 0.0
  %3198 = vmatpush1.msra.mxu0 0.0
  %3199 = vmatprep.subr.mxu0 0.0
  %3200 = vmatpush1.msra.mxu0 0.0
  %3201 = vmatprep.subr.mxu0 0.0
  %3202 = vmatpush1.msra.mxu0 0.0
  %3203 = vmatprep.subr.mxu0 0.0
  %3204 = vmatpush1.msra.mxu0 0.0
  %3205 = vmatprep.subr.mxu0 0.0
  %3206 = vmatpush1.msra.mxu0 0.0
  %3207 = vmatprep.subr.mxu0 0.0
  %3208 = vmatpush1.msra.mxu0 0.0
  %3209 = vmatprep.subr.mxu0 0.0
  %3210 = vmatpush1.msra.mxu0 0.0
  %3211 = vmatprep.subr.mxu0 0.0
  %3212 = vmatpush1.msra.mxu0 0.0
  %3213 = vmatprep.subr.mxu0 0.0
  %3214 = vmatpush1.msra.mxu0 0.0
  %3215 = vmatprep.subr.mxu0 0.0
  %3216 = vmatpush1.msra.mxu0 0.0
  %3217 = vmatprep.subr.mxu0 0.0
  %3218 = vmatpush1.msra.mxu0 0.0
  %3219 = vmatprep.subr.mxu0 0.0
  %3220 = vmatpush1.msra.mxu0 0.0
  %3221 = vmatprep.subr.mxu0 0.0
  %3222 = vmatpush1.msra.mxu0 0.0
  %3223 = vmatprep.subr.mxu0 0.0
  %3224 = vmatpush1.msra.mxu0 0.0
  %3225 = vmatprep.mubr.f32.mxu0 0.0
  %3226 = vmatmul.mubr.f32.gmra.mrb[0].mxu0 %v3089
  %v3227 = vpop.f32.mrb[0].mxu0
  %v3228 = vadd.f32 0.0, %v3227
  %v3229 = vpop.f32.mrb[0].mxu0
  %3230 = vdwg.mxu0
  %3231 = vmatprep.subr.mxu0 0.0
  %3232 = vmatpush1.msra.mxu0 %v2597
  %3233 = vmatprep.subr.mxu0 0.0
  %3234 = vmatpush1.msra.mxu0 %v2598
  %3235 = vmatprep.subr.mxu0 0.0
  %3236 = vmatpush1.msra.mxu0 %v2599
  %3237 = vmatprep.subr.mxu0 0.0
  %3238 = vmatpush1.msra.mxu0 %v2600
  %3239 = vmatprep.subr.mxu0 0.0
  %3240 = vmatpush1.msra.mxu0 0.0
  %3241 = vmatprep.subr.mxu0 0.0
  %3242 = vmatpush1.msra.mxu0 0.0
  %3243 = vmatprep.subr.mxu0 0.0
  %3244 = vmatpush1.msra.mxu0 0.0
  %3245 = vmatprep.subr.mxu0 0.0
  %3246 = vmatpush1.msra.mxu0 0.0
  %3247 = vmatprep.subr.mxu0 0.0
  %3248 = vmatpush1.msra.mxu0 0.0
  %3249 = vmatprep.subr.mxu0 0.0
  %3250 = vmatpush1.msra.mxu0 0.0
  %3251 = vmatprep.subr.mxu0 0.0
  %3252 = vmatpush1.msra.mxu0 0.0
  %3253 = vmatprep.subr.mxu0 0.0
  %3254 = vmatpush1.msra.mxu0 0.0
  %3255 = vmatprep.subr.mxu0 0.0
  %3256 = vmatpush1.msra.mxu0 0.0
  %3257 = vmatprep.subr.mxu0 0.0
  %3258 = vmatpush1.msra.mxu0 0.0
  %3259 = vmatprep.subr.mxu0 0.0
  %3260 = vmatpush1.msra.mxu0 0.0
  %3261 = vmatprep.subr.mxu0 0.0
  %3262 = vmatpush1.msra.mxu0 0.0
  %3263 = vmatprep.subr.mxu0 0.0
  %3264 = vmatpush1.msra.mxu0 0.0
  %3265 = vmatprep.subr.mxu0 0.0
  %3266 = vmatpush1.msra.mxu0 0.0
  %3267 = vmatprep.subr.mxu0 0.0
  %3268 = vmatpush1.msra.mxu0 0.0
  %3269 = vmatprep.subr.mxu0 0.0
  %3270 = vmatpush1.msra.mxu0 0.0
  %3271 = vmatprep.subr.mxu0 0.0
  %3272 = vmatpush1.msra.mxu0 0.0
  %3273 = vmatprep.subr.mxu0 0.0
  %3274 = vmatpush1.msra.mxu0 0.0
  %3275 = vmatprep.subr.mxu0 0.0
  %3276 = vmatpush1.msra.mxu0 0.0
  %3277 = vmatprep.subr.mxu0 0.0
  %3278 = vmatpush1.msra.mxu0 0.0
  %3279 = vmatprep.subr.mxu0 0.0
  %3280 = vmatpush1.msra.mxu0 0.0
  %3281 = vmatprep.subr.mxu0 0.0
  %3282 = vmatpush1.msra.mxu0 0.0
  %3283 = vmatprep.subr.mxu0 0.0
  %3284 = vmatpush1.msra.mxu0 0.0
  %3285 = vmatprep.subr.mxu0 0.0
  %3286 = vmatpush1.msra.mxu0 0.0
  %3287 = vmatprep.subr.mxu0 0.0
  %3288 = vmatpush1.msra.mxu0 0.0
  %3289 = vmatprep.subr.mxu0 0.0
  %3290 = vmatpush1.msra.mxu0 0.0
  %3291 = vmatprep.subr.mxu0 0.0
  %3292 = vmatpush1.msra.mxu0 0.0
  %3293 = vmatprep.subr.mxu0 0.0
  %3294 = vmatpush1.msra.mxu0 0.0
  %3295 = vmatprep.mubr.f32.mxu0 0.0
  %3296 = vmatmul.mubr.f32.gmra.mrb[0].mxu0 %v3089
  %v3297 = vpop.f32.mrb[0].mxu0
  %v3298 = vadd.f32 %v2607, %v3297
  %v3299 = vpop.f32.mrb[0].mxu0
  %3300 = vdwg.mxu0
  %v3302 = vrot.slane %v3158, 4
  %v3304 = vadd.f32 %v2400, %v3302
  %v3305 = vxor.u32 %v3304, 2147483648
  %v3306 = vmul.f32 %v3305, 1.442695
  %v3307 = vpow.pop %v3306
  %v3308 = vadd.f32 %v3307, 1.0
  %v3309 = vrcp.pop %v3308
  %v3310 = vmul.f32 1.0, %v3309
  %v3312 = vrot.slane %v3228, 4
  %v3314 = vadd.f32 %v2491, %v3312
  %v3315 = vxor.u32 %v3314, 2147483648
  %v3316 = vmul.f32 %v3315, 1.442695
  %v3317 = vpow.pop %v3316
  %v3318 = vadd.f32 %v3317, 1.0
  %v3319 = vrcp.pop %v3318
  %v3320 = vmul.f32 1.0, %v3319
  %v3322 = vrot.slane %v3298, 4
  %v3324 = vmul.f32 %v3310, %v3322
  %v3325 = vadd.f32 %v2579, %v3324
  %v3326 = vtanh.pop %v3325
  %v3327 = vsub.f32 1.0, %v3320
  %v3328 = vmul.f32 %v3327, %v3326
  %v3329 = vrot.slane %v3085, 6
  %v3331 = vmul.f32 %v3320, %v3329
  %v3332 = vadd.f32 %v3328, %v3331
  %3333 = vst.msk [vmem:[#allocation2] sm:$0x30] %vm1085, %v3332
  %v3335 = vrot.slane %v3332, 4
  %v3336 = vsel %vm355, %v3335, 0
  %3338 = vmatprep.subr.mxu0 0.0
  %3339 = vmatpush1.msra.mxu0 %v2587
  %3340 = vmatprep.subr.mxu0 0.0
  %3341 = vmatpush1.msra.mxu0 %v2588
  %3342 = vmatprep.subr.mxu0 0.0
  %3343 = vmatpush1.msra.mxu0 %v2589
  %3344 = vmatprep.subr.mxu0 0.0
  %3345 = vmatpush1.msra.mxu0 %v2590
  %3346 = vmatprep.subr.mxu0 0.0
  %3347 = vmatpush1.msra.mxu0 0.0
  %3348 = vmatprep.subr.mxu0 0.0
  %3349 = vmatpush1.msra.mxu0 0.0
  %3350 = vmatprep.subr.mxu0 0.0
  %3351 = vmatpush1.msra.mxu0 0.0
  %3352 = vmatprep.subr.mxu0 0.0
  %3353 = vmatpush1.msra.mxu0 0.0
  %3354 = vmatprep.subr.mxu0 0.0
  %3355 = vmatpush1.msra.mxu0 0.0
  %3356 = vmatprep.subr.mxu0 0.0
  %3357 = vmatpush1.msra.mxu0 0.0
  %3358 = vmatprep.subr.mxu0 0.0
  %3359 = vmatpush1.msra.mxu0 0.0
  %3360 = vmatprep.subr.mxu0 0.0
  %3361 = vmatpush1.msra.mxu0 0.0
  %3362 = vmatprep.subr.mxu0 0.0
  %3363 = vmatpush1.msra.mxu0 0.0
  %3364 = vmatprep.subr.mxu0 0.0
  %3365 = vmatpush1.msra.mxu0 0.0
  %3366 = vmatprep.subr.mxu0 0.0
  %3367 = vmatpush1.msra.mxu0 0.0
  %3368 = vmatprep.subr.mxu0 0.0
  %3369 = vmatpush1.msra.mxu0 0.0
  %3370 = vmatprep.subr.mxu0 0.0
  %3371 = vmatpush1.msra.mxu0 0.0
  %3372 = vmatprep.subr.mxu0 0.0
  %3373 = vmatpush1.msra.mxu0 0.0
  %3374 = vmatprep.subr.mxu0 0.0
  %3375 = vmatpush1.msra.mxu0 0.0
  %3376 = vmatprep.subr.mxu0 0.0
  %3377 = vmatpush1.msra.mxu0 0.0
  %3378 = vmatprep.subr.mxu0 0.0
  %3379 = vmatpush1.msra.mxu0 0.0
  %3380 = vmatprep.subr.mxu0 0.0
  %3381 = vmatpush1.msra.mxu0 0.0
  %3382 = vmatprep.subr.mxu0 0.0
  %3383 = vmatpush1.msra.mxu0 0.0
  %3384 = vmatprep.subr.mxu0 0.0
  %3385 = vmatpush1.msra.mxu0 0.0
  %3386 = vmatprep.subr.mxu0 0.0
  %3387 = vmatpush1.msra.mxu0 0.0
  %3388 = vmatprep.subr.mxu0 0.0
  %3389 = vmatpush1.msra.mxu0 0.0
  %3390 = vmatprep.subr.mxu0 0.0
  %3391 = vmatpush1.msra.mxu0 0.0
  %3392 = vmatprep.subr.mxu0 0.0
  %3393 = vmatpush1.msra.mxu0 0.0
  %3394 = vmatprep.subr.mxu0 0.0
  %3395 = vmatpush1.msra.mxu0 0.0
  %3396 = vmatprep.subr.mxu0 0.0
  %3397 = vmatpush1.msra.mxu0 0.0
  %3398 = vmatprep.subr.mxu0 0.0
  %3399 = vmatpush1.msra.mxu0 0.0
  %3400 = vmatprep.subr.mxu0 0.0
  %3401 = vmatpush1.msra.mxu0 0.0
  %3402 = vmatprep.mubr.f32.mxu0 0.0
  %3403 = vmatmul.mubr.f32.gmra.mrb[0].mxu0 %v3336
  %v3404 = vpop.f32.mrb[0].mxu0
  %v3405 = vadd.f32 0.0, %v3404
  %v3406 = vpop.f32.mrb[0].mxu0
  %3407 = vdwg.mxu0
  %3408 = vmatprep.subr.mxu0 0.0
  %3409 = vmatpush1.msra.mxu0 %v2592
  %3410 = vmatprep.subr.mxu0 0.0
  %3411 = vmatpush1.msra.mxu0 %v2593
  %3412 = vmatprep.subr.mxu0 0.0
  %3413 = vmatpush1.msra.mxu0 %v2594
  %3414 = vmatprep.subr.mxu0 0.0
  %3415 = vmatpush1.msra.mxu0 %v2595
  %3416 = vmatprep.subr.mxu0 0.0
  %3417 = vmatpush1.msra.mxu0 0.0
  %3418 = vmatprep.subr.mxu0 0.0
  %3419 = vmatpush1.msra.mxu0 0.0
  %3420 = vmatprep.subr.mxu0 0.0
  %3421 = vmatpush1.msra.mxu0 0.0
  %3422 = vmatprep.subr.mxu0 0.0
  %3423 = vmatpush1.msra.mxu0 0.0
  %3424 = vmatprep.subr.mxu0 0.0
  %3425 = vmatpush1.msra.mxu0 0.0
  %3426 = vmatprep.subr.mxu0 0.0
  %3427 = vmatpush1.msra.mxu0 0.0
  %3428 = vmatprep.subr.mxu0 0.0
  %3429 = vmatpush1.msra.mxu0 0.0
  %3430 = vmatprep.subr.mxu0 0.0
  %3431 = vmatpush1.msra.mxu0 0.0
  %3432 = vmatprep.subr.mxu0 0.0
  %3433 = vmatpush1.msra.mxu0 0.0
  %3434 = vmatprep.subr.mxu0 0.0
  %3435 = vmatpush1.msra.mxu0 0.0
  %3436 = vmatprep.subr.mxu0 0.0
  %3437 = vmatpush1.msra.mxu0 0.0
  %3438 = vmatprep.subr.mxu0 0.0
  %3439 = vmatpush1.msra.mxu0 0.0
  %3440 = vmatprep.subr.mxu0 0.0
  %3441 = vmatpush1.msra.mxu0 0.0
  %3442 = vmatprep.subr.mxu0 0.0
  %3443 = vmatpush1.msra.mxu0 0.0
  %3444 = vmatprep.subr.mxu0 0.0
  %3445 = vmatpush1.msra.mxu0 0.0
  %3446 = vmatprep.subr.mxu0 0.0
  %3447 = vmatpush1.msra.mxu0 0.0
  %3448 = vmatprep.subr.mxu0 0.0
  %3449 = vmatpush1.msra.mxu0 0.0
  %3450 = vmatprep.subr.mxu0 0.0
  %3451 = vmatpush1.msra.mxu0 0.0
  %3452 = vmatprep.subr.mxu0 0.0
  %3453 = vmatpush1.msra.mxu0 0.0
  %3454 = vmatprep.subr.mxu0 0.0
  %3455 = vmatpush1.msra.mxu0 0.0
  %3456 = vmatprep.subr.mxu0 0.0
  %3457 = vmatpush1.msra.mxu0 0.0
  %3458 = vmatprep.subr.mxu0 0.0
  %3459 = vmatpush1.msra.mxu0 0.0
  %3460 = vmatprep.subr.mxu0 0.0
  %3461 = vmatpush1.msra.mxu0 0.0
  %3462 = vmatprep.subr.mxu0 0.0
  %3463 = vmatpush1.msra.mxu0 0.0
  %3464 = vmatprep.subr.mxu0 0.0
  %3465 = vmatpush1.msra.mxu0 0.0
  %3466 = vmatprep.subr.mxu0 0.0
  %3467 = vmatpush1.msra.mxu0 0.0
  %3468 = vmatprep.subr.mxu0 0.0
  %3469 = vmatpush1.msra.mxu0 0.0
  %3470 = vmatprep.subr.mxu0 0.0
  %3471 = vmatpush1.msra.mxu0 0.0
  %3472 = vmatprep.mubr.f32.mxu0 0.0
  %3473 = vmatmul.mubr.f32.gmra.mrb[0].mxu0 %v3336
  %v3474 = vpop.f32.mrb[0].mxu0
  %v3475 = vadd.f32 0.0, %v3474
  %v3476 = vpop.f32.mrb[0].mxu0
  %3477 = vdwg.mxu0
  %3478 = vmatprep.subr.mxu0 0.0
  %3479 = vmatpush1.msra.mxu0 %v2597
  %3480 = vmatprep.subr.mxu0 0.0
  %3481 = vmatpush1.msra.mxu0 %v2598
  %3482 = vmatprep.subr.mxu0 0.0
  %3483 = vmatpush1.msra.mxu0 %v2599
  %3484 = vmatprep.subr.mxu0 0.0
  %3485 = vmatpush1.msra.mxu0 %v2600
  %3486 = vmatprep.subr.mxu0 0.0
  %3487 = vmatpush1.msra.mxu0 0.0
  %3488 = vmatprep.subr.mxu0 0.0
  %3489 = vmatpush1.msra.mxu0 0.0
  %3490 = vmatprep.subr.mxu0 0.0
  %3491 = vmatpush1.msra.mxu0 0.0
  %3492 = vmatprep.subr.mxu0 0.0
  %3493 = vmatpush1.msra.mxu0 0.0
  %3494 = vmatprep.subr.mxu0 0.0
  %3495 = vmatpush1.msra.mxu0 0.0
  %3496 = vmatprep.subr.mxu0 0.0
  %3497 = vmatpush1.msra.mxu0 0.0
  %3498 = vmatprep.subr.mxu0 0.0
  %3499 = vmatpush1.msra.mxu0 0.0
  %3500 = vmatprep.subr.mxu0 0.0
  %3501 = vmatpush1.msra.mxu0 0.0
  %3502 = vmatprep.subr.mxu0 0.0
  %3503 = vmatpush1.msra.mxu0 0.0
  %3504 = vmatprep.subr.mxu0 0.0
  %3505 = vmatpush1.msra.mxu0 0.0
  %3506 = vmatprep.subr.mxu0 0.0
  %3507 = vmatpush1.msra.mxu0 0.0
  %3508 = vmatprep.subr.mxu0 0.0
  %3509 = vmatpush1.msra.mxu0 0.0
  %3510 = vmatprep.subr.mxu0 0.0
  %3511 = vmatpush1.msra.mxu0 0.0
  %3512 = vmatprep.subr.mxu0 0.0
  %3513 = vmatpush1.msra.mxu0 0.0
  %3514 = vmatprep.subr.mxu0 0.0
  %3515 = vmatpush1.msra.mxu0 0.0
  %3516 = vmatprep.subr.mxu0 0.0
  %3517 = vmatpush1.msra.mxu0 0.0
  %3518 = vmatprep.subr.mxu0 0.0
  %3519 = vmatpush1.msra.mxu0 0.0
  %3520 = vmatprep.subr.mxu0 0.0
  %3521 = vmatpush1.msra.mxu0 0.0
  %3522 = vmatprep.subr.mxu0 0.0
  %3523 = vmatpush1.msra.mxu0 0.0
  %3524 = vmatprep.subr.mxu0 0.0
  %3525 = vmatpush1.msra.mxu0 0.0
  %3526 = vmatprep.subr.mxu0 0.0
  %3527 = vmatpush1.msra.mxu0 0.0
  %3528 = vmatprep.subr.mxu0 0.0
  %3529 = vmatpush1.msra.mxu0 0.0
  %3530 = vmatprep.subr.mxu0 0.0
  %3531 = vmatpush1.msra.mxu0 0.0
  %3532 = vmatprep.subr.mxu0 0.0
  %3533 = vmatpush1.msra.mxu0 0.0
  %3534 = vmatprep.subr.mxu0 0.0
  %3535 = vmatpush1.msra.mxu0 0.0
  %3536 = vmatprep.subr.mxu0 0.0
  %3537 = vmatpush1.msra.mxu0 0.0
  %3538 = vmatprep.subr.mxu0 0.0
  %3539 = vmatpush1.msra.mxu0 0.0
  %3540 = vmatprep.subr.mxu0 0.0
  %3541 = vmatpush1.msra.mxu0 0.0
  %3542 = vmatprep.mubr.f32.mxu0 0.0
  %3543 = vmatmul.mubr.f32.gmra.mrb[0].mxu0 %v3336
  %v3544 = vpop.f32.mrb[0].mxu0
  %v3545 = vadd.f32 %v2607, %v3544
  %v3546 = vpop.f32.mrb[0].mxu0
  %3547 = vdwg.mxu0
  %v3549 = vrot.slane %v3405, 2
  %v3551 = vadd.f32 %v2400, %v3549
  %v3552 = vxor.u32 %v3551, 2147483648
  %v3553 = vmul.f32 %v3552, 1.442695
  %v3554 = vpow.pop %v3553
  %v3555 = vadd.f32 %v3554, 1.0
  %v3556 = vrcp.pop %v3555
  %v3557 = vmul.f32 1.0, %v3556
  %v3559 = vrot.slane %v3475, 2
  %v3561 = vadd.f32 %v2491, %v3559
  %v3562 = vxor.u32 %v3561, 2147483648
  %v3563 = vmul.f32 %v3562, 1.442695
  %v3564 = vpow.pop %v3563
  %v3565 = vadd.f32 %v3564, 1.0
  %v3566 = vrcp.pop %v3565
  %v3567 = vmul.f32 1.0, %v3566
  %v3569 = vrot.slane %v3545, 2
  %v3571 = vmul.f32 %v3557, %v3569
  %v3572 = vadd.f32 %v2579, %v3571
  %v3573 = vtanh.pop %v3572
  %v3574 = vsub.f32 1.0, %v3567
  %v3575 = vmul.f32 %v3574, %v3573
  %v3576 = vrot.slane %v3332, 6
  %v3578 = vmul.f32 %v3567, %v3576
  %v3579 = vadd.f32 %v3575, %v3578
  %3580 = vst.msk [vmem:[#allocation2] sm:$0xc0] %vm1333, %v3579
  %v3582 = vrot.slane %v3579, 6
  %v3583 = vsel %vm355, %v3582, 0
  %3585 = vmatprep.subr.mxu0 0.0
  %3586 = vmatpush1.msra.mxu0 %v2587
  %3587 = vmatprep.subr.mxu0 0.0
  %3588 = vmatpush1.msra.mxu0 %v2588
  %3589 = vmatprep.subr.mxu0 0.0
  %3590 = vmatpush1.msra.mxu0 %v2589
  %3591 = vmatprep.subr.mxu0 0.0
  %3592 = vmatpush1.msra.mxu0 %v2590
  %3593 = vmatprep.subr.mxu0 0.0
  %3594 = vmatpush1.msra.mxu0 0.0
  %3595 = vmatprep.subr.mxu0 0.0
  %3596 = vmatpush1.msra.mxu0 0.0
  %3597 = vmatprep.subr.mxu0 0.0
  %3598 = vmatpush1.msra.mxu0 0.0
  %3599 = vmatprep.subr.mxu0 0.0
  %3600 = vmatpush1.msra.mxu0 0.0
  %3601 = vmatprep.subr.mxu0 0.0
  %3602 = vmatpush1.msra.mxu0 0.0
  %3603 = vmatprep.subr.mxu0 0.0
  %3604 = vmatpush1.msra.mxu0 0.0
  %3605 = vmatprep.subr.mxu0 0.0
  %3606 = vmatpush1.msra.mxu0 0.0
  %3607 = vmatprep.subr.mxu0 0.0
  %3608 = vmatpush1.msra.mxu0 0.0
  %3609 = vmatprep.subr.mxu0 0.0
  %3610 = vmatpush1.msra.mxu0 0.0
  %3611 = vmatprep.subr.mxu0 0.0
  %3612 = vmatpush1.msra.mxu0 0.0
  %3613 = vmatprep.subr.mxu0 0.0
  %3614 = vmatpush1.msra.mxu0 0.0
  %3615 = vmatprep.subr.mxu0 0.0
  %3616 = vmatpush1.msra.mxu0 0.0
  %3617 = vmatprep.subr.mxu0 0.0
  %3618 = vmatpush1.msra.mxu0 0.0
  %3619 = vmatprep.subr.mxu0 0.0
  %3620 = vmatpush1.msra.mxu0 0.0
  %3621 = vmatprep.subr.mxu0 0.0
  %3622 = vmatpush1.msra.mxu0 0.0
  %3623 = vmatprep.subr.mxu0 0.0
  %3624 = vmatpush1.msra.mxu0 0.0
  %3625 = vmatprep.subr.mxu0 0.0
  %3626 = vmatpush1.msra.mxu0 0.0
  %3627 = vmatprep.subr.mxu0 0.0
  %3628 = vmatpush1.msra.mxu0 0.0
  %3629 = vmatprep.subr.mxu0 0.0
  %3630 = vmatpush1.msra.mxu0 0.0
  %3631 = vmatprep.subr.mxu0 0.0
  %3632 = vmatpush1.msra.mxu0 0.0
  %3633 = vmatprep.subr.mxu0 0.0
  %3634 = vmatpush1.msra.mxu0 0.0
  %3635 = vmatprep.subr.mxu0 0.0
  %3636 = vmatpush1.msra.mxu0 0.0
  %3637 = vmatprep.subr.mxu0 0.0
  %3638 = vmatpush1.msra.mxu0 0.0
  %3639 = vmatprep.subr.mxu0 0.0
  %3640 = vmatpush1.msra.mxu0 0.0
  %3641 = vmatprep.subr.mxu0 0.0
  %3642 = vmatpush1.msra.mxu0 0.0
  %3643 = vmatprep.subr.mxu0 0.0
  %3644 = vmatpush1.msra.mxu0 0.0
  %3645 = vmatprep.subr.mxu0 0.0
  %3646 = vmatpush1.msra.mxu0 0.0
  %3647 = vmatprep.subr.mxu0 0.0
  %3648 = vmatpush1.msra.mxu0 0.0
  %3649 = vmatprep.mubr.f32.mxu0 0.0
  %3650 = vmatmul.mubr.f32.gmra.mrb[0].mxu0 %v3583
  %v3651 = vpop.f32.mrb[0].mxu0
  %v3652 = vadd.f32 0.0, %v3651
  %v3653 = vpop.f32.mrb[0].mxu0
  %3654 = vdwg.mxu0
  %3655 = vmatprep.subr.mxu0 0.0
  %3656 = vmatpush1.msra.mxu0 %v2592
  %3657 = vmatprep.subr.mxu0 0.0
  %3658 = vmatpush1.msra.mxu0 %v2593
  %3659 = vmatprep.subr.mxu0 0.0
  %3660 = vmatpush1.msra.mxu0 %v2594
  %3661 = vmatprep.subr.mxu0 0.0
  %3662 = vmatpush1.msra.mxu0 %v2595
  %3663 = vmatprep.subr.mxu0 0.0
  %3664 = vmatpush1.msra.mxu0 0.0
  %3665 = vmatprep.subr.mxu0 0.0
  %3666 = vmatpush1.msra.mxu0 0.0
  %3667 = vmatprep.subr.mxu0 0.0
  %3668 = vmatpush1.msra.mxu0 0.0
  %3669 = vmatprep.subr.mxu0 0.0
  %3670 = vmatpush1.msra.mxu0 0.0
  %3671 = vmatprep.subr.mxu0 0.0
  %3672 = vmatpush1.msra.mxu0 0.0
  %3673 = vmatprep.subr.mxu0 0.0
  %3674 = vmatpush1.msra.mxu0 0.0
  %3675 = vmatprep.subr.mxu0 0.0
  %3676 = vmatpush1.msra.mxu0 0.0
  %3677 = vmatprep.subr.mxu0 0.0
  %3678 = vmatpush1.msra.mxu0 0.0
  %3679 = vmatprep.subr.mxu0 0.0
  %3680 = vmatpush1.msra.mxu0 0.0
  %3681 = vmatprep.subr.mxu0 0.0
  %3682 = vmatpush1.msra.mxu0 0.0
  %3683 = vmatprep.subr.mxu0 0.0
  %3684 = vmatpush1.msra.mxu0 0.0
  %3685 = vmatprep.subr.mxu0 0.0
  %3686 = vmatpush1.msra.mxu0 0.0
  %3687 = vmatprep.subr.mxu0 0.0
  %3688 = vmatpush1.msra.mxu0 0.0
  %3689 = vmatprep.subr.mxu0 0.0
  %3690 = vmatpush1.msra.mxu0 0.0
  %3691 = vmatprep.subr.mxu0 0.0
  %3692 = vmatpush1.msra.mxu0 0.0
  %3693 = vmatprep.subr.mxu0 0.0
  %3694 = vmatpush1.msra.mxu0 0.0
  %3695 = vmatprep.subr.mxu0 0.0
  %3696 = vmatpush1.msra.mxu0 0.0
  %3697 = vmatprep.subr.mxu0 0.0
  %3698 = vmatpush1.msra.mxu0 0.0
  %3699 = vmatprep.subr.mxu0 0.0
  %3700 = vmatpush1.msra.mxu0 0.0
  %3701 = vmatprep.subr.mxu0 0.0
  %3702 = vmatpush1.msra.mxu0 0.0
  %3703 = vmatprep.subr.mxu0 0.0
  %3704 = vmatpush1.msra.mxu0 0.0
  %3705 = vmatprep.subr.mxu0 0.0
  %3706 = vmatpush1.msra.mxu0 0.0
  %3707 = vmatprep.subr.mxu0 0.0
  %3708 = vmatpush1.msra.mxu0 0.0
  %3709 = vmatprep.subr.mxu0 0.0
  %3710 = vmatpush1.msra.mxu0 0.0
  %3711 = vmatprep.subr.mxu0 0.0
  %3712 = vmatpush1.msra.mxu0 0.0
  %3713 = vmatprep.subr.mxu0 0.0
  %3714 = vmatpush1.msra.mxu0 0.0
  %3715 = vmatprep.subr.mxu0 0.0
  %3716 = vmatpush1.msra.mxu0 0.0
  %3717 = vmatprep.subr.mxu0 0.0
  %3718 = vmatpush1.msra.mxu0 0.0
  %3719 = vmatprep.mubr.f32.mxu0 0.0
  %3720 = vmatmul.mubr.f32.gmra.mrb[0].mxu0 %v3583
  %v3721 = vpop.f32.mrb[0].mxu0
  %v3722 = vadd.f32 0.0, %v3721
  %v3723 = vpop.f32.mrb[0].mxu0
  %3724 = vdwg.mxu0
  %3725 = vmatprep.subr.mxu0 0.0
  %3726 = vmatpush1.msra.mxu0 %v2597
  %3727 = vmatprep.subr.mxu0 0.0
  %3728 = vmatpush1.msra.mxu0 %v2598
  %3729 = vmatprep.subr.mxu0 0.0
  %3730 = vmatpush1.msra.mxu0 %v2599
  %3731 = vmatprep.subr.mxu0 0.0
  %3732 = vmatpush1.msra.mxu0 %v2600
  %3733 = vmatprep.subr.mxu0 0.0
  %3734 = vmatpush1.msra.mxu0 0.0
  %3735 = vmatprep.subr.mxu0 0.0
  %3736 = vmatpush1.msra.mxu0 0.0
  %3737 = vmatprep.subr.mxu0 0.0
  %3738 = vmatpush1.msra.mxu0 0.0
  %3739 = vmatprep.subr.mxu0 0.0
  %3740 = vmatpush1.msra.mxu0 0.0
  %3741 = vmatprep.subr.mxu0 0.0
  %3742 = vmatpush1.msra.mxu0 0.0
  %3743 = vmatprep.subr.mxu0 0.0
  %3744 = vmatpush1.msra.mxu0 0.0
  %3745 = vmatprep.subr.mxu0 0.0
  %3746 = vmatpush1.msra.mxu0 0.0
  %3747 = vmatprep.subr.mxu0 0.0
  %3748 = vmatpush1.msra.mxu0 0.0
  %3749 = vmatprep.subr.mxu0 0.0
  %3750 = vmatpush1.msra.mxu0 0.0
  %3751 = vmatprep.subr.mxu0 0.0
  %3752 = vmatpush1.msra.mxu0 0.0
  %3753 = vmatprep.subr.mxu0 0.0
  %3754 = vmatpush1.msra.mxu0 0.0
  %3755 = vmatprep.subr.mxu0 0.0
  %3756 = vmatpush1.msra.mxu0 0.0
  %3757 = vmatprep.subr.mxu0 0.0
  %3758 = vmatpush1.msra.mxu0 0.0
  %3759 = vmatprep.subr.mxu0 0.0
  %3760 = vmatpush1.msra.mxu0 0.0
  %3761 = vmatprep.subr.mxu0 0.0
  %3762 = vmatpush1.msra.mxu0 0.0
  %3763 = vmatprep.subr.mxu0 0.0
  %3764 = vmatpush1.msra.mxu0 0.0
  %3765 = vmatprep.subr.mxu0 0.0
  %3766 = vmatpush1.msra.mxu0 0.0
  %3767 = vmatprep.subr.mxu0 0.0
  %3768 = vmatpush1.msra.mxu0 0.0
  %3769 = vmatprep.subr.mxu0 0.0
  %3770 = vmatpush1.msra.mxu0 0.0
  %3771 = vmatprep.subr.mxu0 0.0
  %3772 = vmatpush1.msra.mxu0 0.0
  %3773 = vmatprep.subr.mxu0 0.0
  %3774 = vmatpush1.msra.mxu0 0.0
  %3775 = vmatprep.subr.mxu0 0.0
  %3776 = vmatpush1.msra.mxu0 0.0
  %3777 = vmatprep.subr.mxu0 0.0
  %3778 = vmatpush1.msra.mxu0 0.0
  %3779 = vmatprep.subr.mxu0 0.0
  %3780 = vmatpush1.msra.mxu0 0.0
  %3781 = vmatprep.subr.mxu0 0.0
  %3782 = vmatpush1.msra.mxu0 0.0
  %3783 = vmatprep.subr.mxu0 0.0
  %3784 = vmatpush1.msra.mxu0 0.0
  %3785 = vmatprep.subr.mxu0 0.0
  %3786 = vmatpush1.msra.mxu0 0.0
  %3787 = vmatprep.subr.mxu0 0.0
  %3788 = vmatpush1.msra.mxu0 0.0
  %3789 = vmatprep.mubr.f32.mxu0 0.0
  %3790 = vmatmul.mubr.f32.gmra.mrb[0].mxu0 %v3583
  %v3791 = vpop.f32.mrb[0].mxu0
  %v3792 = vadd.f32 %v2607, %v3791
  %v3793 = vpop.f32.mrb[0].mxu0
  %3794 = vdwg.mxu0
  %v3795 = vadd.f32 %v2405, %v3652
  %v3796 = vxor.u32 %v3795, 2147483648
  %v3797 = vmul.f32 %v3796, 1.442695
  %v3798 = vpow.pop %v3797
  %v3799 = vadd.f32 %v3798, 1.0
  %v3800 = vrcp.pop %v3799
  %v3801 = vmul.f32 1.0, %v3800
  %v3802 = vadd.f32 %v2496, %v3722
  %v3803 = vxor.u32 %v3802, 2147483648
  %v3804 = vmul.f32 %v3803, 1.442695
  %v3805 = vpow.pop %v3804
  %v3806 = vadd.f32 %v3805, 1.0
  %v3807 = vrcp.pop %v3806
  %v3808 = vmul.f32 1.0, %v3807
  %v3809 = vmul.f32 %v3801, %v3792
  %v3810 = vadd.f32 %v2584, %v3809
  %v3811 = vtanh.pop %v3810
  %v3812 = vsub.f32 1.0, %v3808
  %v3813 = vmul.f32 %v3812, %v3811
  %v3815 = vmul.f32 %v3808, %v3582
  %v3816 = vadd.f32 %v3813, %v3815
  %3817 = vst.msk [vmem:[#allocation2 + $0x8] sm:$0x3] %vm590, %v3816
  %v3819 = vsel %vm355, %v3816, 0
  %3821 = vmatprep.subr.mxu0 0.0
  %3822 = vmatpush1.msra.mxu0 %v2587
  %3823 = vmatprep.subr.mxu0 0.0
  %3824 = vmatpush1.msra.mxu0 %v2588
  %3825 = vmatprep.subr.mxu0 0.0
  %3826 = vmatpush1.msra.mxu0 %v2589
  %3827 = vmatprep.subr.mxu0 0.0
  %3828 = vmatpush1.msra.mxu0 %v2590
  %3829 = vmatprep.subr.mxu0 0.0
  %3830 = vmatpush1.msra.mxu0 0.0
  %3831 = vmatprep.subr.mxu0 0.0
  %3832 = vmatpush1.msra.mxu0 0.0
  %3833 = vmatprep.subr.mxu0 0.0
  %3834 = vmatpush1.msra.mxu0 0.0
  %3835 = vmatprep.subr.mxu0 0.0
  %3836 = vmatpush1.msra.mxu0 0.0
  %3837 = vmatprep.subr.mxu0 0.0
  %3838 = vmatpush1.msra.mxu0 0.0
  %3839 = vmatprep.subr.mxu0 0.0
  %3840 = vmatpush1.msra.mxu0 0.0
  %3841 = vmatprep.subr.mxu0 0.0
  %3842 = vmatpush1.msra.mxu0 0.0
  %3843 = vmatprep.subr.mxu0 0.0
  %3844 = vmatpush1.msra.mxu0 0.0
  %3845 = vmatprep.subr.mxu0 0.0
  %3846 = vmatpush1.msra.mxu0 0.0
  %3847 = vmatprep.subr.mxu0 0.0
  %3848 = vmatpush1.msra.mxu0 0.0
  %3849 = vmatprep.subr.mxu0 0.0
  %3850 = vmatpush1.msra.mxu0 0.0
  %3851 = vmatprep.subr.mxu0 0.0
  %3852 = vmatpush1.msra.mxu0 0.0
  %3853 = vmatprep.subr.mxu0 0.0
  %3854 = vmatpush1.msra.mxu0 0.0
  %3855 = vmatprep.subr.mxu0 0.0
  %3856 = vmatpush1.msra.mxu0 0.0
  %3857 = vmatprep.subr.mxu0 0.0
  %3858 = vmatpush1.msra.mxu0 0.0
  %3859 = vmatprep.subr.mxu0 0.0
  %3860 = vmatpush1.msra.mxu0 0.0
  %3861 = vmatprep.subr.mxu0 0.0
  %3862 = vmatpush1.msra.mxu0 0.0
  %3863 = vmatprep.subr.mxu0 0.0
  %3864 = vmatpush1.msra.mxu0 0.0
  %3865 = vmatprep.subr.mxu0 0.0
  %3866 = vmatpush1.msra.mxu0 0.0
  %3867 = vmatprep.subr.mxu0 0.0
  %3868 = vmatpush1.msra.mxu0 0.0
  %3869 = vmatprep.subr.mxu0 0.0
  %3870 = vmatpush1.msra.mxu0 0.0
  %3871 = vmatprep.subr.mxu0 0.0
  %3872 = vmatpush1.msra.mxu0 0.0
  %3873 = vmatprep.subr.mxu0 0.0
  %3874 = vmatpush1.msra.mxu0 0.0
  %3875 = vmatprep.subr.mxu0 0.0
  %3876 = vmatpush1.msra.mxu0 0.0
  %3877 = vmatprep.subr.mxu0 0.0
  %3878 = vmatpush1.msra.mxu0 0.0
  %3879 = vmatprep.subr.mxu0 0.0
  %3880 = vmatpush1.msra.mxu0 0.0
  %3881 = vmatprep.subr.mxu0 0.0
  %3882 = vmatpush1.msra.mxu0 0.0
  %3883 = vmatprep.subr.mxu0 0.0
  %3884 = vmatpush1.msra.mxu0 0.0
  %3885 = vmatprep.mubr.f32.mxu0 0.0
  %3886 = vmatmul.mubr.f32.gmra.mrb[0].mxu0 %v3819
  %v3887 = vpop.f32.mrb[0].mxu0
  %v3888 = vadd.f32 0.0, %v3887
  %v3889 = vpop.f32.mrb[0].mxu0
  %3890 = vdwg.mxu0
  %3891 = vmatprep.subr.mxu0 0.0
  %3892 = vmatpush1.msra.mxu0 %v2592
  %3893 = vmatprep.subr.mxu0 0.0
  %3894 = vmatpush1.msra.mxu0 %v2593
  %3895 = vmatprep.subr.mxu0 0.0
  %3896 = vmatpush1.msra.mxu0 %v2594
  %3897 = vmatprep.subr.mxu0 0.0
  %3898 = vmatpush1.msra.mxu0 %v2595
  %3899 = vmatprep.subr.mxu0 0.0
  %3900 = vmatpush1.msra.mxu0 0.0
  %3901 = vmatprep.subr.mxu0 0.0
  %3902 = vmatpush1.msra.mxu0 0.0
  %3903 = vmatprep.subr.mxu0 0.0
  %3904 = vmatpush1.msra.mxu0 0.0
  %3905 = vmatprep.subr.mxu0 0.0
  %3906 = vmatpush1.msra.mxu0 0.0
  %3907 = vmatprep.subr.mxu0 0.0
  %3908 = vmatpush1.msra.mxu0 0.0
  %3909 = vmatprep.subr.mxu0 0.0
  %3910 = vmatpush1.msra.mxu0 0.0
  %3911 = vmatprep.subr.mxu0 0.0
  %3912 = vmatpush1.msra.mxu0 0.0
  %3913 = vmatprep.subr.mxu0 0.0
  %3914 = vmatpush1.msra.mxu0 0.0
  %3915 = vmatprep.subr.mxu0 0.0
  %3916 = vmatpush1.msra.mxu0 0.0
  %3917 = vmatprep.subr.mxu0 0.0
  %3918 = vmatpush1.msra.mxu0 0.0
  %3919 = vmatprep.subr.mxu0 0.0
  %3920 = vmatpush1.msra.mxu0 0.0
  %3921 = vmatprep.subr.mxu0 0.0
  %3922 = vmatpush1.msra.mxu0 0.0
  %3923 = vmatprep.subr.mxu0 0.0
  %3924 = vmatpush1.msra.mxu0 0.0
  %3925 = vmatprep.subr.mxu0 0.0
  %3926 = vmatpush1.msra.mxu0 0.0
  %3927 = vmatprep.subr.mxu0 0.0
  %3928 = vmatpush1.msra.mxu0 0.0
  %3929 = vmatprep.subr.mxu0 0.0
  %3930 = vmatpush1.msra.mxu0 0.0
  %3931 = vmatprep.subr.mxu0 0.0
  %3932 = vmatpush1.msra.mxu0 0.0
  %3933 = vmatprep.subr.mxu0 0.0
  %3934 = vmatpush1.msra.mxu0 0.0
  %3935 = vmatprep.subr.mxu0 0.0
  %3936 = vmatpush1.msra.mxu0 0.0
  %3937 = vmatprep.subr.mxu0 0.0
  %3938 = vmatpush1.msra.mxu0 0.0
  %3939 = vmatprep.subr.mxu0 0.0
  %3940 = vmatpush1.msra.mxu0 0.0
  %3941 = vmatprep.subr.mxu0 0.0
  %3942 = vmatpush1.msra.mxu0 0.0
  %3943 = vmatprep.subr.mxu0 0.0
  %3944 = vmatpush1.msra.mxu0 0.0
  %3945 = vmatprep.subr.mxu0 0.0
  %3946 = vmatpush1.msra.mxu0 0.0
  %3947 = vmatprep.subr.mxu0 0.0
  %3948 = vmatpush1.msra.mxu0 0.0
  %3949 = vmatprep.subr.mxu0 0.0
  %3950 = vmatpush1.msra.mxu0 0.0
  %3951 = vmatprep.subr.mxu0 0.0
  %3952 = vmatpush1.msra.mxu0 0.0
  %3953 = vmatprep.subr.mxu0 0.0
  %3954 = vmatpush1.msra.mxu0 0.0
  %3955 = vmatprep.mubr.f32.mxu0 0.0
  %3956 = vmatmul.mubr.f32.gmra.mrb[0].mxu0 %v3819
  %v3957 = vpop.f32.mrb[0].mxu0
  %v3958 = vadd.f32 0.0, %v3957
  %v3959 = vpop.f32.mrb[0].mxu0
  %3960 = vdwg.mxu0
  %3961 = vmatprep.subr.mxu0 0.0
  %3962 = vmatpush1.msra.mxu0 %v2597
  %3963 = vmatprep.subr.mxu0 0.0
  %3964 = vmatpush1.msra.mxu0 %v2598
  %3965 = vmatprep.subr.mxu0 0.0
  %3966 = vmatpush1.msra.mxu0 %v2599
  %3967 = vmatprep.subr.mxu0 0.0
  %3968 = vmatpush1.msra.mxu0 %v2600
  %3969 = vmatprep.subr.mxu0 0.0
  %3970 = vmatpush1.msra.mxu0 0.0
  %3971 = vmatprep.subr.mxu0 0.0
  %3972 = vmatpush1.msra.mxu0 0.0
  %3973 = vmatprep.subr.mxu0 0.0
  %3974 = vmatpush1.msra.mxu0 0.0
  %3975 = vmatprep.subr.mxu0 0.0
  %3976 = vmatpush1.msra.mxu0 0.0
  %3977 = vmatprep.subr.mxu0 0.0
  %3978 = vmatpush1.msra.mxu0 0.0
  %3979 = vmatprep.subr.mxu0 0.0
  %3980 = vmatpush1.msra.mxu0 0.0
  %3981 = vmatprep.subr.mxu0 0.0
  %3982 = vmatpush1.msra.mxu0 0.0
  %3983 = vmatprep.subr.mxu0 0.0
  %3984 = vmatpush1.msra.mxu0 0.0
  %3985 = vmatprep.subr.mxu0 0.0
  %3986 = vmatpush1.msra.mxu0 0.0
  %3987 = vmatprep.subr.mxu0 0.0
  %3988 = vmatpush1.msra.mxu0 0.0
  %3989 = vmatprep.subr.mxu0 0.0
  %3990 = vmatpush1.msra.mxu0 0.0
  %3991 = vmatprep.subr.mxu0 0.0
  %3992 = vmatpush1.msra.mxu0 0.0
  %3993 = vmatprep.subr.mxu0 0.0
  %3994 = vmatpush1.msra.mxu0 0.0
  %3995 = vmatprep.subr.mxu0 0.0
  %3996 = vmatpush1.msra.mxu0 0.0
  %3997 = vmatprep.subr.mxu0 0.0
  %3998 = vmatpush1.msra.mxu0 0.0
  %3999 = vmatprep.subr.mxu0 0.0
  %4000 = vmatpush1.msra.mxu0 0.0
  %4001 = vmatprep.subr.mxu0 0.0
  %4002 = vmatpush1.msra.mxu0 0.0
  %4003 = vmatprep.subr.mxu0 0.0
  %4004 = vmatpush1.msra.mxu0 0.0
  %4005 = vmatprep.subr.mxu0 0.0
  %4006 = vmatpush1.msra.mxu0 0.0
  %4007 = vmatprep.subr.mxu0 0.0
  %4008 = vmatpush1.msra.mxu0 0.0
  %4009 = vmatprep.subr.mxu0 0.0
  %4010 = vmatpush1.msra.mxu0 0.0
  %4011 = vmatprep.subr.mxu0 0.0
  %4012 = vmatpush1.msra.mxu0 0.0
  %4013 = vmatprep.subr.mxu0 0.0
  %4014 = vmatpush1.msra.mxu0 0.0
  %4015 = vmatprep.subr.mxu0 0.0
  %4016 = vmatpush1.msra.mxu0 0.0
  %4017 = vmatprep.subr.mxu0 0.0
  %4018 = vmatpush1.msra.mxu0 0.0
  %4019 = vmatprep.subr.mxu0 0.0
  %4020 = vmatpush1.msra.mxu0 0.0
  %4021 = vmatprep.subr.mxu0 0.0
  %4022 = vmatpush1.msra.mxu0 0.0
  %4023 = vmatprep.subr.mxu0 0.0
  %4024 = vmatpush1.msra.mxu0 0.0
  %4025 = vmatprep.mubr.f32.mxu0 0.0
  %4026 = vmatmul.mubr.f32.gmra.mrb[0].mxu0 %v3819
  %v4027 = vpop.f32.mrb[0].mxu0
  %v4028 = vadd.f32 %v2607, %v4027
  %v4029 = vpop.f32.mrb[0].mxu0
  %4030 = vdwg.mxu0
  %v4032 = vrot.slane %v3888, 6
  %v4034 = vadd.f32 %v2405, %v4032
  %v4035 = vxor.u32 %v4034, 2147483648
  %v4036 = vmul.f32 %v4035, 1.442695
  %v4037 = vpow.pop %v4036
  %v4038 = vadd.f32 %v4037, 1.0
  %v4039 = vrcp.pop %v4038
  %v4040 = vmul.f32 1.0, %v4039
  %v4042 = vrot.slane %v3958, 6
  %v4044 = vadd.f32 %v2496, %v4042
  %v4045 = vxor.u32 %v4044, 2147483648
  %v4046 = vmul.f32 %v4045, 1.442695
  %v4047 = vpow.pop %v4046
  %v4048 = vadd.f32 %v4047, 1.0
  %v4049 = vrcp.pop %v4048
  %v4050 = vmul.f32 1.0, %v4049
  %v4052 = vrot.slane %v4028, 6
  %v4054 = vmul.f32 %v4040, %v4052
  %v4055 = vadd.f32 %v2584, %v4054
  %v4056 = vtanh.pop %v4055
  %v4057 = vsub.f32 1.0, %v4050
  %v4058 = vmul.f32 %v4057, %v4056
  %v4059 = vrot.slane %v3816, 6
  %v4061 = vmul.f32 %v4050, %v4059
  %v4062 = vadd.f32 %v4058, %v4061
  %4063 = vst.msk [vmem:[#allocation2 + $0x8] sm:$0xc] %vm837, %v4062
  %v4065 = vrot.slane %v4062, 2
  %v4066 = vsel %vm355, %v4065, 0
  %4068 = vmatprep.subr.mxu0 0.0
  %4069 = vmatpush1.msra.mxu0 %v2587
  %4070 = vmatprep.subr.mxu0 0.0
  %4071 = vmatpush1.msra.mxu0 %v2588
  %4072 = vmatprep.subr.mxu0 0.0
  %4073 = vmatpush1.msra.mxu0 %v2589
  %4074 = vmatprep.subr.mxu0 0.0
  %4075 = vmatpush1.msra.mxu0 %v2590
  %4076 = vmatprep.subr.mxu0 0.0
  %4077 = vmatpush1.msra.mxu0 0.0
  %4078 = vmatprep.subr.mxu0 0.0
  %4079 = vmatpush1.msra.mxu0 0.0
  %4080 = vmatprep.subr.mxu0 0.0
  %4081 = vmatpush1.msra.mxu0 0.0
  %4082 = vmatprep.subr.mxu0 0.0
  %4083 = vmatpush1.msra.mxu0 0.0
  %4084 = vmatprep.subr.mxu0 0.0
  %4085 = vmatpush1.msra.mxu0 0.0
  %4086 = vmatprep.subr.mxu0 0.0
  %4087 = vmatpush1.msra.mxu0 0.0
  %4088 = vmatprep.subr.mxu0 0.0
  %4089 = vmatpush1.msra.mxu0 0.0
  %4090 = vmatprep.subr.mxu0 0.0
  %4091 = vmatpush1.msra.mxu0 0.0
  %4092 = vmatprep.subr.mxu0 0.0
  %4093 = vmatpush1.msra.mxu0 0.0
  %4094 = vmatprep.subr.mxu0 0.0
  %4095 = vmatpush1.msra.mxu0 0.0
  %4096 = vmatprep.subr.mxu0 0.0
  %4097 = vmatpush1.msra.mxu0 0.0
  %4098 = vmatprep.subr.mxu0 0.0
  %4099 = vmatpush1.msra.mxu0 0.0
  %4100 = vmatprep.subr.mxu0 0.0
  %4101 = vmatpush1.msra.mxu0 0.0
  %4102 = vmatprep.subr.mxu0 0.0
  %4103 = vmatpush1.msra.mxu0 0.0
  %4104 = vmatprep.subr.mxu0 0.0
  %4105 = vmatpush1.msra.mxu0 0.0
  %4106 = vmatprep.subr.mxu0 0.0
  %4107 = vmatpush1.msra.mxu0 0.0
  %4108 = vmatprep.subr.mxu0 0.0
  %4109 = vmatpush1.msra.mxu0 0.0
  %4110 = vmatprep.subr.mxu0 0.0
  %4111 = vmatpush1.msra.mxu0 0.0
  %4112 = vmatprep.subr.mxu0 0.0
  %4113 = vmatpush1.msra.mxu0 0.0
  %4114 = vmatprep.subr.mxu0 0.0
  %4115 = vmatpush1.msra.mxu0 0.0
  %4116 = vmatprep.subr.mxu0 0.0
  %4117 = vmatpush1.msra.mxu0 0.0
  %4118 = vmatprep.subr.mxu0 0.0
  %4119 = vmatpush1.msra.mxu0 0.0
  %4120 = vmatprep.subr.mxu0 0.0
  %4121 = vmatpush1.msra.mxu0 0.0
  %4122 = vmatprep.subr.mxu0 0.0
  %4123 = vmatpush1.msra.mxu0 0.0
  %4124 = vmatprep.subr.mxu0 0.0
  %4125 = vmatpush1.msra.mxu0 0.0
  %4126 = vmatprep.subr.mxu0 0.0
  %4127 = vmatpush1.msra.mxu0 0.0
  %4128 = vmatprep.subr.mxu0 0.0
  %4129 = vmatpush1.msra.mxu0 0.0
  %4130 = vmatprep.subr.mxu0 0.0
  %4131 = vmatpush1.msra.mxu0 0.0
  %4132 = vmatprep.mubr.f32.mxu0 0.0
  %4133 = vmatmul.mubr.f32.gmra.mrb[0].mxu0 %v4066
  %v4134 = vpop.f32.mrb[0].mxu0
  %v4135 = vadd.f32 0.0, %v4134
  %v4136 = vpop.f32.mrb[0].mxu0
  %4137 = vdwg.mxu0
  %4138 = vmatprep.subr.mxu0 0.0
  %4139 = vmatpush1.msra.mxu0 %v2592
  %4140 = vmatprep.subr.mxu0 0.0
  %4141 = vmatpush1.msra.mxu0 %v2593
  %4142 = vmatprep.subr.mxu0 0.0
  %4143 = vmatpush1.msra.mxu0 %v2594
  %4144 = vmatprep.subr.mxu0 0.0
  %4145 = vmatpush1.msra.mxu0 %v2595
  %4146 = vmatprep.subr.mxu0 0.0
  %4147 = vmatpush1.msra.mxu0 0.0
  %4148 = vmatprep.subr.mxu0 0.0
  %4149 = vmatpush1.msra.mxu0 0.0
  %4150 = vmatprep.subr.mxu0 0.0
  %4151 = vmatpush1.msra.mxu0 0.0
  %4152 = vmatprep.subr.mxu0 0.0
  %4153 = vmatpush1.msra.mxu0 0.0
  %4154 = vmatprep.subr.mxu0 0.0
  %4155 = vmatpush1.msra.mxu0 0.0
  %4156 = vmatprep.subr.mxu0 0.0
  %4157 = vmatpush1.msra.mxu0 0.0
  %4158 = vmatprep.subr.mxu0 0.0
  %4159 = vmatpush1.msra.mxu0 0.0
  %4160 = vmatprep.subr.mxu0 0.0
  %4161 = vmatpush1.msra.mxu0 0.0
  %4162 = vmatprep.subr.mxu0 0.0
  %4163 = vmatpush1.msra.mxu0 0.0
  %4164 = vmatprep.subr.mxu0 0.0
  %4165 = vmatpush1.msra.mxu0 0.0
  %4166 = vmatprep.subr.mxu0 0.0
  %4167 = vmatpush1.msra.mxu0 0.0
  %4168 = vmatprep.subr.mxu0 0.0
  %4169 = vmatpush1.msra.mxu0 0.0
  %4170 = vmatprep.subr.mxu0 0.0
  %4171 = vmatpush1.msra.mxu0 0.0
  %4172 = vmatprep.subr.mxu0 0.0
  %4173 = vmatpush1.msra.mxu0 0.0
  %4174 = vmatprep.subr.mxu0 0.0
  %4175 = vmatpush1.msra.mxu0 0.0
  %4176 = vmatprep.subr.mxu0 0.0
  %4177 = vmatpush1.msra.mxu0 0.0
  %4178 = vmatprep.subr.mxu0 0.0
  %4179 = vmatpush1.msra.mxu0 0.0
  %4180 = vmatprep.subr.mxu0 0.0
  %4181 = vmatpush1.msra.mxu0 0.0
  %4182 = vmatprep.subr.mxu0 0.0
  %4183 = vmatpush1.msra.mxu0 0.0
  %4184 = vmatprep.subr.mxu0 0.0
  %4185 = vmatpush1.msra.mxu0 0.0
  %4186 = vmatprep.subr.mxu0 0.0
  %4187 = vmatpush1.msra.mxu0 0.0
  %4188 = vmatprep.subr.mxu0 0.0
  %4189 = vmatpush1.msra.mxu0 0.0
  %4190 = vmatprep.subr.mxu0 0.0
  %4191 = vmatpush1.msra.mxu0 0.0
  %4192 = vmatprep.subr.mxu0 0.0
  %4193 = vmatpush1.msra.mxu0 0.0
  %4194 = vmatprep.subr.mxu0 0.0
  %4195 = vmatpush1.msra.mxu0 0.0
  %4196 = vmatprep.subr.mxu0 0.0
  %4197 = vmatpush1.msra.mxu0 0.0
  %4198 = vmatprep.subr.mxu0 0.0
  %4199 = vmatpush1.msra.mxu0 0.0
  %4200 = vmatprep.subr.mxu0 0.0
  %4201 = vmatpush1.msra.mxu0 0.0
  %4202 = vmatprep.mubr.f32.mxu0 0.0
  %4203 = vmatmul.mubr.f32.gmra.mrb[0].mxu0 %v4066
  %v4204 = vpop.f32.mrb[0].mxu0
  %v4205 = vadd.f32 0.0, %v4204
  %v4206 = vpop.f32.mrb[0].mxu0
  %4207 = vdwg.mxu0
  %4208 = vmatprep.subr.mxu0 0.0
  %4209 = vmatpush1.msra.mxu0 %v2597
  %4210 = vmatprep.subr.mxu0 0.0
  %4211 = vmatpush1.msra.mxu0 %v2598
  %4212 = vmatprep.subr.mxu0 0.0
  %4213 = vmatpush1.msra.mxu0 %v2599
  %4214 = vmatprep.subr.mxu0 0.0
  %4215 = vmatpush1.msra.mxu0 %v2600
  %4216 = vmatprep.subr.mxu0 0.0
  %4217 = vmatpush1.msra.mxu0 0.0
  %4218 = vmatprep.subr.mxu0 0.0
  %4219 = vmatpush1.msra.mxu0 0.0
  %4220 = vmatprep.subr.mxu0 0.0
  %4221 = vmatpush1.msra.mxu0 0.0
  %4222 = vmatprep.subr.mxu0 0.0
  %4223 = vmatpush1.msra.mxu0 0.0
  %4224 = vmatprep.subr.mxu0 0.0
  %4225 = vmatpush1.msra.mxu0 0.0
  %4226 = vmatprep.subr.mxu0 0.0
  %4227 = vmatpush1.msra.mxu0 0.0
  %4228 = vmatprep.subr.mxu0 0.0
  %4229 = vmatpush1.msra.mxu0 0.0
  %4230 = vmatprep.subr.mxu0 0.0
  %4231 = vmatpush1.msra.mxu0 0.0
  %4232 = vmatprep.subr.mxu0 0.0
  %4233 = vmatpush1.msra.mxu0 0.0
  %4234 = vmatprep.subr.mxu0 0.0
  %4235 = vmatpush1.msra.mxu0 0.0
  %4236 = vmatprep.subr.mxu0 0.0
  %4237 = vmatpush1.msra.mxu0 0.0
  %4238 = vmatprep.subr.mxu0 0.0
  %4239 = vmatpush1.msra.mxu0 0.0
  %4240 = vmatprep.subr.mxu0 0.0
  %4241 = vmatpush1.msra.mxu0 0.0
  %4242 = vmatprep.subr.mxu0 0.0
  %4243 = vmatpush1.msra.mxu0 0.0
  %4244 = vmatprep.subr.mxu0 0.0
  %4245 = vmatpush1.msra.mxu0 0.0
  %4246 = vmatprep.subr.mxu0 0.0
  %4247 = vmatpush1.msra.mxu0 0.0
  %4248 = vmatprep.subr.mxu0 0.0
  %4249 = vmatpush1.msra.mxu0 0.0
  %4250 = vmatprep.subr.mxu0 0.0
  %4251 = vmatpush1.msra.mxu0 0.0
  %4252 = vmatprep.subr.mxu0 0.0
  %4253 = vmatpush1.msra.mxu0 0.0
  %4254 = vmatprep.subr.mxu0 0.0
  %4255 = vmatpush1.msra.mxu0 0.0
  %4256 = vmatprep.subr.mxu0 0.0
  %4257 = vmatpush1.msra.mxu0 0.0
  %4258 = vmatprep.subr.mxu0 0.0
  %4259 = vmatpush1.msra.mxu0 0.0
  %4260 = vmatprep.subr.mxu0 0.0
  %4261 = vmatpush1.msra.mxu0 0.0
  %4262 = vmatprep.subr.mxu0 0.0
  %4263 = vmatpush1.msra.mxu0 0.0
  %4264 = vmatprep.subr.mxu0 0.0
  %4265 = vmatpush1.msra.mxu0 0.0
  %4266 = vmatprep.subr.mxu0 0.0
  %4267 = vmatpush1.msra.mxu0 0.0
  %4268 = vmatprep.subr.mxu0 0.0
  %4269 = vmatpush1.msra.mxu0 0.0
  %4270 = vmatprep.subr.mxu0 0.0
  %4271 = vmatpush1.msra.mxu0 0.0
  %4272 = vmatprep.mubr.f32.mxu0 0.0
  %4273 = vmatmul.mubr.f32.gmra.mrb[0].mxu0 %v4066
  %v4274 = vpop.f32.mrb[0].mxu0
  %v4275 = vadd.f32 %v2607, %v4274
  %v4276 = vpop.f32.mrb[0].mxu0
  %4277 = vdwg.mxu0
  %v4279 = vrot.slane %v4135, 4
  %v4281 = vadd.f32 %v2405, %v4279
  %v4282 = vxor.u32 %v4281, 2147483648
  %v4283 = vmul.f32 %v4282, 1.442695
  %v4284 = vpow.pop %v4283
  %v4285 = vadd.f32 %v4284, 1.0
  %v4286 = vrcp.pop %v4285
  %v4287 = vmul.f32 1.0, %v4286
  %v4289 = vrot.slane %v4205, 4
  %v4291 = vadd.f32 %v2496, %v4289
  %v4292 = vxor.u32 %v4291, 2147483648
  %v4293 = vmul.f32 %v4292, 1.442695
  %v4294 = vpow.pop %v4293
  %v4295 = vadd.f32 %v4294, 1.0
  %v4296 = vrcp.pop %v4295
  %v4297 = vmul.f32 1.0, %v4296
  %v4299 = vrot.slane %v4275, 4
  %v4301 = vmul.f32 %v4287, %v4299
  %v4302 = vadd.f32 %v2584, %v4301
  %v4303 = vtanh.pop %v4302
  %v4304 = vsub.f32 1.0, %v4297
  %v4305 = vmul.f32 %v4304, %v4303
  %v4306 = vrot.slane %v4062, 6
  %v4308 = vmul.f32 %v4297, %v4306
  %v4309 = vadd.f32 %v4305, %v4308
  %4310 = vst.msk [vmem:[#allocation2 + $0x8] sm:$0x30] %vm1085, %v4309
  %v4312 = vrot.slane %v4309, 4
  %v4313 = vsel %vm355, %v4312, 0
  %4315 = vmatprep.subr.mxu0 0.0
  %4316 = vmatpush1.msra.mxu0 %v2587
  %4317 = vmatprep.subr.mxu0 0.0
  %4318 = vmatpush1.msra.mxu0 %v2588
  %4319 = vmatprep.subr.mxu0 0.0
  %4320 = vmatpush1.msra.mxu0 %v2589
  %4321 = vmatprep.subr.mxu0 0.0
  %4322 = vmatpush1.msra.mxu0 %v2590
  %4323 = vmatprep.subr.mxu0 0.0
  %4324 = vmatpush1.msra.mxu0 0.0
  %4325 = vmatprep.subr.mxu0 0.0
  %4326 = vmatpush1.msra.mxu0 0.0
  %4327 = vmatprep.subr.mxu0 0.0
  %4328 = vmatpush1.msra.mxu0 0.0
  %4329 = vmatprep.subr.mxu0 0.0
  %4330 = vmatpush1.msra.mxu0 0.0
  %4331 = vmatprep.subr.mxu0 0.0
  %4332 = vmatpush1.msra.mxu0 0.0
  %4333 = vmatprep.subr.mxu0 0.0
  %4334 = vmatpush1.msra.mxu0 0.0
  %4335 = vmatprep.subr.mxu0 0.0
  %4336 = vmatpush1.msra.mxu0 0.0
  %4337 = vmatprep.subr.mxu0 0.0
  %4338 = vmatpush1.msra.mxu0 0.0
  %4339 = vmatprep.subr.mxu0 0.0
  %4340 = vmatpush1.msra.mxu0 0.0
  %4341 = vmatprep.subr.mxu0 0.0
  %4342 = vmatpush1.msra.mxu0 0.0
  %4343 = vmatprep.subr.mxu0 0.0
  %4344 = vmatpush1.msra.mxu0 0.0
  %4345 = vmatprep.subr.mxu0 0.0
  %4346 = vmatpush1.msra.mxu0 0.0
  %4347 = vmatprep.subr.mxu0 0.0
  %4348 = vmatpush1.msra.mxu0 0.0
  %4349 = vmatprep.subr.mxu0 0.0
  %4350 = vmatpush1.msra.mxu0 0.0
  %4351 = vmatprep.subr.mxu0 0.0
  %4352 = vmatpush1.msra.mxu0 0.0
  %4353 = vmatprep.subr.mxu0 0.0
  %4354 = vmatpush1.msra.mxu0 0.0
  %4355 = vmatprep.subr.mxu0 0.0
  %4356 = vmatpush1.msra.mxu0 0.0
  %4357 = vmatprep.subr.mxu0 0.0
  %4358 = vmatpush1.msra.mxu0 0.0
  %4359 = vmatprep.subr.mxu0 0.0
  %4360 = vmatpush1.msra.mxu0 0.0
  %4361 = vmatprep.subr.mxu0 0.0
  %4362 = vmatpush1.msra.mxu0 0.0
  %4363 = vmatprep.subr.mxu0 0.0
  %4364 = vmatpush1.msra.mxu0 0.0
  %4365 = vmatprep.subr.mxu0 0.0
  %4366 = vmatpush1.msra.mxu0 0.0
  %4367 = vmatprep.subr.mxu0 0.0
  %4368 = vmatpush1.msra.mxu0 0.0
  %4369 = vmatprep.subr.mxu0 0.0
  %4370 = vmatpush1.msra.mxu0 0.0
  %4371 = vmatprep.subr.mxu0 0.0
  %4372 = vmatpush1.msra.mxu0 0.0
  %4373 = vmatprep.subr.mxu0 0.0
  %4374 = vmatpush1.msra.mxu0 0.0
  %4375 = vmatprep.subr.mxu0 0.0
  %4376 = vmatpush1.msra.mxu0 0.0
  %4377 = vmatprep.subr.mxu0 0.0
  %4378 = vmatpush1.msra.mxu0 0.0
  %4379 = vmatprep.mubr.f32.mxu0 0.0
  %4380 = vmatmul.mubr.f32.gmra.mrb[0].mxu0 %v4313
  %v4381 = vpop.f32.mrb[0].mxu0
  %v4382 = vadd.f32 0.0, %v4381
  %v4383 = vpop.f32.mrb[0].mxu0
  %4384 = vdwg.mxu0
  %4385 = vmatprep.subr.mxu0 0.0
  %4386 = vmatpush1.msra.mxu0 %v2592
  %4387 = vmatprep.subr.mxu0 0.0
  %4388 = vmatpush1.msra.mxu0 %v2593
  %4389 = vmatprep.subr.mxu0 0.0
  %4390 = vmatpush1.msra.mxu0 %v2594
  %4391 = vmatprep.subr.mxu0 0.0
  %4392 = vmatpush1.msra.mxu0 %v2595
  %4393 = vmatprep.subr.mxu0 0.0
  %4394 = vmatpush1.msra.mxu0 0.0
  %4395 = vmatprep.subr.mxu0 0.0
  %4396 = vmatpush1.msra.mxu0 0.0
  %4397 = vmatprep.subr.mxu0 0.0
  %4398 = vmatpush1.msra.mxu0 0.0
  %4399 = vmatprep.subr.mxu0 0.0
  %4400 = vmatpush1.msra.mxu0 0.0
  %4401 = vmatprep.subr.mxu0 0.0
  %4402 = vmatpush1.msra.mxu0 0.0
  %4403 = vmatprep.subr.mxu0 0.0
  %4404 = vmatpush1.msra.mxu0 0.0
  %4405 = vmatprep.subr.mxu0 0.0
  %4406 = vmatpush1.msra.mxu0 0.0
  %4407 = vmatprep.subr.mxu0 0.0
  %4408 = vmatpush1.msra.mxu0 0.0
  %4409 = vmatprep.subr.mxu0 0.0
  %4410 = vmatpush1.msra.mxu0 0.0
  %4411 = vmatprep.subr.mxu0 0.0
  %4412 = vmatpush1.msra.mxu0 0.0
  %4413 = vmatprep.subr.mxu0 0.0
  %4414 = vmatpush1.msra.mxu0 0.0
  %4415 = vmatprep.subr.mxu0 0.0
  %4416 = vmatpush1.msra.mxu0 0.0
  %4417 = vmatprep.subr.mxu0 0.0
  %4418 = vmatpush1.msra.mxu0 0.0
  %4419 = vmatprep.subr.mxu0 0.0
  %4420 = vmatpush1.msra.mxu0 0.0
  %4421 = vmatprep.subr.mxu0 0.0
  %4422 = vmatpush1.msra.mxu0 0.0
  %4423 = vmatprep.subr.mxu0 0.0
  %4424 = vmatpush1.msra.mxu0 0.0
  %4425 = vmatprep.subr.mxu0 0.0
  %4426 = vmatpush1.msra.mxu0 0.0
  %4427 = vmatprep.subr.mxu0 0.0
  %4428 = vmatpush1.msra.mxu0 0.0
  %4429 = vmatprep.subr.mxu0 0.0
  %4430 = vmatpush1.msra.mxu0 0.0
  %4431 = vmatprep.subr.mxu0 0.0
  %4432 = vmatpush1.msra.mxu0 0.0
  %4433 = vmatprep.subr.mxu0 0.0
  %4434 = vmatpush1.msra.mxu0 0.0
  %4435 = vmatprep.subr.mxu0 0.0
  %4436 = vmatpush1.msra.mxu0 0.0
  %4437 = vmatprep.subr.mxu0 0.0
  %4438 = vmatpush1.msra.mxu0 0.0
  %4439 = vmatprep.subr.mxu0 0.0
  %4440 = vmatpush1.msra.mxu0 0.0
  %4441 = vmatprep.subr.mxu0 0.0
  %4442 = vmatpush1.msra.mxu0 0.0
  %4443 = vmatprep.subr.mxu0 0.0
  %4444 = vmatpush1.msra.mxu0 0.0
  %4445 = vmatprep.subr.mxu0 0.0
  %4446 = vmatpush1.msra.mxu0 0.0
  %4447 = vmatprep.subr.mxu0 0.0
  %4448 = vmatpush1.msra.mxu0 0.0
  %4449 = vmatprep.mubr.f32.mxu0 0.0
  %4450 = vmatmul.mubr.f32.gmra.mrb[0].mxu0 %v4313
  %v4451 = vpop.f32.mrb[0].mxu0
  %v4452 = vadd.f32 0.0, %v4451
  %v4453 = vpop.f32.mrb[0].mxu0
  %4454 = vdwg.mxu0
  %4455 = vmatprep.subr.mxu0 0.0
  %4456 = vmatpush1.msra.mxu0 %v2597
  %4457 = vmatprep.subr.mxu0 0.0
  %4458 = vmatpush1.msra.mxu0 %v2598
  %4459 = vmatprep.subr.mxu0 0.0
  %4460 = vmatpush1.msra.mxu0 %v2599
  %4461 = vmatprep.subr.mxu0 0.0
  %4462 = vmatpush1.msra.mxu0 %v2600
  %4463 = vmatprep.subr.mxu0 0.0
  %4464 = vmatpush1.msra.mxu0 0.0
  %4465 = vmatprep.subr.mxu0 0.0
  %4466 = vmatpush1.msra.mxu0 0.0
  %4467 = vmatprep.subr.mxu0 0.0
  %4468 = vmatpush1.msra.mxu0 0.0
  %4469 = vmatprep.subr.mxu0 0.0
  %4470 = vmatpush1.msra.mxu0 0.0
  %4471 = vmatprep.subr.mxu0 0.0
  %4472 = vmatpush1.msra.mxu0 0.0
  %4473 = vmatprep.subr.mxu0 0.0
  %4474 = vmatpush1.msra.mxu0 0.0
  %4475 = vmatprep.subr.mxu0 0.0
  %4476 = vmatpush1.msra.mxu0 0.0
  %4477 = vmatprep.subr.mxu0 0.0
  %4478 = vmatpush1.msra.mxu0 0.0
  %4479 = vmatprep.subr.mxu0 0.0
  %4480 = vmatpush1.msra.mxu0 0.0
  %4481 = vmatprep.subr.mxu0 0.0
  %4482 = vmatpush1.msra.mxu0 0.0
  %4483 = vmatprep.subr.mxu0 0.0
  %4484 = vmatpush1.msra.mxu0 0.0
  %4485 = vmatprep.subr.mxu0 0.0
  %4486 = vmatpush1.msra.mxu0 0.0
  %4487 = vmatprep.subr.mxu0 0.0
  %4488 = vmatpush1.msra.mxu0 0.0
  %4489 = vmatprep.subr.mxu0 0.0
  %4490 = vmatpush1.msra.mxu0 0.0
  %4491 = vmatprep.subr.mxu0 0.0
  %4492 = vmatpush1.msra.mxu0 0.0
  %4493 = vmatprep.subr.mxu0 0.0
  %4494 = vmatpush1.msra.mxu0 0.0
  %4495 = vmatprep.subr.mxu0 0.0
  %4496 = vmatpush1.msra.mxu0 0.0
  %4497 = vmatprep.subr.mxu0 0.0
  %4498 = vmatpush1.msra.mxu0 0.0
  %4499 = vmatprep.subr.mxu0 0.0
  %4500 = vmatpush1.msra.mxu0 0.0
  %4501 = vmatprep.subr.mxu0 0.0
  %4502 = vmatpush1.msra.mxu0 0.0
  %4503 = vmatprep.subr.mxu0 0.0
  %4504 = vmatpush1.msra.mxu0 0.0
  %4505 = vmatprep.subr.mxu0 0.0
  %4506 = vmatpush1.msra.mxu0 0.0
  %4507 = vmatprep.subr.mxu0 0.0
  %4508 = vmatpush1.msra.mxu0 0.0
  %4509 = vmatprep.subr.mxu0 0.0
  %4510 = vmatpush1.msra.mxu0 0.0
  %4511 = vmatprep.subr.mxu0 0.0
  %4512 = vmatpush1.msra.mxu0 0.0
  %4513 = vmatprep.subr.mxu0 0.0
  %4514 = vmatpush1.msra.mxu0 0.0
  %4515 = vmatprep.subr.mxu0 0.0
  %4516 = vmatpush1.msra.mxu0 0.0
  %4517 = vmatprep.subr.mxu0 0.0
  %4518 = vmatpush1.msra.mxu0 0.0
  %4519 = vmatprep.mubr.f32.mxu0 0.0
  %4520 = vmatmul.mubr.f32.gmra.mrb[0].mxu0 %v4313
  %v4521 = vpop.f32.mrb[0].mxu0
  %v4522 = vadd.f32 %v2607, %v4521
  %v4523 = vpop.f32.mrb[0].mxu0
  %4524 = vdwg.mxu0
  %v4526 = vrot.slane %v4382, 2
  %v4528 = vadd.f32 %v2405, %v4526
  %v4529 = vxor.u32 %v4528, 2147483648
  %v4530 = vmul.f32 %v4529, 1.442695
  %v4531 = vpow.pop %v4530
  %v4532 = vadd.f32 %v4531, 1.0
  %v4533 = vrcp.pop %v4532
  %v4534 = vmul.f32 1.0, %v4533
  %v4536 = vrot.slane %v4452, 2
  %v4538 = vadd.f32 %v2496, %v4536
  %v4539 = vxor.u32 %v4538, 2147483648
  %v4540 = vmul.f32 %v4539, 1.442695
  %v4541 = vpow.pop %v4540
  %v4542 = vadd.f32 %v4541, 1.0
  %v4543 = vrcp.pop %v4542
  %v4544 = vmul.f32 1.0, %v4543
  %v4546 = vrot.slane %v4522, 2
  %v4548 = vmul.f32 %v4534, %v4546
  %v4549 = vadd.f32 %v2584, %v4548
  %v4550 = vtanh.pop %v4549
  %v4551 = vsub.f32 1.0, %v4544
  %v4552 = vmul.f32 %v4551, %v4550
  %v4553 = vrot.slane %v4309, 6
  %v4555 = vmul.f32 %v4544, %v4553
  %v4556 = vadd.f32 %v4552, %v4555
  %4557 = vst.msk [vmem:[#allocation2 + $0x8] sm:$0xc0] %vm1333, %v4556
  %v4558 = vld [vmem:[#allocation2] sm:$0xff]
  %v4559 = vld [vmem:[#allocation2 + $0x8] sm:$0xff]
  %v4560 = vld [vmem:[%s9] sm:$0xff]
  %v4561 = vld [vmem:[%s9 + $0x8] sm:$0xff]
  %v4562 = vld [vmem:[%s9 + $0x10] sm:$0xff]
  %v4563 = vld [vmem:[%s9 + $0x18] sm:$0xff]
  %v4564 = vld [vmem:[%s10] sm:$0x1]
  %v4566 = vlaneseq
  %v4567 = vshrl.u32 %v4566, 7
  %v4568 = vsub.s32 0, %v4567
  %v4569 = vrot.slane %v4564, %v4568
  %v4572 = vsel %vm355, %v4558, 0
  %v4575 = vsel %vm355, %v4559, 0
  %4577 = vmatprep.subr.mxu0 0.0
  %4578 = vmatpush1.msra.mxu0 %v4560
  %4579 = vmatprep.subr.mxu0 0.0
  %4580 = vmatpush1.msra.mxu0 %v4561
  %4581 = vmatprep.subr.mxu0 0.0
  %4582 = vmatpush1.msra.mxu0 %v4562
  %4583 = vmatprep.subr.mxu0 0.0
  %4584 = vmatpush1.msra.mxu0 %v4563
  %4585 = vmatprep.subr.mxu0 0.0
  %4586 = vmatpush1.msra.mxu0 0.0
  %4587 = vmatprep.subr.mxu0 0.0
  %4588 = vmatpush1.msra.mxu0 0.0
  %4589 = vmatprep.subr.mxu0 0.0
  %4590 = vmatpush1.msra.mxu0 0.0
  %4591 = vmatprep.subr.mxu0 0.0
  %4592 = vmatpush1.msra.mxu0 0.0
  %4593 = vmatprep.subr.mxu0 0.0
  %4594 = vmatpush1.msra.mxu0 0.0
  %4595 = vmatprep.subr.mxu0 0.0
  %4596 = vmatpush1.msra.mxu0 0.0
  %4597 = vmatprep.subr.mxu0 0.0
  %4598 = vmatpush1.msra.mxu0 0.0
  %4599 = vmatprep.subr.mxu0 0.0
  %4600 = vmatpush1.msra.mxu0 0.0
  %4601 = vmatprep.subr.mxu0 0.0
  %4602 = vmatpush1.msra.mxu0 0.0
  %4603 = vmatprep.subr.mxu0 0.0
  %4604 = vmatpush1.msra.mxu0 0.0
  %4605 = vmatprep.subr.mxu0 0.0
  %4606 = vmatpush1.msra.mxu0 0.0
  %4607 = vmatprep.subr.mxu0 0.0
  %4608 = vmatpush1.msra.mxu0 0.0
  %4609 = vmatprep.subr.mxu0 0.0
  %4610 = vmatpush1.msra.mxu0 0.0
  %4611 = vmatprep.subr.mxu0 0.0
  %4612 = vmatpush1.msra.mxu0 0.0
  %4613 = vmatprep.subr.mxu0 0.0
  %4614 = vmatpush1.msra.mxu0 0.0
  %4615 = vmatprep.subr.mxu0 0.0
  %4616 = vmatpush1.msra.mxu0 0.0
  %4617 = vmatprep.subr.mxu0 0.0
  %4618 = vmatpush1.msra.mxu0 0.0
  %4619 = vmatprep.subr.mxu0 0.0
  %4620 = vmatpush1.msra.mxu0 0.0
  %4621 = vmatprep.subr.mxu0 0.0
  %4622 = vmatpush1.msra.mxu0 0.0
  %4623 = vmatprep.subr.mxu0 0.0
  %4624 = vmatpush1.msra.mxu0 0.0
  %4625 = vmatprep.subr.mxu0 0.0
  %4626 = vmatpush1.msra.mxu0 0.0
  %4627 = vmatprep.subr.mxu0 0.0
  %4628 = vmatpush1.msra.mxu0 0.0
  %4629 = vmatprep.subr.mxu0 0.0
  %4630 = vmatpush1.msra.mxu0 0.0
  %4631 = vmatprep.subr.mxu0 0.0
  %4632 = vmatpush1.msra.mxu0 0.0
  %4633 = vmatprep.subr.mxu0 0.0
  %4634 = vmatpush1.msra.mxu0 0.0
  %4635 = vmatprep.subr.mxu0 0.0
  %4636 = vmatpush1.msra.mxu0 0.0
  %4637 = vmatprep.subr.mxu0 0.0
  %4638 = vmatpush1.msra.mxu0 0.0
  %4639 = vmatprep.subr.mxu0 0.0
  %4640 = vmatpush1.msra.mxu0 0.0
  %4641 = vmatprep.mubr.f32.mxu0 0.0
  %4642 = vmatmul.mubr.f32.gmra.mrb[0].mxu0 %v4572
  %v4643 = vpop.f32.mrb[0].mxu0
  %v4644 = vadd.f32 %v4569, %v4643
  %v4645 = vpop.f32.mrb[0].mxu0
  %4646 = vmatprep.mubr.f32.mxu0 0.0
  %4647 = vmatmul.mubr.f32.gmra.mrb[0].mxu0 %v4575
  %v4648 = vpop.f32.mrb[0].mxu0
  %v4649 = vadd.f32 %v4569, %v4648
  %v4650 = vpop.f32.mrb[0].mxu0
  %4651 = vdwg.mxu0
  %v4652 = vmax.f32 %v4644, 0.0
  %v4653 = vmax.f32 %v4649, 0.0
  %v4654 = vld [vmem:[%s11] sm:$0xff]
  %v4655 = vld [vmem:[%s11 + $0x8] sm:$0xff]
  %v4656 = vld [vmem:[%s11 + $0x10] sm:$0xff]
  %v4657 = vld [vmem:[%s11 + $0x18] sm:$0xff]
  %v4658 = vld [vmem:[%s12] sm:$0x1]
  %v4660 = vlaneseq
  %v4661 = vshrl.u32 %v4660, 7
  %v4662 = vsub.s32 0, %v4661
  %v4663 = vrot.slane %v4658, %v4662
  %v4666 = vsel %vm355, %v4652, 0
  %v4669 = vsel %vm355, %v4653, 0
  %4671 = vmatprep.subr.mxu0 0.0
  %4672 = vmatpush1.msra.mxu0 %v4654
  %4673 = vmatprep.subr.mxu0 0.0
  %4674 = vmatpush1.msra.mxu0 %v4655
  %4675 = vmatprep.subr.mxu0 0.0
  %4676 = vmatpush1.msra.mxu0 %v4656
  %4677 = vmatprep.subr.mxu0 0.0
  %4678 = vmatpush1.msra.mxu0 %v4657
  %4679 = vmatprep.subr.mxu0 0.0
  %4680 = vmatpush1.msra.mxu0 0.0
  %4681 = vmatprep.subr.mxu0 0.0
  %4682 = vmatpush1.msra.mxu0 0.0
  %4683 = vmatprep.subr.mxu0 0.0
  %4684 = vmatpush1.msra.mxu0 0.0
  %4685 = vmatprep.subr.mxu0 0.0
  %4686 = vmatpush1.msra.mxu0 0.0
  %4687 = vmatprep.subr.mxu0 0.0
  %4688 = vmatpush1.msra.mxu0 0.0
  %4689 = vmatprep.subr.mxu0 0.0
  %4690 = vmatpush1.msra.mxu0 0.0
  %4691 = vmatprep.subr.mxu0 0.0
  %4692 = vmatpush1.msra.mxu0 0.0
  %4693 = vmatprep.subr.mxu0 0.0
  %4694 = vmatpush1.msra.mxu0 0.0
  %4695 = vmatprep.subr.mxu0 0.0
  %4696 = vmatpush1.msra.mxu0 0.0
  %4697 = vmatprep.subr.mxu0 0.0
  %4698 = vmatpush1.msra.mxu0 0.0
  %4699 = vmatprep.subr.mxu0 0.0
  %4700 = vmatpush1.msra.mxu0 0.0
  %4701 = vmatprep.subr.mxu0 0.0
  %4702 = vmatpush1.msra.mxu0 0.0
  %4703 = vmatprep.subr.mxu0 0.0
  %4704 = vmatpush1.msra.mxu0 0.0
  %4705 = vmatprep.subr.mxu0 0.0
  %4706 = vmatpush1.msra.mxu0 0.0
  %4707 = vmatprep.subr.mxu0 0.0
  %4708 = vmatpush1.msra.mxu0 0.0
  %4709 = vmatprep.subr.mxu0 0.0
  %4710 = vmatpush1.msra.mxu0 0.0
  %4711 = vmatprep.subr.mxu0 0.0
  %4712 = vmatpush1.msra.mxu0 0.0
  %4713 = vmatprep.subr.mxu0 0.0
  %4714 = vmatpush1.msra.mxu0 0.0
  %4715 = vmatprep.subr.mxu0 0.0
  %4716 = vmatpush1.msra.mxu0 0.0
  %4717 = vmatprep.subr.mxu0 0.0
  %4718 = vmatpush1.msra.mxu0 0.0
  %4719 = vmatprep.subr.mxu0 0.0
  %4720 = vmatpush1.msra.mxu0 0.0
  %4721 = vmatprep.subr.mxu0 0.0
  %4722 = vmatpush1.msra.mxu0 0.0
  %4723 = vmatprep.subr.mxu0 0.0
  %4724 = vmatpush1.msra.mxu0 0.0
  %4725 = vmatprep.subr.mxu0 0.0
  %4726 = vmatpush1.msra.mxu0 0.0
  %4727 = vmatprep.subr.mxu0 0.0
  %4728 = vmatpush1.msra.mxu0 0.0
  %4729 = vmatprep.subr.mxu0 0.0
  %4730 = vmatpush1.msra.mxu0 0.0
  %4731 = vmatprep.subr.mxu0 0.0
  %4732 = vmatpush1.msra.mxu0 0.0
  %4733 = vmatprep.subr.mxu0 0.0
  %4734 = vmatpush1.msra.mxu0 0.0
  %4735 = vmatprep.mubr.f32.mxu0 0.0
  %4736 = vmatmul.mubr.f32.gmra.mrb[0].mxu0 %v4666
  %v4737 = vpop.f32.mrb[0].mxu0
  %v4738 = vadd.f32 %v4663, %v4737
  %v4739 = vpop.f32.mrb[0].mxu0
  %4740 = vmatprep.mubr.f32.mxu0 0.0
  %4741 = vmatmul.mubr.f32.gmra.mrb[0].mxu0 %v4669
  %v4742 = vpop.f32.mrb[0].mxu0
  %v4743 = vadd.f32 %v4663, %v4742
  %v4744 = vpop.f32.mrb[0].mxu0
  %4745 = vdwg.mxu0
  %4746 = vst [vmem:[%s13] sm:$0xff] %v4738
  %4747 = vst [vmem:[%s13 + $0x8] sm:$0xff] %v4743
  // Predicated region
  $region54: #{lm_hyoassgen_forward.1} parent=0 // pred_check
    _
  $region55: #{lm_hyoassgen_forward.1} parent=0 // pred_check_branch
    %4749 = sbr.rel (0) target = $region57
  $region56: #{lm_hyoassgen_forward.1} parent=0 // pred_region
    _
  $region57: #{lm_hyoassgen_forward.1} parent=0 // pred_fallthru
    _
  // Predicated region
  $region58: #{lm_hyoassgen_forward.1} parent=0 // pred_check
    _
  $region59: #{lm_hyoassgen_forward.1} parent=0 // pred_check_branch
    %4751 = sbr.rel (0) target = $region61
  $region60: #{lm_hyoassgen_forward.1} parent=0 // pred_region
    _
  $region61: #{lm_hyoassgen_forward.1} parent=0 // pred_fallthru
    _

</llo_original>
